<compile_context>
chip_gen: v7x
topology: tpu7x:2x2x1
jax: 0.10.0
libtpu: 0.0.40
codegen_flags: <defaults>
</compile_context>

<pallas_src>
import numpy as np

import jax
import jax.numpy as jnp
from jax import lax
from jax.experimental import pallas as pl
from jax.experimental.pallas import tpu as pltpu

# ----------------------------- small synthetic config -----------------------------
VOCAB = 100
MAX_POS = 64
HIDDEN = 32               # config.hidden_size
NUM_HEADS = 2
HEAD_DIM = HIDDEN // NUM_HEADS
INTERMEDIATE = 64         # config.intermediate_size
NUM_LAYERS = 2
DEC_INTERMEDIATE = 48     # config.decoder_intermediate_size
FEATURE_DIM = 16          # config.feature_dimension
LN_EPS = 1e-5
SLAB_LANES = 128          # lane width of the packed parameter slabs
OUT_LANES = 128           # lane-dense packed output slab width


def _round16(n):
    return ((n + 15) // 16) * 16


# ------------------------ packed parameter slab layouts ---------------------------
# bf16 weight slab: every weight stored transposed (in, out), lane-padded to 128,
# row-padded to a multiple of 16 so every static slice is sublane-aligned.
_w_layout = [("word_emb", VOCAB, HIDDEN), ("pos_emb", MAX_POS, HIDDEN)]
for _l in range(NUM_LAYERS):
    _w_layout += [
        (f"l{_l}_wqkv", HIDDEN, 3 * HIDDEN),
        (f"l{_l}_wo", HIDDEN, HIDDEN),
        (f"l{_l}_w1", HIDDEN, INTERMEDIATE),
        (f"l{_l}_w2", INTERMEDIATE, HIDDEN),
    ]
_w_layout += [
    ("gru_wih", HIDDEN, 3 * HIDDEN),          # [r|z|n] lane-aligned gate blocks
    ("gru_whh", HIDDEN, 3 * HIDDEN),
    ("dec_narr", HIDDEN, DEC_INTERMEDIATE + 1),   # decoder-L1 | narrative head fused
    ("dec2", DEC_INTERMEDIATE, FEATURE_DIM),
]
W_OFF = {}
_r = 0
for _name, _rows, _cols in _w_layout:
    W_OFF[_name] = (_r, _rows, _cols)
    _r += _round16(_rows)
W_TOTAL_ROWS = _r                                  # multiple of 16 by construction

# f32 bias / LayerNorm slab: one 128-lane row per vector.
_b_layout = [("type_emb", HIDDEN), ("emb_ln_g", HIDDEN), ("emb_ln_b", HIDDEN)]
for _l in range(NUM_LAYERS):
    _b_layout += [
        (f"l{_l}_bqkv", 3 * HIDDEN), (f"l{_l}_bo", HIDDEN),
        (f"l{_l}_ln1g", HIDDEN), (f"l{_l}_ln1b", HIDDEN),
        (f"l{_l}_b1", INTERMEDIATE), (f"l{_l}_b2", HIDDEN),
        (f"l{_l}_ln2g", HIDDEN), (f"l{_l}_ln2b", HIDDEN),
    ]
_b_layout += [("gru_bih", 3 * HIDDEN), ("gru_bhh", 3 * HIDDEN),
              ("dec_narr_b", DEC_INTERMEDIATE + 1), ("dec2_b", FEATURE_DIM)]
B_OFF = {name: (i, w) for i, (name, w) in enumerate(_b_layout)}
B_TOTAL_ROWS = ((len(_b_layout) + 7) // 8) * 8


# --------------------------------- helpers ---------------------------------------
def _layer_norm(x, gamma, beta):
    mu = jnp.mean(x, axis=-1, keepdims=True)
    var = jnp.mean((x - mu) ** 2, axis=-1, keepdims=True)
    return (x - mu) * lax.rsqrt(var + LN_EPS) * gamma + beta


def _bf(x):
    return x.astype(jnp.bfloat16)


# --------------------------- fused forward Pallas kernel ---------------------------
def fused_forward_kernel(ids_ref, maskc_ref, maskr_ref, h0_ref, clsoh_ref,
                         w_ref, b_ref, out_ref):
    """Embedding gather+LN -> encoder layers -> cls matmul -> GRU -> heads, in VMEM."""
    S = ids_ref.shape[0]
    T = clsoh_ref.shape[0]
    H = HIDDEN
    HD = HEAD_DIM

    # static, zero-cost carving of the packed parameter slabs
    def wslice(name):
        off, rows, cols = W_OFF[name]
        return w_ref[off:off + rows, :cols]

    def wslice_padrows(name):
        off, rows, cols = W_OFF[name]
        return w_ref[off:off + _round16(rows), :cols]

    def brow(name):
        row, cols = B_OFF[name]
        return b_ref[row:row + 1, :cols]

    # ---- embeddings: gathers as one-hot matmuls on the (idle) MXU ----
    ids = ids_ref[...]                                   # (S, 1) int32
    mask_c = maskc_ref[...]                              # (S, 1) f32
    mask_r = maskr_ref[...]                              # (1, S) f32

    vrows = _round16(VOCAB)                              # padded slab rows are zero
    word_eq = lax.broadcasted_iota(jnp.int32, (S, vrows), 1) == ids
    word_oh = jnp.where(word_eq, 1.0, 0.0).astype(jnp.bfloat16)

    # RoBERTa position ids: cumsum(mask) * mask + padding_idx(=1), cumsum done as a
    # lower-triangular mask multiply + lane reduce (no jnp.cumsum lowering needed).
    tri = jnp.where(lax.broadcasted_iota(jnp.int32, (S, S), 1)
                    <= lax.broadcasted_iota(jnp.int32, (S, S), 0), 1.0, 0.0)
    cum_c = jnp.sum(tri * mask_r, axis=1, keepdims=True)         # (S, 1)
    pos_c = (cum_c * mask_c + 1.0).astype(jnp.int32)              # (S, 1)
    pos_eq = lax.broadcasted_iota(jnp.int32, (S, MAX_POS), 1) == pos_c
    pos_oh = jnp.where(pos_eq, 1.0, 0.0).astype(jnp.bfloat16)

    emb = (jnp.dot(word_oh, wslice_padrows("word_emb"), preferred_element_type=jnp.float32)
           + jnp.dot(pos_oh, wslice("pos_emb"), preferred_element_type=jnp.float32)
           + brow("type_emb"))
    x = _layer_norm(emb, brow("emb_ln_g"), brow("emb_ln_b"))      # (S, H) f32

    # additive key mask, broadcast once and reused by every head / layer
    add_bias = jnp.broadcast_to((mask_r - 1.0) * 1e9, (S, S))
    scale = 1.0 / float(HD) ** 0.5

    # ---- transformer encoder layers ----
    for l in range(NUM_LAYERS):
        # fused QKV projection: one (S,H) x (H,3H) matmul, bf16 in / f32 accumulate
        qkv = jnp.dot(_bf(x), wslice(f"l{l}_wqkv"),
                      preferred_element_type=jnp.float32) + brow(f"l{l}_bqkv")
        q, k, v = qkv[:, :H], qkv[:, H:2 * H], qkv[:, 2 * H:3 * H]

        wo_off, _, _ = W_OFF[f"l{l}_wo"]
        attn = brow(f"l{l}_bo")                          # (1,H), broadcasts over rows
        for h in range(NUM_HEADS):                       # static unroll over heads
            sl = slice(h * HD, (h + 1) * HD)
            qh, kh, vh = q[:, sl], k[:, sl], v[:, sl]
            # q . k^T without materializing a transpose (contract dim 1 of both)
            scores = lax.dot_general(qh, kh, (((1,), (1,)), ((), ())),
                                     preferred_element_type=jnp.float32)
            scores = scores * scale + add_bias
            # hand-rolled softmax; the divide goes to the EUP via approx reciprocal
            m = jnp.max(scores, axis=-1, keepdims=True)
            e = jnp.exp(scores - m)
            p = e * pl.reciprocal(jnp.sum(e, axis=-1, keepdims=True), approx=True)
            ctx_h = jnp.dot(_bf(p), _bf(vh), preferred_element_type=jnp.float32)
            # per-head row block of Wo: no context concat / lane relayout
            wo_h = w_ref[wo_off + h * HD:wo_off + (h + 1) * HD, :H]
            attn = attn + jnp.dot(_bf(ctx_h), wo_h, preferred_element_type=jnp.float32)

        y = _layer_norm(x + attn, brow(f"l{l}_ln1g"), brow(f"l{l}_ln1b"))
        hmid = jax.nn.gelu(
            jnp.dot(_bf(y), wslice(f"l{l}_w1"),
                    preferred_element_type=jnp.float32) + brow(f"l{l}_b1"))
        ffn = jnp.dot(_bf(hmid), wslice(f"l{l}_w2"),
                      preferred_element_type=jnp.float32) + brow(f"l{l}_b2")
        x = _layer_norm(y + ffn, brow(f"l{l}_ln2g"), brow(f"l{l}_ln2b"))

    # ---- cls_hidden = encoder_out[cls_idx] as a constant one-hot matmul ----
    cls_hidden = jnp.dot(clsoh_ref[...], _bf(x), preferred_element_type=jnp.float32)  # (T,H)

    # ---- GRU sequential decoder ----
    w_ih = wslice("gru_wih")                              # (H, 3H) [r|z|n]
    w_hh = wslice("gru_whh")
    b_ih = brow("gru_bih")                                # (1, 3H)
    b_hh = brow("gru_bhh")

    # all T input-gate projections at once; fold b_hh_r / b_hh_z in here (b_hh_n is
    # multiplied by r, so it stays inside the step).
    gx = jnp.dot(_bf(cls_hidden), w_ih, preferred_element_type=jnp.float32) + b_ih
    gx_r = gx[:, :H] + b_hh[:, :H]
    gx_z = gx[:, H:2 * H] + b_hh[:, H:2 * H]
    gx_n = gx[:, 2 * H:3 * H]
    b_hh_n = b_hh[:, 2 * H:3 * H]

    hcur = h0_ref[...]                                    # (1, H) f32
    outs = []
    for t in range(T):                                    # T is small & static
        gh = jnp.dot(_bf(hcur), w_hh, preferred_element_type=jnp.float32)  # (1, 3H)
        r = jax.nn.sigmoid(gx_r[t:t + 1, :] + gh[:, :H])
        z = jax.nn.sigmoid(gx_z[t:t + 1, :] + gh[:, H:2 * H])
        n = jnp.tanh(gx_n[t:t + 1, :] + r * (gh[:, 2 * H:3 * H] + b_hh_n))
        hcur = (1.0 - z) * n + z * hcur
        outs.append(hcur)
    seq = jnp.concatenate(outs, axis=0)                   # (T, H) == rnn_out[-1]

    # ---- decoder MLP + narrative classifier (L1 and narr head share one matmul) ----
    sb = _bf(seq)
    hn = jnp.dot(sb, wslice("dec_narr"),
                 preferred_element_type=jnp.float32) + brow("dec_narr_b")   # (T, 49)
    dh = hn[:, :DEC_INTERMEDIATE]
    narr = hn[:, DEC_INTERMEDIATE:DEC_INTERMEDIATE + 1]
    # ELU(alpha=1); clamp the dead branch so exp never overflows for large positives.
    dh = jnp.where(dh > 0, dh, jnp.exp(jnp.minimum(dh, 0.0)) - 1.0)
    latent = jnp.dot(_bf(dh), wslice("dec2"),
                     preferred_element_type=jnp.float32) + brow("dec2_b")   # (T, F)

    # ---- (>=8, 128) output slab: full-tile zero store + small masked row stores ----
    #   rows [0:T, 0:FEATURE_DIM]              = latent features
    #   rows [0:T, FEATURE_DIM:FEATURE_DIM+1]  = narrative logits
    #   row  [T,   0:HIDDEN]                   = final GRU hidden state
    out_ref[...] = jnp.zeros(out_ref.shape, jnp.float32)
    out_ref[0:T, 0:FEATURE_DIM] = latent
    out_ref[0:T, FEATURE_DIM:FEATURE_DIM + 1] = narr
    out_ref[T:T + 1, 0:HIDDEN] = hcur


# ----------------------------- parameter initialization ---------------------------
def init_params(key):
    keys = iter(jax.random.split(key, 64))

    def nrm(shape):
        return 0.02 * jax.random.normal(next(keys), shape, dtype=jnp.float32)

    # ---- bf16 weight slab ----
    wslab = jnp.zeros((W_TOTAL_ROWS, SLAB_LANES), jnp.float32)

    def put_w(slab, name, val, col0=0):
        off, _, _ = W_OFF[name]
        r, c = val.shape
        return slab.at[off:off + r, col0:col0 + c].set(val)

    wslab = put_w(wslab, "word_emb", nrm((VOCAB, HIDDEN)))
    wslab = put_w(wslab, "pos_emb", nrm((MAX_POS, HIDDEN)))
    for l in range(NUM_LAYERS):
        wslab = put_w(wslab, f"l{l}_wqkv", nrm((HIDDEN, 3 * HIDDEN)))
        wslab = put_w(wslab, f"l{l}_wo", nrm((HIDDEN, HIDDEN)))
        wslab = put_w(wslab, f"l{l}_w1", nrm((HIDDEN, INTERMEDIATE)))
        wslab = put_w(wslab, f"l{l}_w2", nrm((INTERMEDIATE, HIDDEN)))
    wslab = put_w(wslab, "gru_wih", nrm((HIDDEN, 3 * HIDDEN)))
    wslab = put_w(wslab, "gru_whh", nrm((HIDDEN, 3 * HIDDEN)))
    wslab = put_w(wslab, "dec_narr", nrm((HIDDEN, DEC_INTERMEDIATE)))                 # decoder L1
    wslab = put_w(wslab, "dec_narr", nrm((HIDDEN, 1)), col0=DEC_INTERMEDIATE)         # narr head
    wslab = put_w(wslab, "dec2", nrm((DEC_INTERMEDIATE, FEATURE_DIM)))
    wslab = wslab.astype(jnp.bfloat16)

    # ---- f32 bias / LayerNorm slab (biases and LN betas are zero) ----
    bslab = jnp.zeros((B_TOTAL_ROWS, SLAB_LANES), jnp.float32)

    def put_b(slab, name, val):
        row, _ = B_OFF[name]
        flat = val.reshape(-1)
        return slab.at[row, :flat.shape[0]].set(flat)

    bslab = put_b(bslab, "type_emb", nrm((1, HIDDEN)))
    bslab = put_b(bslab, "emb_ln_g", jnp.ones((1, HIDDEN), jnp.float32))
    for l in range(NUM_LAYERS):
        bslab = put_b(bslab, f"l{l}_ln1g", jnp.ones((1, HIDDEN), jnp.float32))
        bslab = put_b(bslab, f"l{l}_ln2g", jnp.ones((1, HIDDEN), jnp.float32))

    return {"wslab": wslab, "bslab": bslab}


# --------------------------------- full forward -----------------------------------
def speaker_cluster_forward(params, input_ids, cls_idx, attention_mask, rnn_last_hidden=None):
    if cls_idx is None:
        cls_idx = [0]
    cls_idx = tuple(int(i) for i in cls_idx)
    T = len(cls_idx)
    S = input_ids.shape[1]

    # Only bert_last_hidden[0] feeds the GRU / heads and the encoder output is not
    # returned, so run the encoder on batch 0 only (batch >= 1 is dead work).
    ids_col = input_ids[0].astype(jnp.int32).reshape(S, 1)
    mask_col = attention_mask[0].astype(jnp.float32).reshape(S, 1)
    mask_row = attention_mask[0].astype(jnp.float32).reshape(1, S)

    h0 = (rnn_last_hidden if rnn_last_hidden is not None
          else jnp.zeros((1, HIDDEN), jnp.float32)).astype(jnp.float32)

    # static cls one-hot built with numpy (constant, no HLO gather work)
    oh = np.zeros((T, S), dtype=np.float32)
    oh[np.arange(T), np.array(cls_idx)] = 1.0
    cls_oh = jnp.asarray(oh, dtype=jnp.bfloat16)

    out_rows = max(T + 1, 8)                              # full 8-sublane output tile
    vmem_spec = pl.BlockSpec(memory_space=pltpu.MemorySpace.VMEM)
    slab = pl.pallas_call(
        fused_forward_kernel,
        out_shape=jax.ShapeDtypeStruct((out_rows, OUT_LANES), jnp.float32),
        in_specs=[vmem_spec] * 7,
        out_specs=vmem_spec,
    )(ids_col, mask_col, mask_row, h0, cls_oh, params["wslab"], params["bslab"])

    latent_features = slab[:T, :FEATURE_DIM]              # (T, FEATURE_DIM)
    narrative = slab[:T, FEATURE_DIM:FEATURE_DIM + 1]     # (T, 1)
    rnn_h = slab[T:T + 1, :HIDDEN]                        # (1, H)
    narrative_desc = narrative[None, :, :]                # unsqueeze(0) -> (1, T, 1)
    return latent_features, narrative_desc, rnn_h


# ------------------------------------- main ----------------------------------------
if __name__ == "__main__":
    key = jax.random.PRNGKey(0)
    pkey, ikey = jax.random.split(key)
    params = init_params(pkey)

    B, S = 2, 16
    input_ids = jax.random.randint(ikey, (B, S), 0, VOCAB, dtype=jnp.int32)
    attention_mask = jnp.ones((B, S), jnp.int32)
    cls_idx = [0, 5, 10]

    latent, narrative, rnn_h = speaker_cluster_forward(params, input_ids, cls_idx, attention_mask)
    jax.block_until_ready((latent, narrative, rnn_h))

    assert latent.shape == (len(cls_idx), FEATURE_DIM)
    assert narrative.shape == (1, len(cls_idx), 1)
    assert rnn_h.shape == (1, HIDDEN)
    print("KERNEL_OK")
</pallas_src>

<mosaic_0001>
module attributes {stable_mosaic.version = 11 : i64} {
  func.func @fused_forward_kernel(%arg0: memref<16x1xi32, #tpu.memory_space<vmem>>, %arg1: memref<16x1xf32, #tpu.memory_space<vmem>>, %arg2: memref<1x16xf32, #tpu.memory_space<vmem>>, %arg3: memref<1x32xf32, #tpu.memory_space<vmem>>, %arg4: memref<3x16xbf16, #tpu.memory_space<vmem>>, %arg5: memref<640x128xbf16, #tpu.memory_space<vmem>>, %arg6: memref<24x128xf32, #tpu.memory_space<vmem>>, %arg7: memref<8x128xf32, #tpu.memory_space<vmem>>) attributes {dimension_semantics = [], scalar_prefetch = 0 : i64, scratch_operands = 0 : i64, tpu.core_type = #tpu.core_type<tc>} {
    %c0 = arith.constant 0 : index
    %c0_0 = arith.constant 0 : index
    %0 = vector.load %arg0[%c0, %c0_0] : memref<16x1xi32, #tpu.memory_space<vmem>>, vector<16x1xi32>
    %c0_1 = arith.constant 0 : index
    %c0_2 = arith.constant 0 : index
    %1 = vector.load %arg1[%c0_1, %c0_2] : memref<16x1xf32, #tpu.memory_space<vmem>>, vector<16x1xf32>
    %c0_3 = arith.constant 0 : index
    %c0_4 = arith.constant 0 : index
    %2 = vector.load %arg2[%c0_3, %c0_4] : memref<1x16xf32, #tpu.memory_space<vmem>>, vector<1x16xf32>
    %3 = tpu.iota {dimensions = array<i32: 1>} : vector<16x112xi32>
    %4 = vector.broadcast %0 : vector<16x1xi32> to vector<16x112xi32>
    %5 = arith.cmpi eq, %3, %4 : vector<16x112xi32>
    %cst = arith.constant 1.000000e+00 : f32
    %cst_5 = arith.constant 0.000000e+00 : f32
    %6 = vector.broadcast %cst : f32 to vector<16x112xf32>
    %7 = vector.broadcast %cst_5 : f32 to vector<16x112xf32>
    %8 = arith.select %5, %6, %7 : vector<16x112xi1>, vector<16x112xf32>
    %9 = arith.truncf %8 : vector<16x112xf32> to vector<16x112xbf16>
    %10 = tpu.iota {dimensions = array<i32: 1>} : vector<16x16xi32>
    %11 = tpu.iota {dimensions = array<i32: 0>} : vector<16x16xi32>
    %12 = arith.cmpi sle, %10, %11 : vector<16x16xi32>
    %cst_6 = arith.constant 1.000000e+00 : f32
    %cst_7 = arith.constant 0.000000e+00 : f32
    %13 = vector.broadcast %cst_6 : f32 to vector<16x16xf32>
    %14 = vector.broadcast %cst_7 : f32 to vector<16x16xf32>
    %15 = arith.select %12, %13, %14 : vector<16x16xi1>, vector<16x16xf32>
    %16 = vector.broadcast %2 : vector<1x16xf32> to vector<16x16xf32>
    %17 = arith.mulf %15, %16 : vector<16x16xf32>
    %cst_8 = arith.constant dense<0.000000e+00> : vector<16xf32>
    %18 = vector.multi_reduction <add>, %17, %cst_8 [1] : vector<16x16xf32> to vector<16xf32>
    %19 = vector.shape_cast %18 : vector<16xf32> to vector<16x1xf32>
    %20 = arith.mulf %19, %1 : vector<16x1xf32>
    %cst_9 = arith.constant 1.000000e+00 : f32
    %21 = vector.broadcast %cst_9 : f32 to vector<16x1xf32>
    %22 = arith.addf %20, %21 : vector<16x1xf32>
    %23 = arith.fptosi %22 : vector<16x1xf32> to vector<16x1xi32>
    %24 = tpu.iota {dimensions = array<i32: 1>} : vector<16x64xi32>
    %25 = vector.broadcast %23 : vector<16x1xi32> to vector<16x64xi32>
    %26 = arith.cmpi eq, %24, %25 : vector<16x64xi32>
    %cst_10 = arith.constant 1.000000e+00 : f32
    %cst_11 = arith.constant 0.000000e+00 : f32
    %27 = vector.broadcast %cst_10 : f32 to vector<16x64xf32>
    %28 = vector.broadcast %cst_11 : f32 to vector<16x64xf32>
    %29 = arith.select %26, %27, %28 : vector<16x64xi1>, vector<16x64xf32>
    %30 = arith.truncf %29 : vector<16x64xf32> to vector<16x64xbf16>
    %c0_12 = arith.constant 0 : index
    %c0_13 = arith.constant 0 : index
    %31 = vector.load %arg5[%c0_12, %c0_13] : memref<640x128xbf16, #tpu.memory_space<vmem>>, vector<112x32xbf16>
    %cst_14 = arith.constant dense<0.000000e+00> : vector<16x32xf32>
    %32 = tpu.matmul %9, %31, %cst_14 {dimension_numbers = #tpu.dot_dimension_numbers<[1], [0], [0], [1], [0, 0, 1, 1], [], []>} : vector<16x112xbf16>, vector<112x32xbf16>, vector<16x32xf32> -> vector<16x32xf32>
    %c112 = arith.constant 112 : index
    %c0_15 = arith.constant 0 : index
    %33 = vector.load %arg5[%c112, %c0_15] : memref<640x128xbf16, #tpu.memory_space<vmem>>, vector<64x32xbf16>
    %cst_16 = arith.constant dense<0.000000e+00> : vector<16x32xf32>
    %34 = tpu.matmul %30, %33, %cst_16 {dimension_numbers = #tpu.dot_dimension_numbers<[1], [0], [0], [1], [0, 0, 1, 1], [], []>} : vector<16x64xbf16>, vector<64x32xbf16>, vector<16x32xf32> -> vector<16x32xf32>
    %35 = arith.addf %32, %34 : vector<16x32xf32>
    %c0_17 = arith.constant 0 : index
    %c0_18 = arith.constant 0 : index
    %36 = vector.load %arg6[%c0_17, %c0_18] : memref<24x128xf32, #tpu.memory_space<vmem>>, vector<1x32xf32>
    %37 = vector.broadcast %36 : vector<1x32xf32> to vector<16x32xf32>
    %38 = arith.addf %35, %37 : vector<16x32xf32>
    %c1 = arith.constant 1 : index
    %c0_19 = arith.constant 0 : index
    %39 = vector.load %arg6[%c1, %c0_19] : memref<24x128xf32, #tpu.memory_space<vmem>>, vector<1x32xf32>
    %c2 = arith.constant 2 : index
    %c0_20 = arith.constant 0 : index
    %40 = vector.load %arg6[%c2, %c0_20] : memref<24x128xf32, #tpu.memory_space<vmem>>, vector<1x32xf32>
    %cst_21 = arith.constant dense<0.000000e+00> : vector<16xf32>
    %41 = vector.multi_reduction <add>, %38, %cst_21 [1] : vector<16x32xf32> to vector<16xf32>
    %42 = vector.shape_cast %41 : vector<16xf32> to vector<16x1xf32>
    %cst_22 = arith.constant 3.200000e+01 : f32
    %43 = vector.broadcast %cst_22 : f32 to vector<16x1xf32>
    %44 = arith.divf %42, %43 : vector<16x1xf32>
    %45 = vector.broadcast %44 : vector<16x1xf32> to vector<16x32xf32>
    %46 = arith.subf %38, %45 : vector<16x32xf32>
    %47 = arith.mulf %46, %46 : vector<16x32xf32>
    %cst_23 = arith.constant dense<0.000000e+00> : vector<16xf32>
    %48 = vector.multi_reduction <add>, %47, %cst_23 [1] : vector<16x32xf32> to vector<16xf32>
    %49 = vector.shape_cast %48 : vector<16xf32> to vector<16x1xf32>
    %cst_24 = arith.constant 3.200000e+01 : f32
    %50 = vector.broadcast %cst_24 : f32 to vector<16x1xf32>
    %51 = arith.divf %49, %50 : vector<16x1xf32>
    %52 = vector.broadcast %44 : vector<16x1xf32> to vector<16x32xf32>
    %53 = arith.subf %38, %52 : vector<16x32xf32>
    %cst_25 = arith.constant 9.99999974E-6 : f32
    %54 = vector.broadcast %cst_25 : f32 to vector<16x1xf32>
    %55 = arith.addf %51, %54 : vector<16x1xf32>
    %56 = math.rsqrt %55 : vector<16x1xf32>
    %57 = vector.broadcast %56 : vector<16x1xf32> to vector<16x32xf32>
    %58 = arith.mulf %53, %57 : vector<16x32xf32>
    %59 = vector.broadcast %39 : vector<1x32xf32> to vector<16x32xf32>
    %60 = arith.mulf %58, %59 : vector<16x32xf32>
    %61 = vector.broadcast %40 : vector<1x32xf32> to vector<16x32xf32>
    %62 = arith.addf %60, %61 : vector<16x32xf32>
    %cst_26 = arith.constant 1.000000e+00 : f32
    %63 = vector.broadcast %cst_26 : f32 to vector<1x16xf32>
    %64 = arith.subf %2, %63 : vector<1x16xf32>
    %cst_27 = arith.constant 1.000000e+09 : f32
    %65 = vector.broadcast %cst_27 : f32 to vector<1x16xf32>
    %66 = arith.mulf %64, %65 : vector<1x16xf32>
    %67 = vector.shape_cast %66 : vector<1x16xf32> to vector<1x16xf32>
    %68 = vector.broadcast %67 : vector<1x16xf32> to vector<16x16xf32>
    %69 = arith.truncf %62 : vector<16x32xf32> to vector<16x32xbf16>
    %c176 = arith.constant 176 : index
    %c0_28 = arith.constant 0 : index
    %70 = vector.load %arg5[%c176, %c0_28] : memref<640x128xbf16, #tpu.memory_space<vmem>>, vector<32x96xbf16>
    %cst_29 = arith.constant dense<0.000000e+00> : vector<16x96xf32>
    %71 = tpu.matmul %69, %70, %cst_29 {dimension_numbers = #tpu.dot_dimension_numbers<[1], [0], [0], [1], [0, 0, 1, 1], [], []>} : vector<16x32xbf16>, vector<32x96xbf16>, vector<16x96xf32> -> vector<16x96xf32>
    %c3 = arith.constant 3 : index
    %c0_30 = arith.constant 0 : index
    %72 = vector.load %arg6[%c3, %c0_30] : memref<24x128xf32, #tpu.memory_space<vmem>>, vector<1x96xf32>
    %73 = vector.broadcast %72 : vector<1x96xf32> to vector<16x96xf32>
    %74 = arith.addf %71, %73 : vector<16x96xf32>
    %75 = vector.extract_strided_slice %74 {offsets = [0, 0], sizes = [16, 32], strides = [1, 1]} : vector<16x96xf32> to vector<16x32xf32>
    %76 = vector.extract_strided_slice %74 {offsets = [0, 32], sizes = [16, 32], strides = [1, 1]} : vector<16x96xf32> to vector<16x32xf32>
    %77 = vector.extract_strided_slice %74 {offsets = [0, 64], sizes = [16, 32], strides = [1, 1]} : vector<16x96xf32> to vector<16x32xf32>
    %c4 = arith.constant 4 : index
    %c0_31 = arith.constant 0 : index
    %78 = vector.load %arg6[%c4, %c0_31] : memref<24x128xf32, #tpu.memory_space<vmem>>, vector<1x32xf32>
    %79 = vector.extract_strided_slice %75 {offsets = [0, 0], sizes = [16, 16], strides = [1, 1]} : vector<16x32xf32> to vector<16x16xf32>
    %80 = vector.extract_strided_slice %76 {offsets = [0, 0], sizes = [16, 16], strides = [1, 1]} : vector<16x32xf32> to vector<16x16xf32>
    %81 = vector.extract_strided_slice %77 {offsets = [0, 0], sizes = [16, 16], strides = [1, 1]} : vector<16x32xf32> to vector<16x16xf32>
    %cst_32 = arith.constant dense<0.000000e+00> : vector<16x16xf32>
    %82 = tpu.matmul %79, %80, %cst_32 {dimension_numbers = #tpu.dot_dimension_numbers<[1], [1], [0], [0], [0, 0, 1, 0], [], []>} : vector<16x16xf32>, vector<16x16xf32>, vector<16x16xf32> -> vector<16x16xf32>
    %cst_33 = arith.constant 2.500000e-01 : f32
    %83 = vector.broadcast %cst_33 : f32 to vector<16x16xf32>
    %84 = arith.mulf %82, %83 : vector<16x16xf32>
    %85 = arith.addf %84, %68 : vector<16x16xf32>
    %cst_34 = arith.constant dense<0xFF800000> : vector<16xf32>
    %86 = vector.multi_reduction <maximumf>, %85, %cst_34 [1] : vector<16x16xf32> to vector<16xf32>
    %87 = vector.shape_cast %86 : vector<16xf32> to vector<16x1xf32>
    %88 = vector.broadcast %87 : vector<16x1xf32> to vector<16x16xf32>
    %89 = arith.subf %85, %88 : vector<16x16xf32>
    %90 = math.exp %89 : vector<16x16xf32>
    %cst_35 = arith.constant dense<0.000000e+00> : vector<16xf32>
    %91 = vector.multi_reduction <add>, %90, %cst_35 [1] : vector<16x16xf32> to vector<16xf32>
    %92 = vector.shape_cast %91 : vector<16xf32> to vector<16x1xf32>
    %93 = tpu.reciprocal %92 {approx = true} : vector<16x1xf32> -> vector<16x1xf32>
    %94 = vector.broadcast %93 : vector<16x1xf32> to vector<16x16xf32>
    %95 = arith.mulf %90, %94 : vector<16x16xf32>
    %96 = arith.truncf %95 : vector<16x16xf32> to vector<16x16xbf16>
    %97 = arith.truncf %81 : vector<16x16xf32> to vector<16x16xbf16>
    %cst_36 = arith.constant dense<0.000000e+00> : vector<16x16xf32>
    %98 = tpu.matmul %96, %97, %cst_36 {dimension_numbers = #tpu.dot_dimension_numbers<[1], [0], [0], [1], [0, 0, 1, 1], [], []>} : vector<16x16xbf16>, vector<16x16xbf16>, vector<16x16xf32> -> vector<16x16xf32>
    %c208 = arith.constant 208 : index
    %c0_37 = arith.constant 0 : index
    %99 = vector.load %arg5[%c208, %c0_37] : memref<640x128xbf16, #tpu.memory_space<vmem>>, vector<16x32xbf16>
    %100 = arith.truncf %98 : vector<16x16xf32> to vector<16x16xbf16>
    %cst_38 = arith.constant dense<0.000000e+00> : vector<16x32xf32>
    %101 = tpu.matmul %100, %99, %cst_38 {dimension_numbers = #tpu.dot_dimension_numbers<[1], [0], [0], [1], [0, 0, 1, 1], [], []>} : vector<16x16xbf16>, vector<16x32xbf16>, vector<16x32xf32> -> vector<16x32xf32>
    %102 = vector.broadcast %78 : vector<1x32xf32> to vector<16x32xf32>
    %103 = arith.addf %102, %101 : vector<16x32xf32>
    %104 = vector.extract_strided_slice %75 {offsets = [0, 16], sizes = [16, 16], strides = [1, 1]} : vector<16x32xf32> to vector<16x16xf32>
    %105 = vector.extract_strided_slice %76 {offsets = [0, 16], sizes = [16, 16], strides = [1, 1]} : vector<16x32xf32> to vector<16x16xf32>
    %106 = vector.extract_strided_slice %77 {offsets = [0, 16], sizes = [16, 16], strides = [1, 1]} : vector<16x32xf32> to vector<16x16xf32>
    %cst_39 = arith.constant dense<0.000000e+00> : vector<16x16xf32>
    %107 = tpu.matmul %104, %105, %cst_39 {dimension_numbers = #tpu.dot_dimension_numbers<[1], [1], [0], [0], [0, 0, 1, 0], [], []>} : vector<16x16xf32>, vector<16x16xf32>, vector<16x16xf32> -> vector<16x16xf32>
    %cst_40 = arith.constant 2.500000e-01 : f32
    %108 = vector.broadcast %cst_40 : f32 to vector<16x16xf32>
    %109 = arith.mulf %107, %108 : vector<16x16xf32>
    %110 = arith.addf %109, %68 : vector<16x16xf32>
    %cst_41 = arith.constant dense<0xFF800000> : vector<16xf32>
    %111 = vector.multi_reduction <maximumf>, %110, %cst_41 [1] : vector<16x16xf32> to vector<16xf32>
    %112 = vector.shape_cast %111 : vector<16xf32> to vector<16x1xf32>
    %113 = vector.broadcast %112 : vector<16x1xf32> to vector<16x16xf32>
    %114 = arith.subf %110, %113 : vector<16x16xf32>
    %115 = math.exp %114 : vector<16x16xf32>
    %cst_42 = arith.constant dense<0.000000e+00> : vector<16xf32>
    %116 = vector.multi_reduction <add>, %115, %cst_42 [1] : vector<16x16xf32> to vector<16xf32>
    %117 = vector.shape_cast %116 : vector<16xf32> to vector<16x1xf32>
    %118 = tpu.reciprocal %117 {approx = true} : vector<16x1xf32> -> vector<16x1xf32>
    %119 = vector.broadcast %118 : vector<16x1xf32> to vector<16x16xf32>
    %120 = arith.mulf %115, %119 : vector<16x16xf32>
    %121 = arith.truncf %120 : vector<16x16xf32> to vector<16x16xbf16>
    %122 = arith.truncf %106 : vector<16x16xf32> to vector<16x16xbf16>
    %cst_43 = arith.constant dense<0.000000e+00> : vector<16x16xf32>
    %123 = tpu.matmul %121, %122, %cst_43 {dimension_numbers = #tpu.dot_dimension_numbers<[1], [0], [0], [1], [0, 0, 1, 1], [], []>} : vector<16x16xbf16>, vector<16x16xbf16>, vector<16x16xf32> -> vector<16x16xf32>
    %c224 = arith.constant 224 : index
    %c0_44 = arith.constant 0 : index
    %124 = vector.load %arg5[%c224, %c0_44] : memref<640x128xbf16, #tpu.memory_space<vmem>>, vector<16x32xbf16>
    %125 = arith.truncf %123 : vector<16x16xf32> to vector<16x16xbf16>
    %cst_45 = arith.constant dense<0.000000e+00> : vector<16x32xf32>
    %126 = tpu.matmul %125, %124, %cst_45 {dimension_numbers = #tpu.dot_dimension_numbers<[1], [0], [0], [1], [0, 0, 1, 1], [], []>} : vector<16x16xbf16>, vector<16x32xbf16>, vector<16x32xf32> -> vector<16x32xf32>
    %127 = arith.addf %103, %126 : vector<16x32xf32>
    %128 = arith.addf %62, %127 : vector<16x32xf32>
    %c5 = arith.constant 5 : index
    %c0_46 = arith.constant 0 : index
    %129 = vector.load %arg6[%c5, %c0_46] : memref<24x128xf32, #tpu.memory_space<vmem>>, vector<1x32xf32>
    %c6 = arith.constant 6 : index
    %c0_47 = arith.constant 0 : index
    %130 = vector.load %arg6[%c6, %c0_47] : memref<24x128xf32, #tpu.memory_space<vmem>>, vector<1x32xf32>
    %cst_48 = arith.constant dense<0.000000e+00> : vector<16xf32>
    %131 = vector.multi_reduction <add>, %128, %cst_48 [1] : vector<16x32xf32> to vector<16xf32>
    %132 = vector.shape_cast %131 : vector<16xf32> to vector<16x1xf32>
    %cst_49 = arith.constant 3.200000e+01 : f32
    %133 = vector.broadcast %cst_49 : f32 to vector<16x1xf32>
    %134 = arith.divf %132, %133 : vector<16x1xf32>
    %135 = vector.broadcast %134 : vector<16x1xf32> to vector<16x32xf32>
    %136 = arith.subf %128, %135 : vector<16x32xf32>
    %137 = arith.mulf %136, %136 : vector<16x32xf32>
    %cst_50 = arith.constant dense<0.000000e+00> : vector<16xf32>
    %138 = vector.multi_reduction <add>, %137, %cst_50 [1] : vector<16x32xf32> to vector<16xf32>
    %139 = vector.shape_cast %138 : vector<16xf32> to vector<16x1xf32>
    %cst_51 = arith.constant 3.200000e+01 : f32
    %140 = vector.broadcast %cst_51 : f32 to vector<16x1xf32>
    %141 = arith.divf %139, %140 : vector<16x1xf32>
    %142 = vector.broadcast %134 : vector<16x1xf32> to vector<16x32xf32>
    %143 = arith.subf %128, %142 : vector<16x32xf32>
    %cst_52 = arith.constant 9.99999974E-6 : f32
    %144 = vector.broadcast %cst_52 : f32 to vector<16x1xf32>
    %145 = arith.addf %141, %144 : vector<16x1xf32>
    %146 = math.rsqrt %145 : vector<16x1xf32>
    %147 = vector.broadcast %146 : vector<16x1xf32> to vector<16x32xf32>
    %148 = arith.mulf %143, %147 : vector<16x32xf32>
    %149 = vector.broadcast %129 : vector<1x32xf32> to vector<16x32xf32>
    %150 = arith.mulf %148, %149 : vector<16x32xf32>
    %151 = vector.broadcast %130 : vector<1x32xf32> to vector<16x32xf32>
    %152 = arith.addf %150, %151 : vector<16x32xf32>
    %153 = arith.truncf %152 : vector<16x32xf32> to vector<16x32xbf16>
    %c240 = arith.constant 240 : index
    %c0_53 = arith.constant 0 : index
    %154 = vector.load %arg5[%c240, %c0_53] : memref<640x128xbf16, #tpu.memory_space<vmem>>, vector<32x64xbf16>
    %cst_54 = arith.constant dense<0.000000e+00> : vector<16x64xf32>
    %155 = tpu.matmul %153, %154, %cst_54 {dimension_numbers = #tpu.dot_dimension_numbers<[1], [0], [0], [1], [0, 0, 1, 1], [], []>} : vector<16x32xbf16>, vector<32x64xbf16>, vector<16x64xf32> -> vector<16x64xf32>
    %c7 = arith.constant 7 : index
    %c0_55 = arith.constant 0 : index
    %156 = vector.load %arg6[%c7, %c0_55] : memref<24x128xf32, #tpu.memory_space<vmem>>, vector<1x64xf32>
    %157 = vector.broadcast %156 : vector<1x64xf32> to vector<16x64xf32>
    %158 = arith.addf %155, %157 : vector<16x64xf32>
    %159 = arith.mulf %158, %158 : vector<16x64xf32>
    %160 = arith.mulf %158, %159 : vector<16x64xf32>
    %cst_56 = arith.constant 4.471500e-02 : f32
    %161 = vector.broadcast %cst_56 : f32 to vector<16x64xf32>
    %162 = arith.mulf %161, %160 : vector<16x64xf32>
    %163 = arith.addf %158, %162 : vector<16x64xf32>
    %cst_57 = arith.constant 0.797884583 : f32
    %164 = vector.broadcast %cst_57 : f32 to vector<16x64xf32>
    %165 = arith.mulf %164, %163 : vector<16x64xf32>
    %166 = math.tanh %165 : vector<16x64xf32>
    %cst_58 = arith.constant 1.000000e+00 : f32
    %167 = vector.broadcast %cst_58 : f32 to vector<16x64xf32>
    %168 = arith.addf %167, %166 : vector<16x64xf32>
    %cst_59 = arith.constant 5.000000e-01 : f32
    %169 = vector.broadcast %cst_59 : f32 to vector<16x64xf32>
    %170 = arith.mulf %169, %168 : vector<16x64xf32>
    %171 = arith.mulf %158, %170 : vector<16x64xf32>
    %172 = arith.truncf %171 : vector<16x64xf32> to vector<16x64xbf16>
    %c272 = arith.constant 272 : index
    %c0_60 = arith.constant 0 : index
    %173 = vector.load %arg5[%c272, %c0_60] : memref<640x128xbf16, #tpu.memory_space<vmem>>, vector<64x32xbf16>
    %cst_61 = arith.constant dense<0.000000e+00> : vector<16x32xf32>
    %174 = tpu.matmul %172, %173, %cst_61 {dimension_numbers = #tpu.dot_dimension_numbers<[1], [0], [0], [1], [0, 0, 1, 1], [], []>} : vector<16x64xbf16>, vector<64x32xbf16>, vector<16x32xf32> -> vector<16x32xf32>
    %c8 = arith.constant 8 : index
    %c0_62 = arith.constant 0 : index
    %175 = vector.load %arg6[%c8, %c0_62] : memref<24x128xf32, #tpu.memory_space<vmem>>, vector<1x32xf32>
    %176 = vector.broadcast %175 : vector<1x32xf32> to vector<16x32xf32>
    %177 = arith.addf %174, %176 : vector<16x32xf32>
    %178 = arith.addf %152, %177 : vector<16x32xf32>
    %c9 = arith.constant 9 : index
    %c0_63 = arith.constant 0 : index
    %179 = vector.load %arg6[%c9, %c0_63] : memref<24x128xf32, #tpu.memory_space<vmem>>, vector<1x32xf32>
    %c10 = arith.constant 10 : index
    %c0_64 = arith.constant 0 : index
    %180 = vector.load %arg6[%c10, %c0_64] : memref<24x128xf32, #tpu.memory_space<vmem>>, vector<1x32xf32>
    %cst_65 = arith.constant dense<0.000000e+00> : vector<16xf32>
    %181 = vector.multi_reduction <add>, %178, %cst_65 [1] : vector<16x32xf32> to vector<16xf32>
    %182 = vector.shape_cast %181 : vector<16xf32> to vector<16x1xf32>
    %cst_66 = arith.constant 3.200000e+01 : f32
    %183 = vector.broadcast %cst_66 : f32 to vector<16x1xf32>
    %184 = arith.divf %182, %183 : vector<16x1xf32>
    %185 = vector.broadcast %184 : vector<16x1xf32> to vector<16x32xf32>
    %186 = arith.subf %178, %185 : vector<16x32xf32>
    %187 = arith.mulf %186, %186 : vector<16x32xf32>
    %cst_67 = arith.constant dense<0.000000e+00> : vector<16xf32>
    %188 = vector.multi_reduction <add>, %187, %cst_67 [1] : vector<16x32xf32> to vector<16xf32>
    %189 = vector.shape_cast %188 : vector<16xf32> to vector<16x1xf32>
    %cst_68 = arith.constant 3.200000e+01 : f32
    %190 = vector.broadcast %cst_68 : f32 to vector<16x1xf32>
    %191 = arith.divf %189, %190 : vector<16x1xf32>
    %192 = vector.broadcast %184 : vector<16x1xf32> to vector<16x32xf32>
    %193 = arith.subf %178, %192 : vector<16x32xf32>
    %cst_69 = arith.constant 9.99999974E-6 : f32
    %194 = vector.broadcast %cst_69 : f32 to vector<16x1xf32>
    %195 = arith.addf %191, %194 : vector<16x1xf32>
    %196 = math.rsqrt %195 : vector<16x1xf32>
    %197 = vector.broadcast %196 : vector<16x1xf32> to vector<16x32xf32>
    %198 = arith.mulf %193, %197 : vector<16x32xf32>
    %199 = vector.broadcast %179 : vector<1x32xf32> to vector<16x32xf32>
    %200 = arith.mulf %198, %199 : vector<16x32xf32>
    %201 = vector.broadcast %180 : vector<1x32xf32> to vector<16x32xf32>
    %202 = arith.addf %200, %201 : vector<16x32xf32>
    %203 = arith.truncf %202 : vector<16x32xf32> to vector<16x32xbf16>
    %c336 = arith.constant 336 : index
    %c0_70 = arith.constant 0 : index
    %204 = vector.load %arg5[%c336, %c0_70] : memref<640x128xbf16, #tpu.memory_space<vmem>>, vector<32x96xbf16>
    %cst_71 = arith.constant dense<0.000000e+00> : vector<16x96xf32>
    %205 = tpu.matmul %203, %204, %cst_71 {dimension_numbers = #tpu.dot_dimension_numbers<[1], [0], [0], [1], [0, 0, 1, 1], [], []>} : vector<16x32xbf16>, vector<32x96xbf16>, vector<16x96xf32> -> vector<16x96xf32>
    %c11 = arith.constant 11 : index
    %c0_72 = arith.constant 0 : index
    %206 = vector.load %arg6[%c11, %c0_72] : memref<24x128xf32, #tpu.memory_space<vmem>>, vector<1x96xf32>
    %207 = vector.broadcast %206 : vector<1x96xf32> to vector<16x96xf32>
    %208 = arith.addf %205, %207 : vector<16x96xf32>
    %209 = vector.extract_strided_slice %208 {offsets = [0, 0], sizes = [16, 32], strides = [1, 1]} : vector<16x96xf32> to vector<16x32xf32>
    %210 = vector.extract_strided_slice %208 {offsets = [0, 32], sizes = [16, 32], strides = [1, 1]} : vector<16x96xf32> to vector<16x32xf32>
    %211 = vector.extract_strided_slice %208 {offsets = [0, 64], sizes = [16, 32], strides = [1, 1]} : vector<16x96xf32> to vector<16x32xf32>
    %c12 = arith.constant 12 : index
    %c0_73 = arith.constant 0 : index
    %212 = vector.load %arg6[%c12, %c0_73] : memref<24x128xf32, #tpu.memory_space<vmem>>, vector<1x32xf32>
    %213 = vector.extract_strided_slice %209 {offsets = [0, 0], sizes = [16, 16], strides = [1, 1]} : vector<16x32xf32> to vector<16x16xf32>
    %214 = vector.extract_strided_slice %210 {offsets = [0, 0], sizes = [16, 16], strides = [1, 1]} : vector<16x32xf32> to vector<16x16xf32>
    %215 = vector.extract_strided_slice %211 {offsets = [0, 0], sizes = [16, 16], strides = [1, 1]} : vector<16x32xf32> to vector<16x16xf32>
    %cst_74 = arith.constant dense<0.000000e+00> : vector<16x16xf32>
    %216 = tpu.matmul %213, %214, %cst_74 {dimension_numbers = #tpu.dot_dimension_numbers<[1], [1], [0], [0], [0, 0, 1, 0], [], []>} : vector<16x16xf32>, vector<16x16xf32>, vector<16x16xf32> -> vector<16x16xf32>
    %cst_75 = arith.constant 2.500000e-01 : f32
    %217 = vector.broadcast %cst_75 : f32 to vector<16x16xf32>
    %218 = arith.mulf %216, %217 : vector<16x16xf32>
    %219 = arith.addf %218, %68 : vector<16x16xf32>
    %cst_76 = arith.constant dense<0xFF800000> : vector<16xf32>
    %220 = vector.multi_reduction <maximumf>, %219, %cst_76 [1] : vector<16x16xf32> to vector<16xf32>
    %221 = vector.shape_cast %220 : vector<16xf32> to vector<16x1xf32>
    %222 = vector.broadcast %221 : vector<16x1xf32> to vector<16x16xf32>
    %223 = arith.subf %219, %222 : vector<16x16xf32>
    %224 = math.exp %223 : vector<16x16xf32>
    %cst_77 = arith.constant dense<0.000000e+00> : vector<16xf32>
    %225 = vector.multi_reduction <add>, %224, %cst_77 [1] : vector<16x16xf32> to vector<16xf32>
    %226 = vector.shape_cast %225 : vector<16xf32> to vector<16x1xf32>
    %227 = tpu.reciprocal %226 {approx = true} : vector<16x1xf32> -> vector<16x1xf32>
    %228 = vector.broadcast %227 : vector<16x1xf32> to vector<16x16xf32>
    %229 = arith.mulf %224, %228 : vector<16x16xf32>
    %230 = arith.truncf %229 : vector<16x16xf32> to vector<16x16xbf16>
    %231 = arith.truncf %215 : vector<16x16xf32> to vector<16x16xbf16>
    %cst_78 = arith.constant dense<0.000000e+00> : vector<16x16xf32>
    %232 = tpu.matmul %230, %231, %cst_78 {dimension_numbers = #tpu.dot_dimension_numbers<[1], [0], [0], [1], [0, 0, 1, 1], [], []>} : vector<16x16xbf16>, vector<16x16xbf16>, vector<16x16xf32> -> vector<16x16xf32>
    %c368 = arith.constant 368 : index
    %c0_79 = arith.constant 0 : index
    %233 = vector.load %arg5[%c368, %c0_79] : memref<640x128xbf16, #tpu.memory_space<vmem>>, vector<16x32xbf16>
    %234 = arith.truncf %232 : vector<16x16xf32> to vector<16x16xbf16>
    %cst_80 = arith.constant dense<0.000000e+00> : vector<16x32xf32>
    %235 = tpu.matmul %234, %233, %cst_80 {dimension_numbers = #tpu.dot_dimension_numbers<[1], [0], [0], [1], [0, 0, 1, 1], [], []>} : vector<16x16xbf16>, vector<16x32xbf16>, vector<16x32xf32> -> vector<16x32xf32>
    %236 = vector.broadcast %212 : vector<1x32xf32> to vector<16x32xf32>
    %237 = arith.addf %236, %235 : vector<16x32xf32>
    %238 = vector.extract_strided_slice %209 {offsets = [0, 16], sizes = [16, 16], strides = [1, 1]} : vector<16x32xf32> to vector<16x16xf32>
    %239 = vector.extract_strided_slice %210 {offsets = [0, 16], sizes = [16, 16], strides = [1, 1]} : vector<16x32xf32> to vector<16x16xf32>
    %240 = vector.extract_strided_slice %211 {offsets = [0, 16], sizes = [16, 16], strides = [1, 1]} : vector<16x32xf32> to vector<16x16xf32>
    %cst_81 = arith.constant dense<0.000000e+00> : vector<16x16xf32>
    %241 = tpu.matmul %238, %239, %cst_81 {dimension_numbers = #tpu.dot_dimension_numbers<[1], [1], [0], [0], [0, 0, 1, 0], [], []>} : vector<16x16xf32>, vector<16x16xf32>, vector<16x16xf32> -> vector<16x16xf32>
    %cst_82 = arith.constant 2.500000e-01 : f32
    %242 = vector.broadcast %cst_82 : f32 to vector<16x16xf32>
    %243 = arith.mulf %241, %242 : vector<16x16xf32>
    %244 = arith.addf %243, %68 : vector<16x16xf32>
    %cst_83 = arith.constant dense<0xFF800000> : vector<16xf32>
    %245 = vector.multi_reduction <maximumf>, %244, %cst_83 [1] : vector<16x16xf32> to vector<16xf32>
    %246 = vector.shape_cast %245 : vector<16xf32> to vector<16x1xf32>
    %247 = vector.broadcast %246 : vector<16x1xf32> to vector<16x16xf32>
    %248 = arith.subf %244, %247 : vector<16x16xf32>
    %249 = math.exp %248 : vector<16x16xf32>
    %cst_84 = arith.constant dense<0.000000e+00> : vector<16xf32>
    %250 = vector.multi_reduction <add>, %249, %cst_84 [1] : vector<16x16xf32> to vector<16xf32>
    %251 = vector.shape_cast %250 : vector<16xf32> to vector<16x1xf32>
    %252 = tpu.reciprocal %251 {approx = true} : vector<16x1xf32> -> vector<16x1xf32>
    %253 = vector.broadcast %252 : vector<16x1xf32> to vector<16x16xf32>
    %254 = arith.mulf %249, %253 : vector<16x16xf32>
    %255 = arith.truncf %254 : vector<16x16xf32> to vector<16x16xbf16>
    %256 = arith.truncf %240 : vector<16x16xf32> to vector<16x16xbf16>
    %cst_85 = arith.constant dense<0.000000e+00> : vector<16x16xf32>
    %257 = tpu.matmul %255, %256, %cst_85 {dimension_numbers = #tpu.dot_dimension_numbers<[1], [0], [0], [1], [0, 0, 1, 1], [], []>} : vector<16x16xbf16>, vector<16x16xbf16>, vector<16x16xf32> -> vector<16x16xf32>
    %c384 = arith.constant 384 : index
    %c0_86 = arith.constant 0 : index
    %258 = vector.load %arg5[%c384, %c0_86] : memref<640x128xbf16, #tpu.memory_space<vmem>>, vector<16x32xbf16>
    %259 = arith.truncf %257 : vector<16x16xf32> to vector<16x16xbf16>
    %cst_87 = arith.constant dense<0.000000e+00> : vector<16x32xf32>
    %260 = tpu.matmul %259, %258, %cst_87 {dimension_numbers = #tpu.dot_dimension_numbers<[1], [0], [0], [1], [0, 0, 1, 1], [], []>} : vector<16x16xbf16>, vector<16x32xbf16>, vector<16x32xf32> -> vector<16x32xf32>
    %261 = arith.addf %237, %260 : vector<16x32xf32>
    %262 = arith.addf %202, %261 : vector<16x32xf32>
    %c13 = arith.constant 13 : index
    %c0_88 = arith.constant 0 : index
    %263 = vector.load %arg6[%c13, %c0_88] : memref<24x128xf32, #tpu.memory_space<vmem>>, vector<1x32xf32>
    %c14 = arith.constant 14 : index
    %c0_89 = arith.constant 0 : index
    %264 = vector.load %arg6[%c14, %c0_89] : memref<24x128xf32, #tpu.memory_space<vmem>>, vector<1x32xf32>
    %cst_90 = arith.constant dense<0.000000e+00> : vector<16xf32>
    %265 = vector.multi_reduction <add>, %262, %cst_90 [1] : vector<16x32xf32> to vector<16xf32>
    %266 = vector.shape_cast %265 : vector<16xf32> to vector<16x1xf32>
    %cst_91 = arith.constant 3.200000e+01 : f32
    %267 = vector.broadcast %cst_91 : f32 to vector<16x1xf32>
    %268 = arith.divf %266, %267 : vector<16x1xf32>
    %269 = vector.broadcast %268 : vector<16x1xf32> to vector<16x32xf32>
    %270 = arith.subf %262, %269 : vector<16x32xf32>
    %271 = arith.mulf %270, %270 : vector<16x32xf32>
    %cst_92 = arith.constant dense<0.000000e+00> : vector<16xf32>
    %272 = vector.multi_reduction <add>, %271, %cst_92 [1] : vector<16x32xf32> to vector<16xf32>
    %273 = vector.shape_cast %272 : vector<16xf32> to vector<16x1xf32>
    %cst_93 = arith.constant 3.200000e+01 : f32
    %274 = vector.broadcast %cst_93 : f32 to vector<16x1xf32>
    %275 = arith.divf %273, %274 : vector<16x1xf32>
    %276 = vector.broadcast %268 : vector<16x1xf32> to vector<16x32xf32>
    %277 = arith.subf %262, %276 : vector<16x32xf32>
    %cst_94 = arith.constant 9.99999974E-6 : f32
    %278 = vector.broadcast %cst_94 : f32 to vector<16x1xf32>
    %279 = arith.addf %275, %278 : vector<16x1xf32>
    %280 = math.rsqrt %279 : vector<16x1xf32>
    %281 = vector.broadcast %280 : vector<16x1xf32> to vector<16x32xf32>
    %282 = arith.mulf %277, %281 : vector<16x32xf32>
    %283 = vector.broadcast %263 : vector<1x32xf32> to vector<16x32xf32>
    %284 = arith.mulf %282, %283 : vector<16x32xf32>
    %285 = vector.broadcast %264 : vector<1x32xf32> to vector<16x32xf32>
    %286 = arith.addf %284, %285 : vector<16x32xf32>
    %287 = arith.truncf %286 : vector<16x32xf32> to vector<16x32xbf16>
    %c400 = arith.constant 400 : index
    %c0_95 = arith.constant 0 : index
    %288 = vector.load %arg5[%c400, %c0_95] : memref<640x128xbf16, #tpu.memory_space<vmem>>, vector<32x64xbf16>
    %cst_96 = arith.constant dense<0.000000e+00> : vector<16x64xf32>
    %289 = tpu.matmul %287, %288, %cst_96 {dimension_numbers = #tpu.dot_dimension_numbers<[1], [0], [0], [1], [0, 0, 1, 1], [], []>} : vector<16x32xbf16>, vector<32x64xbf16>, vector<16x64xf32> -> vector<16x64xf32>
    %c15 = arith.constant 15 : index
    %c0_97 = arith.constant 0 : index
    %290 = vector.load %arg6[%c15, %c0_97] : memref<24x128xf32, #tpu.memory_space<vmem>>, vector<1x64xf32>
    %291 = vector.broadcast %290 : vector<1x64xf32> to vector<16x64xf32>
    %292 = arith.addf %289, %291 : vector<16x64xf32>
    %293 = arith.mulf %292, %292 : vector<16x64xf32>
    %294 = arith.mulf %292, %293 : vector<16x64xf32>
    %cst_98 = arith.constant 4.471500e-02 : f32
    %295 = vector.broadcast %cst_98 : f32 to vector<16x64xf32>
    %296 = arith.mulf %295, %294 : vector<16x64xf32>
    %297 = arith.addf %292, %296 : vector<16x64xf32>
    %cst_99 = arith.constant 0.797884583 : f32
    %298 = vector.broadcast %cst_99 : f32 to vector<16x64xf32>
    %299 = arith.mulf %298, %297 : vector<16x64xf32>
    %300 = math.tanh %299 : vector<16x64xf32>
    %cst_100 = arith.constant 1.000000e+00 : f32
    %301 = vector.broadcast %cst_100 : f32 to vector<16x64xf32>
    %302 = arith.addf %301, %300 : vector<16x64xf32>
    %cst_101 = arith.constant 5.000000e-01 : f32
    %303 = vector.broadcast %cst_101 : f32 to vector<16x64xf32>
    %304 = arith.mulf %303, %302 : vector<16x64xf32>
    %305 = arith.mulf %292, %304 : vector<16x64xf32>
    %306 = arith.truncf %305 : vector<16x64xf32> to vector<16x64xbf16>
    %c432 = arith.constant 432 : index
    %c0_102 = arith.constant 0 : index
    %307 = vector.load %arg5[%c432, %c0_102] : memref<640x128xbf16, #tpu.memory_space<vmem>>, vector<64x32xbf16>
    %cst_103 = arith.constant dense<0.000000e+00> : vector<16x32xf32>
    %308 = tpu.matmul %306, %307, %cst_103 {dimension_numbers = #tpu.dot_dimension_numbers<[1], [0], [0], [1], [0, 0, 1, 1], [], []>} : vector<16x64xbf16>, vector<64x32xbf16>, vector<16x32xf32> -> vector<16x32xf32>
    %c16 = arith.constant 16 : index
    %c0_104 = arith.constant 0 : index
    %309 = vector.load %arg6[%c16, %c0_104] : memref<24x128xf32, #tpu.memory_space<vmem>>, vector<1x32xf32>
    %310 = vector.broadcast %309 : vector<1x32xf32> to vector<16x32xf32>
    %311 = arith.addf %308, %310 : vector<16x32xf32>
    %312 = arith.addf %286, %311 : vector<16x32xf32>
    %c17 = arith.constant 17 : index
    %c0_105 = arith.constant 0 : index
    %313 = vector.load %arg6[%c17, %c0_105] : memref<24x128xf32, #tpu.memory_space<vmem>>, vector<1x32xf32>
    %c18 = arith.constant 18 : index
    %c0_106 = arith.constant 0 : index
    %314 = vector.load %arg6[%c18, %c0_106] : memref<24x128xf32, #tpu.memory_space<vmem>>, vector<1x32xf32>
    %cst_107 = arith.constant dense<0.000000e+00> : vector<16xf32>
    %315 = vector.multi_reduction <add>, %312, %cst_107 [1] : vector<16x32xf32> to vector<16xf32>
    %316 = vector.shape_cast %315 : vector<16xf32> to vector<16x1xf32>
    %cst_108 = arith.constant 3.200000e+01 : f32
    %317 = vector.broadcast %cst_108 : f32 to vector<16x1xf32>
    %318 = arith.divf %316, %317 : vector<16x1xf32>
    %319 = vector.broadcast %318 : vector<16x1xf32> to vector<16x32xf32>
    %320 = arith.subf %312, %319 : vector<16x32xf32>
    %321 = arith.mulf %320, %320 : vector<16x32xf32>
    %cst_109 = arith.constant dense<0.000000e+00> : vector<16xf32>
    %322 = vector.multi_reduction <add>, %321, %cst_109 [1] : vector<16x32xf32> to vector<16xf32>
    %323 = vector.shape_cast %322 : vector<16xf32> to vector<16x1xf32>
    %cst_110 = arith.constant 3.200000e+01 : f32
    %324 = vector.broadcast %cst_110 : f32 to vector<16x1xf32>
    %325 = arith.divf %323, %324 : vector<16x1xf32>
    %326 = vector.broadcast %318 : vector<16x1xf32> to vector<16x32xf32>
    %327 = arith.subf %312, %326 : vector<16x32xf32>
    %cst_111 = arith.constant 9.99999974E-6 : f32
    %328 = vector.broadcast %cst_111 : f32 to vector<16x1xf32>
    %329 = arith.addf %325, %328 : vector<16x1xf32>
    %330 = math.rsqrt %329 : vector<16x1xf32>
    %331 = vector.broadcast %330 : vector<16x1xf32> to vector<16x32xf32>
    %332 = arith.mulf %327, %331 : vector<16x32xf32>
    %333 = vector.broadcast %313 : vector<1x32xf32> to vector<16x32xf32>
    %334 = arith.mulf %332, %333 : vector<16x32xf32>
    %335 = vector.broadcast %314 : vector<1x32xf32> to vector<16x32xf32>
    %336 = arith.addf %334, %335 : vector<16x32xf32>
    %c0_112 = arith.constant 0 : index
    %c0_113 = arith.constant 0 : index
    %337 = vector.load %arg4[%c0_112, %c0_113] : memref<3x16xbf16, #tpu.memory_space<vmem>>, vector<3x16xbf16>
    %338 = arith.truncf %336 : vector<16x32xf32> to vector<16x32xbf16>
    %cst_114 = arith.constant dense<0.000000e+00> : vector<3x32xf32>
    %339 = tpu.matmul %337, %338, %cst_114 {dimension_numbers = #tpu.dot_dimension_numbers<[1], [0], [0], [1], [0, 0, 1, 1], [], []>} : vector<3x16xbf16>, vector<16x32xbf16>, vector<3x32xf32> -> vector<3x32xf32>
    %c496 = arith.constant 496 : index
    %c0_115 = arith.constant 0 : index
    %340 = vector.load %arg5[%c496, %c0_115] : memref<640x128xbf16, #tpu.memory_space<vmem>>, vector<32x96xbf16>
    %c528 = arith.constant 528 : index
    %c0_116 = arith.constant 0 : index
    %341 = vector.load %arg5[%c528, %c0_116] : memref<640x128xbf16, #tpu.memory_space<vmem>>, vector<32x96xbf16>
    %c19 = arith.constant 19 : index
    %c0_117 = arith.constant 0 : index
    %342 = vector.load %arg6[%c19, %c0_117] : memref<24x128xf32, #tpu.memory_space<vmem>>, vector<1x96xf32>
    %c20 = arith.constant 20 : index
    %c0_118 = arith.constant 0 : index
    %343 = vector.load %arg6[%c20, %c0_118] : memref<24x128xf32, #tpu.memory_space<vmem>>, vector<1x96xf32>
    %344 = arith.truncf %339 : vector<3x32xf32> to vector<3x32xbf16>
    %cst_119 = arith.constant dense<0.000000e+00> : vector<3x96xf32>
    %345 = tpu.matmul %344, %340, %cst_119 {dimension_numbers = #tpu.dot_dimension_numbers<[1], [0], [0], [1], [0, 0, 1, 1], [], []>} : vector<3x32xbf16>, vector<32x96xbf16>, vector<3x96xf32> -> vector<3x96xf32>
    %346 = vector.broadcast %342 : vector<1x96xf32> to vector<3x96xf32>
    %347 = arith.addf %345, %346 : vector<3x96xf32>
    %348 = vector.extract_strided_slice %347 {offsets = [0, 0], sizes = [3, 32], strides = [1, 1]} : vector<3x96xf32> to vector<3x32xf32>
    %349 = vector.extract_strided_slice %343 {offsets = [0, 0], sizes = [1, 32], strides = [1, 1]} : vector<1x96xf32> to vector<1x32xf32>
    %350 = vector.broadcast %349 : vector<1x32xf32> to vector<3x32xf32>
    %351 = arith.addf %348, %350 : vector<3x32xf32>
    %352 = vector.extract_strided_slice %347 {offsets = [0, 32], sizes = [3, 32], strides = [1, 1]} : vector<3x96xf32> to vector<3x32xf32>
    %353 = vector.extract_strided_slice %343 {offsets = [0, 32], sizes = [1, 32], strides = [1, 1]} : vector<1x96xf32> to vector<1x32xf32>
    %354 = vector.broadcast %353 : vector<1x32xf32> to vector<3x32xf32>
    %355 = arith.addf %352, %354 : vector<3x32xf32>
    %356 = vector.extract_strided_slice %347 {offsets = [0, 64], sizes = [3, 32], strides = [1, 1]} : vector<3x96xf32> to vector<3x32xf32>
    %357 = vector.extract_strided_slice %343 {offsets = [0, 64], sizes = [1, 32], strides = [1, 1]} : vector<1x96xf32> to vector<1x32xf32>
    %c0_120 = arith.constant 0 : index
    %c0_121 = arith.constant 0 : index
    %358 = vector.load %arg3[%c0_120, %c0_121] : memref<1x32xf32, #tpu.memory_space<vmem>>, vector<1x32xf32>
    %359 = arith.truncf %358 : vector<1x32xf32> to vector<1x32xbf16>
    %cst_122 = arith.constant dense<0.000000e+00> : vector<1x96xf32>
    %360 = tpu.matmul %359, %341, %cst_122 {dimension_numbers = #tpu.dot_dimension_numbers<[1], [0], [0], [1], [0, 0, 1, 1], [], []>} : vector<1x32xbf16>, vector<32x96xbf16>, vector<1x96xf32> -> vector<1x96xf32>
    %361 = vector.extract_strided_slice %351 {offsets = [0, 0], sizes = [1, 32], strides = [1, 1]} : vector<3x32xf32> to vector<1x32xf32>
    %362 = vector.extract_strided_slice %360 {offsets = [0, 0], sizes = [1, 32], strides = [1, 1]} : vector<1x96xf32> to vector<1x32xf32>
    %363 = arith.addf %361, %362 : vector<1x32xf32>
    %364 = arith.negf %363 : vector<1x32xf32>
    %365 = math.exp %364 : vector<1x32xf32>
    %cst_123 = arith.constant 1.000000e+00 : f32
    %366 = vector.broadcast %cst_123 : f32 to vector<1x32xf32>
    %367 = arith.addf %366, %365 : vector<1x32xf32>
    %368 = arith.divf %366, %367 : vector<1x32xf32>
    %369 = vector.extract_strided_slice %355 {offsets = [0, 0], sizes = [1, 32], strides = [1, 1]} : vector<3x32xf32> to vector<1x32xf32>
    %370 = vector.extract_strided_slice %360 {offsets = [0, 32], sizes = [1, 32], strides = [1, 1]} : vector<1x96xf32> to vector<1x32xf32>
    %371 = arith.addf %369, %370 : vector<1x32xf32>
    %372 = arith.negf %371 : vector<1x32xf32>
    %373 = math.exp %372 : vector<1x32xf32>
    %cst_124 = arith.constant 1.000000e+00 : f32
    %374 = vector.broadcast %cst_124 : f32 to vector<1x32xf32>
    %375 = arith.addf %374, %373 : vector<1x32xf32>
    %376 = arith.divf %374, %375 : vector<1x32xf32>
    %377 = vector.extract_strided_slice %356 {offsets = [0, 0], sizes = [1, 32], strides = [1, 1]} : vector<3x32xf32> to vector<1x32xf32>
    %378 = vector.extract_strided_slice %360 {offsets = [0, 64], sizes = [1, 32], strides = [1, 1]} : vector<1x96xf32> to vector<1x32xf32>
    %379 = arith.addf %378, %357 : vector<1x32xf32>
    %380 = arith.mulf %368, %379 : vector<1x32xf32>
    %381 = arith.addf %377, %380 : vector<1x32xf32>
    %382 = math.tanh %381 : vector<1x32xf32>
    %cst_125 = arith.constant 1.000000e+00 : f32
    %383 = vector.broadcast %cst_125 : f32 to vector<1x32xf32>
    %384 = arith.subf %383, %376 : vector<1x32xf32>
    %385 = arith.mulf %384, %382 : vector<1x32xf32>
    %386 = arith.mulf %376, %358 : vector<1x32xf32>
    %387 = arith.addf %385, %386 : vector<1x32xf32>
    %388 = arith.truncf %387 : vector<1x32xf32> to vector<1x32xbf16>
    %cst_126 = arith.constant dense<0.000000e+00> : vector<1x96xf32>
    %389 = tpu.matmul %388, %341, %cst_126 {dimension_numbers = #tpu.dot_dimension_numbers<[1], [0], [0], [1], [0, 0, 1, 1], [], []>} : vector<1x32xbf16>, vector<32x96xbf16>, vector<1x96xf32> -> vector<1x96xf32>
    %390 = vector.extract_strided_slice %351 {offsets = [1, 0], sizes = [1, 32], strides = [1, 1]} : vector<3x32xf32> to vector<1x32xf32>
    %391 = vector.extract_strided_slice %389 {offsets = [0, 0], sizes = [1, 32], strides = [1, 1]} : vector<1x96xf32> to vector<1x32xf32>
    %392 = arith.addf %390, %391 : vector<1x32xf32>
    %393 = arith.negf %392 : vector<1x32xf32>
    %394 = math.exp %393 : vector<1x32xf32>
    %cst_127 = arith.constant 1.000000e+00 : f32
    %395 = vector.broadcast %cst_127 : f32 to vector<1x32xf32>
    %396 = arith.addf %395, %394 : vector<1x32xf32>
    %397 = arith.divf %395, %396 : vector<1x32xf32>
    %398 = vector.extract_strided_slice %355 {offsets = [1, 0], sizes = [1, 32], strides = [1, 1]} : vector<3x32xf32> to vector<1x32xf32>
    %399 = vector.extract_strided_slice %389 {offsets = [0, 32], sizes = [1, 32], strides = [1, 1]} : vector<1x96xf32> to vector<1x32xf32>
    %400 = arith.addf %398, %399 : vector<1x32xf32>
    %401 = arith.negf %400 : vector<1x32xf32>
    %402 = math.exp %401 : vector<1x32xf32>
    %cst_128 = arith.constant 1.000000e+00 : f32
    %403 = vector.broadcast %cst_128 : f32 to vector<1x32xf32>
    %404 = arith.addf %403, %402 : vector<1x32xf32>
    %405 = arith.divf %403, %404 : vector<1x32xf32>
    %406 = vector.extract_strided_slice %356 {offsets = [1, 0], sizes = [1, 32], strides = [1, 1]} : vector<3x32xf32> to vector<1x32xf32>
    %407 = vector.extract_strided_slice %389 {offsets = [0, 64], sizes = [1, 32], strides = [1, 1]} : vector<1x96xf32> to vector<1x32xf32>
    %408 = arith.addf %407, %357 : vector<1x32xf32>
    %409 = arith.mulf %397, %408 : vector<1x32xf32>
    %410 = arith.addf %406, %409 : vector<1x32xf32>
    %411 = math.tanh %410 : vector<1x32xf32>
    %cst_129 = arith.constant 1.000000e+00 : f32
    %412 = vector.broadcast %cst_129 : f32 to vector<1x32xf32>
    %413 = arith.subf %412, %405 : vector<1x32xf32>
    %414 = arith.mulf %413, %411 : vector<1x32xf32>
    %415 = arith.mulf %405, %387 : vector<1x32xf32>
    %416 = arith.addf %414, %415 : vector<1x32xf32>
    %417 = arith.truncf %416 : vector<1x32xf32> to vector<1x32xbf16>
    %cst_130 = arith.constant dense<0.000000e+00> : vector<1x96xf32>
    %418 = tpu.matmul %417, %341, %cst_130 {dimension_numbers = #tpu.dot_dimension_numbers<[1], [0], [0], [1], [0, 0, 1, 1], [], []>} : vector<1x32xbf16>, vector<32x96xbf16>, vector<1x96xf32> -> vector<1x96xf32>
    %419 = vector.extract_strided_slice %351 {offsets = [2, 0], sizes = [1, 32], strides = [1, 1]} : vector<3x32xf32> to vector<1x32xf32>
    %420 = vector.extract_strided_slice %418 {offsets = [0, 0], sizes = [1, 32], strides = [1, 1]} : vector<1x96xf32> to vector<1x32xf32>
    %421 = arith.addf %419, %420 : vector<1x32xf32>
    %422 = arith.negf %421 : vector<1x32xf32>
    %423 = math.exp %422 : vector<1x32xf32>
    %cst_131 = arith.constant 1.000000e+00 : f32
    %424 = vector.broadcast %cst_131 : f32 to vector<1x32xf32>
    %425 = arith.addf %424, %423 : vector<1x32xf32>
    %426 = arith.divf %424, %425 : vector<1x32xf32>
    %427 = vector.extract_strided_slice %355 {offsets = [2, 0], sizes = [1, 32], strides = [1, 1]} : vector<3x32xf32> to vector<1x32xf32>
    %428 = vector.extract_strided_slice %418 {offsets = [0, 32], sizes = [1, 32], strides = [1, 1]} : vector<1x96xf32> to vector<1x32xf32>
    %429 = arith.addf %427, %428 : vector<1x32xf32>
    %430 = arith.negf %429 : vector<1x32xf32>
    %431 = math.exp %430 : vector<1x32xf32>
    %cst_132 = arith.constant 1.000000e+00 : f32
    %432 = vector.broadcast %cst_132 : f32 to vector<1x32xf32>
    %433 = arith.addf %432, %431 : vector<1x32xf32>
    %434 = arith.divf %432, %433 : vector<1x32xf32>
    %435 = vector.extract_strided_slice %356 {offsets = [2, 0], sizes = [1, 32], strides = [1, 1]} : vector<3x32xf32> to vector<1x32xf32>
    %436 = vector.extract_strided_slice %418 {offsets = [0, 64], sizes = [1, 32], strides = [1, 1]} : vector<1x96xf32> to vector<1x32xf32>
    %437 = arith.addf %436, %357 : vector<1x32xf32>
    %438 = arith.mulf %426, %437 : vector<1x32xf32>
    %439 = arith.addf %435, %438 : vector<1x32xf32>
    %440 = math.tanh %439 : vector<1x32xf32>
    %cst_133 = arith.constant 1.000000e+00 : f32
    %441 = vector.broadcast %cst_133 : f32 to vector<1x32xf32>
    %442 = arith.subf %441, %434 : vector<1x32xf32>
    %443 = arith.mulf %442, %440 : vector<1x32xf32>
    %444 = arith.mulf %434, %416 : vector<1x32xf32>
    %445 = arith.addf %443, %444 : vector<1x32xf32>
    %446 = tpu.concatenate %387, %416, %445 in 0 : vector<1x32xf32>, vector<1x32xf32>, vector<1x32xf32> -> vector<3x32xf32>
    %447 = arith.truncf %446 : vector<3x32xf32> to vector<3x32xbf16>
    %c560 = arith.constant 560 : index
    %c0_134 = arith.constant 0 : index
    %448 = vector.load %arg5[%c560, %c0_134] : memref<640x128xbf16, #tpu.memory_space<vmem>>, vector<32x49xbf16>
    %cst_135 = arith.constant dense<0.000000e+00> : vector<3x49xf32>
    %449 = tpu.matmul %447, %448, %cst_135 {dimension_numbers = #tpu.dot_dimension_numbers<[1], [0], [0], [1], [0, 0, 1, 1], [], []>} : vector<3x32xbf16>, vector<32x49xbf16>, vector<3x49xf32> -> vector<3x49xf32>
    %c21 = arith.constant 21 : index
    %c0_136 = arith.constant 0 : index
    %450 = vector.load %arg6[%c21, %c0_136] : memref<24x128xf32, #tpu.memory_space<vmem>>, vector<1x49xf32>
    %451 = vector.broadcast %450 : vector<1x49xf32> to vector<3x49xf32>
    %452 = arith.addf %449, %451 : vector<3x49xf32>
    %453 = vector.extract_strided_slice %452 {offsets = [0, 0], sizes = [3, 48], strides = [1, 1]} : vector<3x49xf32> to vector<3x48xf32>
    %454 = vector.extract_strided_slice %452 {offsets = [0, 48], sizes = [3, 1], strides = [1, 1]} : vector<3x49xf32> to vector<3x1xf32>
    %cst_137 = arith.constant 0.000000e+00 : f32
    %455 = vector.broadcast %cst_137 : f32 to vector<3x48xf32>
    %456 = arith.cmpf ogt, %453, %455 : vector<3x48xf32>
    %cst_138 = arith.constant 0.000000e+00 : f32
    %457 = vector.broadcast %cst_138 : f32 to vector<3x48xf32>
    %458 = arith.minimumf %453, %457 : vector<3x48xf32>
    %459 = math.exp %458 : vector<3x48xf32>
    %cst_139 = arith.constant 1.000000e+00 : f32
    %460 = vector.broadcast %cst_139 : f32 to vector<3x48xf32>
    %461 = arith.subf %459, %460 : vector<3x48xf32>
    %462 = arith.select %456, %453, %461 : vector<3x48xi1>, vector<3x48xf32>
    %463 = arith.truncf %462 : vector<3x48xf32> to vector<3x48xbf16>
    %c592 = arith.constant 592 : index
    %c0_140 = arith.constant 0 : index
    %464 = vector.load %arg5[%c592, %c0_140] : memref<640x128xbf16, #tpu.memory_space<vmem>>, vector<48x16xbf16>
    %cst_141 = arith.constant dense<0.000000e+00> : vector<3x16xf32>
    %465 = tpu.matmul %463, %464, %cst_141 {dimension_numbers = #tpu.dot_dimension_numbers<[1], [0], [0], [1], [0, 0, 1, 1], [], []>} : vector<3x48xbf16>, vector<48x16xbf16>, vector<3x16xf32> -> vector<3x16xf32>
    %c22 = arith.constant 22 : index
    %c0_142 = arith.constant 0 : index
    %466 = vector.load %arg6[%c22, %c0_142] : memref<24x128xf32, #tpu.memory_space<vmem>>, vector<1x16xf32>
    %467 = vector.broadcast %466 : vector<1x16xf32> to vector<3x16xf32>
    %468 = arith.addf %465, %467 : vector<3x16xf32>
    %cst_143 = arith.constant 0.000000e+00 : f32
    %469 = vector.broadcast %cst_143 : f32 to vector<8x128xf32>
    %c0_144 = arith.constant 0 : index
    %c0_145 = arith.constant 0 : index
    %470 = vector.load %arg7[%c0_144, %c0_145] : memref<8x128xf32, #tpu.memory_space<vmem>>, vector<8x128xf32>
    tpu.vector_store %arg7[%c0_144, %c0_145], %469 {strides = array<i32>} : memref<8x128xf32, #tpu.memory_space<vmem>>, vector<8x128xf32>,
    %c0_146 = arith.constant 0 : index
    %c0_147 = arith.constant 0 : index
    %471 = vector.load %arg7[%c0_146, %c0_147] : memref<8x128xf32, #tpu.memory_space<vmem>>, vector<3x16xf32>
    tpu.vector_store %arg7[%c0_146, %c0_147], %468 {strides = array<i32>} : memref<8x128xf32, #tpu.memory_space<vmem>>, vector<3x16xf32>,
    %c0_148 = arith.constant 0 : index
    %c16_149 = arith.constant 16 : index
    %472 = vector.load %arg7[%c0_148, %c16_149] : memref<8x128xf32, #tpu.memory_space<vmem>>, vector<3x1xf32>
    tpu.vector_store %arg7[%c0_148, %c16_149], %454 {strides = array<i32>} : memref<8x128xf32, #tpu.memory_space<vmem>>, vector<3x1xf32>,
    %c3_150 = arith.constant 3 : index
    %c0_151 = arith.constant 0 : index
    %473 = vector.load %arg7[%c3_150, %c0_151] : memref<8x128xf32, #tpu.memory_space<vmem>>, vector<1x32xf32>
    tpu.vector_store %arg7[%c3_150, %c0_151], %445 {strides = array<i32>} : memref<8x128xf32, #tpu.memory_space<vmem>>, vector<1x32xf32>,
    return
  }
}

</mosaic_0001>

<llo_original>
// kernel: tpu_custom_call.1
$region0: #{tpu_custom_call.1}
  #allocation0 [shape = 'u32[]', space=smem, size = 0x4, offset = 0x4, fixed_abs, tag = 'smem constant byte address 0x4 - core index']
  #allocation1 [shape = 'u32[144,128]{1,0:T(1,128)}', space=vmem, size = 0x12000, scoped, tag = 'internal scratch']
  %s0 = inlined_call_operand.vmem [shape: s32[16,1], index: 0, kind: input, shape index: {}]
  %s1 = inlined_call_operand.vmem [shape: f32[16,1], index: 1, kind: input, shape index: {}]
  %s2 = inlined_call_operand.vmem [shape: f32[1,16], index: 2, kind: input, shape index: {}]
  %s3 = inlined_call_operand.vmem [shape: f32[1,32], index: 3, kind: input, shape index: {}]
  %s4 = inlined_call_operand.vmem [shape: bf16[3,16], index: 4, kind: input, shape index: {}]
  %s5 = inlined_call_operand.hbm [shape: bf16[640,128], index: 5, kind: input, shape index: {}]
  %s6 = inlined_call_operand.vmem [shape: f32[24,128], index: 6, kind: input, shape index: {}]
  %s7 = inlined_call_operand.hbm [shape: f32[8,128], index: 7, kind: output, shape index: {}]
  %s8 = sld [smem:[#allocation0]]
  $region42: #{tpu_custom_call.1} parent=0
    _
  %s10 = ssub.s32 1, %s8
  %s11 = scalar_select 0, %s10, %s8
  $region1: #{tpu_custom_call.1} parent=0
    #allocation2 [shape = 'u8[163840]{0}', space=vmem, size = 0x28000, scoped, tag = 'input window, operand 5, single buffered']
    #allocation3 [shape = 's32[1]{0}', space=sflag, size = 0x4, scoped, tag = 'scoped memory for tpu_custom_call.1']
    #allocation4 [shape = 's32[1]{0}', space=sflag, size = 0x4, scoped, tag = 'scoped memory for tpu_custom_call.1']
    #allocation5 [shape = 'u8[4096]{0}', space=vmem, size = 0x1000, scoped, tag = 'output window, operand 0, single buffered']
    %12 = vsyncpa [#allocation3], 0
    %13 = vsyncpa [#allocation4], 0
    // Predicated region
    $region2: #{tpu_custom_call.1} parent=1 // pred_check
      _
    $region3: #{tpu_custom_call.1} parent=1 // pred_check_branch
      %15 = sbr.rel (0) target = $region5
    $region4: #{tpu_custom_call.1} parent=1 // pred_region
      _
    $region5: #{tpu_custom_call.1} parent=1 // pred_fallthru
      _
    // Predicated region
    $region6: #{tpu_custom_call.1} parent=1 // pred_check
      _
    $region7: #{tpu_custom_call.1} parent=1 // pred_check_branch
      %17 = sbr.rel (0) target = $region9
    $region8: #{tpu_custom_call.1} parent=1 // pred_region
      _
    $region9: #{tpu_custom_call.1} parent=1 // pred_fallthru
      _
    // Predicated region
    $region10: #{tpu_custom_call.1} parent=1 // pred_check
      _
    $region11: #{tpu_custom_call.1} parent=1 // pred_check_branch
      %19 = sbr.rel (0) target = $region13
    $region12: #{tpu_custom_call.1} parent=1 // pred_region
      _
    $region13: #{tpu_custom_call.1} parent=1 // pred_fallthru
      _
    // Predicated region
    $region14: #{tpu_custom_call.1} parent=1 // pred_check
      _
    $region15: #{tpu_custom_call.1} parent=1 // pred_check_branch
      %21 = sbr.rel (0) target = $region17
    $region16: #{tpu_custom_call.1} parent=1 // pred_region
      _
    $region17: #{tpu_custom_call.1} parent=1 // pred_fallthru
      _
    // Predicated region
    $region18: #{tpu_custom_call.1} parent=1 // pred_check
      _
    $region19: #{tpu_custom_call.1} parent=1 // pred_check_branch
      %23 = sbr.rel (0) target = $region21
    $region20: #{tpu_custom_call.1} parent=1 // pred_region
      _
    $region21: #{tpu_custom_call.1} parent=1 // pred_fallthru
      _
    // Predicated region
    $region22: #{tpu_custom_call.1} parent=1 // pred_check
      _
    $region23: #{tpu_custom_call.1} parent=1 // pred_check_branch
      %25 = sbr.rel (0) target = $region25
    $region24: #{tpu_custom_call.1} parent=1 // pred_region
      %s27 = ssub.s32 5120, 5120
      %28 = vsyncadd [#allocation3], %s27
      %s29 = sshll.u32 [#allocation2], 4
      %s30 = int_to_ptr.vmem [resolvable:$true] %s29
      %35 = dma.hbm_to_vmem [thread:$0]  %s5, 5120, %s30, [#allocation3], 64, 64, 4
    $region25: #{tpu_custom_call.1} parent=1 // pred_fallthru
      _
    // Predicated region
    $region26: #{tpu_custom_call.1} parent=1 // pred_check
      _
    $region27: #{tpu_custom_call.1} parent=1 // pred_check_branch
      %37 = sbr.rel (0) target = $region29
    $region28: #{tpu_custom_call.1} parent=1 // pred_region
      _
    $region29: #{tpu_custom_call.1} parent=1 // pred_fallthru
      _
    // Predicated region
    $region30: #{tpu_custom_call.1} parent=1 // pred_check
      _
    $region31: #{tpu_custom_call.1} parent=1 // pred_check_branch
      %39 = sbr.rel (0) target = $region33
    $region32: #{tpu_custom_call.1} parent=1 // pred_region
      %40 = dma.done [#allocation3], 5120
    $region33: #{tpu_custom_call.1} parent=1 // pred_fallthru
      _
    %v42 = vld [vmem:[%s0] sm:$0xff]
    %v43 = vld [vmem:[%s0 + $0x8] sm:$0xff]
    %v44 = vld [vmem:[%s1] sm:$0xff]
    %v45 = vld [vmem:[%s1 + $0x8] sm:$0xff]
    %v46 = vld [vmem:[%s2] sm:$0x1]
    %v47 = vlaneseq
    %v48 = vand.u32 %v47, 127
    %49 = vset.pattern.permute.xlu0 0
    %50 = vperm.xlu0 %49, %v42
    %v51 = vpop.permute.xlu0 %50
    %52 = vset.pattern.permute.xlu0 0
    %53 = vperm.xlu0 %52, %v43
    %v54 = vpop.permute.xlu0 %53
    %vm55 = vcmp.eq.s32.totalorder %v48, %v51
    %vm56 = vcmp.eq.s32.totalorder %v48, %v54
    %v57 = vsel %vm55, 1.0, 0.0
    %v58 = vsel %vm56, 1.0, 0.0
    %v59 = vpack.c.bf16 %v58, %v57
    %v60 = vlaneseq
    %v61 = vshrl.u32 %v60, 7
    %v62 = vadd.s32 %v61, 8
    %vm63 = vcmp.le.s32.totalorder %v48, %v61
    %vm64 = vcmp.le.s32.totalorder %v48, %v62
    %v65 = vsel %vm63, 1.0, 0.0
    %v66 = vsel %vm64, 1.0, 0.0
    %v68 = vlaneseq
    %v69 = vshrl.u32 %v68, 7
    %v70 = vsub.s32 0, %v69
    %v71 = vrot.slane %v46, %v70
    %v73 = vmul.f32 %v65, %v71
    %v74 = vmul.f32 %v66, %v71
    %vm75 = vcmask 130048
    %v76 = vsel %vm75, %v73, 0.0
    %77 = vadd.xlane.f32.xlu0 %v76
    %v78 = vpop.xlane.xlu0 %77
    %v79 = vsel %vm75, %v74, 0.0
    %80 = vadd.xlane.f32.xlu0 %v79
    %v81 = vpop.xlane.xlu0 %80
    %v82 = vmul.f32 %v78, %v44
    %v83 = vmul.f32 %v81, %v45
    %v84 = vadd.f32 %v82, 1.0
    %v85 = vadd.f32 %v83, 1.0
    %v86 = vcvt.f32.s32.to.zero.pseudo %v84
    %v87 = vcvt.f32.s32.to.zero.pseudo %v85
    %88 = vset.pattern.permute.xlu0 0
    %89 = vperm.xlu0 %88, %v86
    %v90 = vpop.permute.xlu0 %89
    %91 = vset.pattern.permute.xlu0 0
    %92 = vperm.xlu0 %91, %v87
    %v93 = vpop.permute.xlu0 %92
    %vm94 = vcmp.eq.s32.totalorder %v48, %v90
    %vm95 = vcmp.eq.s32.totalorder %v48, %v93
    %v96 = vsel %vm94, 1.0, 0.0
    %v97 = vsel %vm95, 1.0, 0.0
    %v98 = vpack.c.bf16 %v97, %v96
    %v99 = vld [vmem:[#allocation2] sm:$0xf]
    %v100 = vld [vmem:[#allocation2 + $0x4] sm:$0xf]
    %v101 = vld [vmem:[#allocation2 + $0x8] sm:$0xf]
    %v102 = vld [vmem:[#allocation2 + $0xc] sm:$0xf]
    %v103 = vld [vmem:[#allocation2 + $0x10] sm:$0xf]
    %v104 = vld [vmem:[#allocation2 + $0x14] sm:$0xf]
    %v105 = vld [vmem:[#allocation2 + $0x18] sm:$0xf]
    %v106 = vld [vmem:[#allocation2 + $0x1c] sm:$0xf]
    %v107 = vld [vmem:[#allocation2 + $0x20] sm:$0xf]
    %v108 = vld [vmem:[#allocation2 + $0x24] sm:$0xf]
    %v109 = vld [vmem:[#allocation2 + $0x28] sm:$0xf]
    %v110 = vld [vmem:[#allocation2 + $0x2c] sm:$0xf]
    %v111 = vld [vmem:[#allocation2 + $0x30] sm:$0xf]
    %v112 = vld [vmem:[#allocation2 + $0x34] sm:$0xf]
    %v113 = vld [vmem:[#allocation2 + $0x38] sm:$0xf]
    %v114 = vld [vmem:[#allocation2 + $0x3c] sm:$0xf]
    %v115 = vld [vmem:[#allocation2 + $0x40] sm:$0xf]
    %v116 = vld [vmem:[#allocation2 + $0x44] sm:$0xf]
    %v117 = vld [vmem:[#allocation2 + $0x48] sm:$0xf]
    %v118 = vld [vmem:[#allocation2 + $0x4c] sm:$0xf]
    %v119 = vld [vmem:[#allocation2 + $0x50] sm:$0xf]
    %v120 = vld [vmem:[#allocation2 + $0x54] sm:$0xf]
    %v129 = vunpack.c.l.b16 %v113
    %v130 = vunpack.c.l.b16 %v114
    %v131 = vunpack.c.l.b16 %v115
    %v132 = vunpack.c.l.b16 %v116
    %v133 = vunpack.c.l.b16 %v117
    %v134 = vunpack.c.l.b16 %v118
    %v135 = vunpack.c.l.b16 %v119
    %v136 = vunpack.c.l.b16 %v120
    %v137 = vpack.c.b16 %v130, %v129
    %v138 = vpack.c.b16 %v132, %v131
    %v139 = vpack.c.b16 %v134, %v133
    %v140 = vpack.c.b16 %v136, %v135
    %vm145 = vcmask 523264
    %v147 = vsel %vm145, %v98, 0
    %149 = vmatprep.subr.bf16.mxu0 0
    %150 = vmatpush1.bf16.msra.mxu0 %v137
    %151 = vmatprep.subr.bf16.mxu0 0
    %152 = vmatpush1.bf16.msra.mxu0 %v138
    %153 = vmatprep.subr.bf16.mxu0 0
    %154 = vmatpush1.bf16.msra.mxu0 %v139
    %155 = vmatprep.subr.bf16.mxu0 0
    %156 = vmatpush1.bf16.msra.mxu0 %v140
    %157 = vmatprep.subr.bf16.mxu0 0
    %158 = vmatpush1.bf16.msra.mxu0 0
    %159 = vmatprep.subr.bf16.mxu0 0
    %160 = vmatpush1.bf16.msra.mxu0 0
    %161 = vmatprep.subr.bf16.mxu0 0
    %162 = vmatpush1.bf16.msra.mxu0 0
    %163 = vmatprep.subr.bf16.mxu0 0
    %164 = vmatpush1.bf16.msra.mxu0 0
    %165 = vmatprep.subr.bf16.mxu0 0
    %166 = vmatpush1.bf16.msra.mxu0 0
    %167 = vmatprep.subr.bf16.mxu0 0
    %168 = vmatpush1.bf16.msra.mxu0 0
    %169 = vmatprep.subr.bf16.mxu0 0
    %170 = vmatpush1.bf16.msra.mxu0 0
    %171 = vmatprep.subr.bf16.mxu0 0
    %172 = vmatpush1.bf16.msra.mxu0 0
    %173 = vmatprep.subr.bf16.mxu0 0
    %174 = vmatpush1.bf16.msra.mxu0 0
    %175 = vmatprep.subr.bf16.mxu0 0
    %176 = vmatpush1.bf16.msra.mxu0 0
    %177 = vmatprep.subr.bf16.mxu0 0
    %178 = vmatpush1.bf16.msra.mxu0 0
    %179 = vmatprep.subr.bf16.mxu0 0
    %180 = vmatpush1.bf16.msra.mxu0 0
    %181 = vmatprep.mubr.bf16.mxu0 0
    %182 = vmatmul.mubr.bf16.gmra.mrb[0].mxu0 %v147
    %v183 = vpop.f32.mrb[0].mxu0
    %v184 = vadd.f32 0.0, %v183
    %v185 = vpop.f32.mrb[0].mxu0
    %v186 = vpop.f32.mrb[0].mxu0
    %v187 = vadd.f32 0.0, %v186
    %v188 = vpop.f32.mrb[0].mxu0
    %189 = vdwg.mxu0
    %v204 = vunpack.c.l.b16 %v99
    %v205 = vunpack.c.l.b16 %v100
    %v206 = vunpack.c.l.b16 %v101
    %v207 = vunpack.c.l.b16 %v102
    %v208 = vunpack.c.l.b16 %v103
    %v209 = vunpack.c.l.b16 %v104
    %v210 = vunpack.c.l.b16 %v105
    %v211 = vunpack.c.l.b16 %v106
    %v212 = vunpack.c.l.b16 %v107
    %v213 = vunpack.c.l.b16 %v108
    %v214 = vunpack.c.l.b16 %v109
    %v215 = vunpack.c.l.b16 %v110
    %v216 = vunpack.c.l.b16 %v111
    %v217 = vunpack.c.l.b16 %v112
    %v218 = vpack.c.b16 %v205, %v204
    %v219 = vpack.c.b16 %v207, %v206
    %v220 = vpack.c.b16 %v209, %v208
    %v221 = vpack.c.b16 %v211, %v210
    %v222 = vpack.c.b16 %v213, %v212
    %v223 = vpack.c.b16 %v215, %v214
    %v224 = vpack.c.b16 %v217, %v216
    %vm232 = vcmask 916480
    %v234 = vsel %vm232, %v59, 0
    %236 = vmatprep.subr.bf16.mxu0 0
    %237 = vmatpush1.bf16.msra.mxu0 %v218
    %238 = vmatprep.subr.bf16.mxu0 0
    %239 = vmatpush1.bf16.msra.mxu0 %v219
    %240 = vmatprep.subr.bf16.mxu0 0
    %241 = vmatpush1.bf16.msra.mxu0 %v220
    %242 = vmatprep.subr.bf16.mxu0 0
    %243 = vmatpush1.bf16.msra.mxu0 %v221
    %244 = vmatprep.subr.bf16.mxu0 0
    %245 = vmatpush1.bf16.msra.mxu0 %v222
    %246 = vmatprep.subr.bf16.mxu0 0
    %247 = vmatpush1.bf16.msra.mxu0 %v223
    %248 = vmatprep.subr.bf16.mxu0 0
    %249 = vmatpush1.bf16.msra.mxu0 %v224
    %250 = vmatprep.subr.bf16.mxu0 0
    %251 = vmatpush1.bf16.msra.mxu0 0
    %252 = vmatprep.subr.bf16.mxu0 0
    %253 = vmatpush1.bf16.msra.mxu0 0
    %254 = vmatprep.subr.bf16.mxu0 0
    %255 = vmatpush1.bf16.msra.mxu0 0
    %256 = vmatprep.subr.bf16.mxu0 0
    %257 = vmatpush1.bf16.msra.mxu0 0
    %258 = vmatprep.subr.bf16.mxu0 0
    %259 = vmatpush1.bf16.msra.mxu0 0
    %260 = vmatprep.subr.bf16.mxu0 0
    %261 = vmatpush1.bf16.msra.mxu0 0
    %262 = vmatprep.subr.bf16.mxu0 0
    %263 = vmatpush1.bf16.msra.mxu0 0
    %264 = vmatprep.subr.bf16.mxu0 0
    %265 = vmatpush1.bf16.msra.mxu0 0
    %266 = vmatprep.subr.bf16.mxu0 0
    %267 = vmatpush1.bf16.msra.mxu0 0
    %268 = vmatprep.mubr.bf16.mxu0 0
    %269 = vmatmul.mubr.bf16.gmra.mrb[0].mxu0 %v234
    %v270 = vpop.f32.mrb[0].mxu0
    %v271 = vadd.f32 %v184, %v270
    %v272 = vpop.f32.mrb[0].mxu0
    %v273 = vpop.f32.mrb[0].mxu0
    %v274 = vadd.f32 %v187, %v273
    %v275 = vpop.f32.mrb[0].mxu0
    %276 = vdwg.mxu0
    %v277 = vld [vmem:[%s6] sm:$0x1]
    %v278 = vlaneseq
    %v279 = vshrl.u32 %v278, 7
    %v280 = vsub.s32 0, %v279
    %v281 = vrot.slane %v277, %v280
    %v282 = vadd.f32 %v271, %v281
    %v283 = vadd.f32 %v274, %v281
    %v284 = vld [vmem:[%s6 + $0x1] sm:$0x1]
    %v285 = vld [vmem:[%s6 + $0x2] sm:$0x1]
    %vm286 = vcmask 261120
    %v287 = vsel %vm286, %v282, 0.0
    %288 = vadd.xlane.f32.xlu0 %v287
    %v289 = vpop.xlane.xlu0 %288
    %v290 = vsel %vm286, %v283, 0.0
    %291 = vadd.xlane.f32.xlu0 %v290
    %v292 = vpop.xlane.xlu0 %291
    %v293 = vrcp.pop 32.0
    %v294 = vmul.f32 %v289, %v293
    %v295 = vmul.f32 %v292, %v293
    %v296 = vsub.f32 %v282, %v294
    %v297 = vsub.f32 %v283, %v295
    %v298 = vmul.f32 %v296, %v296
    %v299 = vmul.f32 %v297, %v297
    %v300 = vsel %vm286, %v298, 0.0
    %301 = vadd.xlane.f32.xlu0 %v300
    %v302 = vpop.xlane.xlu0 %301
    %v303 = vsel %vm286, %v299, 0.0
    %304 = vadd.xlane.f32.xlu0 %v303
    %v305 = vpop.xlane.xlu0 %304
    %v306 = vmul.f32 %v302, %v293
    %v307 = vmul.f32 %v305, %v293
    %v308 = vadd.f32 %v306, 1e-05
    %v309 = vadd.f32 %v307, 1e-05
    %v310 = vrsqrt.pop %v308
    %v311 = vrsqrt.pop %v309
    %v312 = vmul.f32 %v296, %v310
    %v313 = vmul.f32 %v297, %v311
    %v314 = vlaneseq
    %v315 = vshrl.u32 %v314, 7
    %v316 = vsub.s32 0, %v315
    %v317 = vrot.slane %v284, %v316
    %v318 = vmul.f32 %v312, %v317
    %v319 = vmul.f32 %v313, %v317
    %v320 = vlaneseq
    %v321 = vshrl.u32 %v320, 7
    %v322 = vsub.s32 0, %v321
    %v323 = vrot.slane %v285, %v322
    %v324 = vadd.f32 %v318, %v323
    %v325 = vadd.f32 %v319, %v323
    %v326 = vsub.f32 %v46, 1.0
    %v327 = vmul.f32 %v326, 1e+09
    %v329 = vlaneseq
    %v330 = vshrl.u32 %v329, 7
    %v331 = vsub.s32 0, %v330
    %v332 = vrot.slane %v327, %v331
    %v334 = vpack.c.bf16 %v325, %v324
    %v335 = vld [vmem:[#allocation2 + $0x58] sm:$0xf]
    %v336 = vld [vmem:[#allocation2 + $0x5c] sm:$0xf]
    %v337 = vld [vmem:[#allocation2 + $0x60] sm:$0xf]
    %v338 = vld [vmem:[#allocation2 + $0x64] sm:$0xf]
    %v339 = vld [vmem:[%s6 + $0x3] sm:$0x1]
    %v340 = vlaneseq
    %v341 = vshrl.u32 %v340, 7
    %v342 = vsub.s32 0, %v341
    %v343 = vrot.slane %v339, %v342
    %v348 = vunpack.c.l.b16 %v335
    %v349 = vunpack.c.l.b16 %v336
    %v350 = vunpack.c.l.b16 %v337
    %v351 = vunpack.c.l.b16 %v338
    %v352 = vpack.c.b16 %v349, %v348
    %v353 = vpack.c.b16 %v351, %v350
    %v357 = vsel %vm286, %v334, 0
    %359 = vmatprep.subr.bf16.mxu0 0
    %360 = vmatpush1.bf16.msra.mxu0 %v352
    %361 = vmatprep.subr.bf16.mxu0 0
    %362 = vmatpush1.bf16.msra.mxu0 %v353
    %363 = vmatprep.subr.bf16.mxu0 0
    %364 = vmatpush1.bf16.msra.mxu0 0
    %365 = vmatprep.subr.bf16.mxu0 0
    %366 = vmatpush1.bf16.msra.mxu0 0
    %367 = vmatprep.subr.bf16.mxu0 0
    %368 = vmatpush1.bf16.msra.mxu0 0
    %369 = vmatprep.subr.bf16.mxu0 0
    %370 = vmatpush1.bf16.msra.mxu0 0
    %371 = vmatprep.subr.bf16.mxu0 0
    %372 = vmatpush1.bf16.msra.mxu0 0
    %373 = vmatprep.subr.bf16.mxu0 0
    %374 = vmatpush1.bf16.msra.mxu0 0
    %375 = vmatprep.subr.bf16.mxu0 0
    %376 = vmatpush1.bf16.msra.mxu0 0
    %377 = vmatprep.subr.bf16.mxu0 0
    %378 = vmatpush1.bf16.msra.mxu0 0
    %379 = vmatprep.subr.bf16.mxu0 0
    %380 = vmatpush1.bf16.msra.mxu0 0
    %381 = vmatprep.subr.bf16.mxu0 0
    %382 = vmatpush1.bf16.msra.mxu0 0
    %383 = vmatprep.subr.bf16.mxu0 0
    %384 = vmatpush1.bf16.msra.mxu0 0
    %385 = vmatprep.subr.bf16.mxu0 0
    %386 = vmatpush1.bf16.msra.mxu0 0
    %387 = vmatprep.subr.bf16.mxu0 0
    %388 = vmatpush1.bf16.msra.mxu0 0
    %389 = vmatprep.subr.bf16.mxu0 0
    %390 = vmatpush1.bf16.msra.mxu0 0
    %391 = vmatprep.mubr.bf16.mxu0 0
    %392 = vmatmul.mubr.bf16.gmra.mrb[0].mxu0 %v357
    %v393 = vpop.f32.mrb[0].mxu0
    %v394 = vadd.f32 %v343, %v393
    %v395 = vpop.f32.mrb[0].mxu0
    %v396 = vpop.f32.mrb[0].mxu0
    %v397 = vadd.f32 %v343, %v396
    %v398 = vpop.f32.mrb[0].mxu0
    %399 = vdwg.mxu0
    %v400 = vld [vmem:[%s6 + $0x4] sm:$0x1]
    %403 = vrot.lane.b32.xlu0 %v394, 96
    %v404 = vpop.permute.xlu0 %403
    %405 = vrot.lane.b32.xlu0 %v397, 96
    %v406 = vpop.permute.xlu0 %405
    %v407 = vsel %vm75, %v394, 0
    %v409 = vsel %vm75, %v397, 0
    %v411 = vsel %vm75, %v404, 0
    %v413 = vsel %vm75, %v406, 0
    %415 = vmatprep.subr.mxu0 0.0
    %416 = vmatpush1.xpose.msra.mxu0 %v411
    %417 = vmatprep.subr.mxu0 0.0
    %418 = vmatpush1.xpose.msra.mxu0 %v413
    %419 = vmatprep.subr.mxu0 0.0
    %420 = vmatpush1.xpose.msra.mxu0 0.0
    %421 = vmatprep.subr.mxu0 0.0
    %422 = vmatpush1.xpose.msra.mxu0 0.0
    %423 = vmatprep.subr.mxu0 0.0
    %424 = vmatpush1.xpose.msra.mxu0 0.0
    %425 = vmatprep.subr.mxu0 0.0
    %426 = vmatpush1.xpose.msra.mxu0 0.0
    %427 = vmatprep.subr.mxu0 0.0
    %428 = vmatpush1.xpose.msra.mxu0 0.0
    %429 = vmatprep.subr.mxu0 0.0
    %430 = vmatpush1.xpose.msra.mxu0 0.0
    %431 = vmatprep.subr.mxu0 0.0
    %432 = vmatpush1.xpose.msra.mxu0 0.0
    %433 = vmatprep.subr.mxu0 0.0
    %434 = vmatpush1.xpose.msra.mxu0 0.0
    %435 = vmatprep.subr.mxu0 0.0
    %436 = vmatpush1.xpose.msra.mxu0 0.0
    %437 = vmatprep.subr.mxu0 0.0
    %438 = vmatpush1.xpose.msra.mxu0 0.0
    %439 = vmatprep.subr.mxu0 0.0
    %440 = vmatpush1.xpose.msra.mxu0 0.0
    %441 = vmatprep.subr.mxu0 0.0
    %442 = vmatpush1.xpose.msra.mxu0 0.0
    %443 = vmatprep.subr.mxu0 0.0
    %444 = vmatpush1.xpose.msra.mxu0 0.0
    %445 = vmatprep.subr.mxu0 0.0
    %446 = vmatpush1.xpose.msra.mxu0 0.0
    %447 = vmatprep.subr.mxu0 0.0
    %448 = vmatpush1.xpose.msra.mxu0 0.0
    %449 = vmatprep.subr.mxu0 0.0
    %450 = vmatpush1.xpose.msra.mxu0 0.0
    %451 = vmatprep.subr.mxu0 0.0
    %452 = vmatpush1.xpose.msra.mxu0 0.0
    %453 = vmatprep.subr.mxu0 0.0
    %454 = vmatpush1.xpose.msra.mxu0 0.0
    %455 = vmatprep.subr.mxu0 0.0
    %456 = vmatpush1.xpose.msra.mxu0 0.0
    %457 = vmatprep.subr.mxu0 0.0
    %458 = vmatpush1.xpose.msra.mxu0 0.0
    %459 = vmatprep.subr.mxu0 0.0
    %460 = vmatpush1.xpose.msra.mxu0 0.0
    %461 = vmatprep.subr.mxu0 0.0
    %462 = vmatpush1.xpose.msra.mxu0 0.0
    %463 = vmatprep.subr.mxu0 0.0
    %464 = vmatpush1.xpose.msra.mxu0 0.0
    %465 = vmatprep.subr.mxu0 0.0
    %466 = vmatpush1.xpose.msra.mxu0 0.0
    %467 = vmatprep.subr.mxu0 0.0
    %468 = vmatpush1.xpose.msra.mxu0 0.0
    %469 = vmatprep.subr.mxu0 0.0
    %470 = vmatpush1.xpose.msra.mxu0 0.0
    %471 = vmatprep.subr.mxu0 0.0
    %472 = vmatpush1.xpose.msra.mxu0 0.0
    %473 = vmatprep.subr.mxu0 0.0
    %474 = vmatpush1.xpose.msra.mxu0 0.0
    %475 = vmatprep.subr.mxu0 0.0
    %476 = vmatpush1.xpose.msra.mxu0 0.0
    %477 = vmatprep.subr.mxu0 0.0
    %478 = vmatpush1.xpose.msra.mxu0 0.0
    %479 = vmatprep.mubr.f32.mxu0 0.0
    %480 = vmatmul.mubr.f32.gmra.mrb[0].mxu0 %v407
    %v481 = vpop.f32.mrb[0].mxu0
    %v482 = vadd.f32 0.0, %v481
    %v483 = vpop.f32.mrb[0].mxu0
    %484 = vmatprep.mubr.f32.mxu0 0.0
    %485 = vmatmul.mubr.f32.gmra.mrb[0].mxu0 %v409
    %v486 = vpop.f32.mrb[0].mxu0
    %v487 = vadd.f32 0.0, %v486
    %v488 = vpop.f32.mrb[0].mxu0
    %489 = vdwg.mxu0
    %v490 = vmul.f32 %v482, 0.25
    %v491 = vmul.f32 %v487, 0.25
    %v492 = vadd.f32 %v490, %v332
    %v493 = vadd.f32 %v491, %v332
    %v494 = vsel %vm75, %v492, -inf
    %495 = vmax.xlane.f32.xlu0 %v494
    %v496 = vpop.xlane.xlu0 %495
    %v497 = vsel %vm75, %v493, -inf
    %498 = vmax.xlane.f32.xlu0 %v497
    %v499 = vpop.xlane.xlu0 %498
    %v500 = vsub.f32 %v492, %v496
    %v501 = vsub.f32 %v493, %v499
    %v502 = vmul.f32 %v500, 1.442695
    %v503 = vpow.pop %v502
    %v504 = vmul.f32 %v501, 1.442695
    %v505 = vpow.pop %v504
    %v506 = vsel %vm75, %v503, 0.0
    %507 = vadd.xlane.f32.xlu0 %v506
    %v508 = vpop.xlane.xlu0 %507
    %v509 = vsel %vm75, %v505, 0.0
    %510 = vadd.xlane.f32.xlu0 %v509
    %v511 = vpop.xlane.xlu0 %510
    %v512 = vrcp.pop %v508
    %v513 = vrcp.pop %v511
    %v514 = vmul.f32 %v503, %v512
    %v515 = vmul.f32 %v505, %v513
    %v516 = vpack.c.bf16 %v515, %v514
    %v517 = vpack.c.bf16 %v397, %v394
    %519 = vrot.lane.b32.xlu0 %v517, 64
    %v520 = vpop.permute.xlu0 %519
    %v523 = vsel %vm75, %v516, 0
    %525 = vmatprep.subr.bf16.mxu0 0
    %526 = vmatpush1.bf16.msra.mxu0 %v520
    %527 = vmatprep.subr.bf16.mxu0 0
    %528 = vmatpush1.bf16.msra.mxu0 0
    %529 = vmatprep.subr.bf16.mxu0 0
    %530 = vmatpush1.bf16.msra.mxu0 0
    %531 = vmatprep.subr.bf16.mxu0 0
    %532 = vmatpush1.bf16.msra.mxu0 0
    %533 = vmatprep.subr.bf16.mxu0 0
    %534 = vmatpush1.bf16.msra.mxu0 0
    %535 = vmatprep.subr.bf16.mxu0 0
    %536 = vmatpush1.bf16.msra.mxu0 0
    %537 = vmatprep.subr.bf16.mxu0 0
    %538 = vmatpush1.bf16.msra.mxu0 0
    %539 = vmatprep.subr.bf16.mxu0 0
    %540 = vmatpush1.bf16.msra.mxu0 0
    %541 = vmatprep.subr.bf16.mxu0 0
    %542 = vmatpush1.bf16.msra.mxu0 0
    %543 = vmatprep.subr.bf16.mxu0 0
    %544 = vmatpush1.bf16.msra.mxu0 0
    %545 = vmatprep.subr.bf16.mxu0 0
    %546 = vmatpush1.bf16.msra.mxu0 0
    %547 = vmatprep.subr.bf16.mxu0 0
    %548 = vmatpush1.bf16.msra.mxu0 0
    %549 = vmatprep.subr.bf16.mxu0 0
    %550 = vmatpush1.bf16.msra.mxu0 0
    %551 = vmatprep.subr.bf16.mxu0 0
    %552 = vmatpush1.bf16.msra.mxu0 0
    %553 = vmatprep.subr.bf16.mxu0 0
    %554 = vmatpush1.bf16.msra.mxu0 0
    %555 = vmatprep.subr.bf16.mxu0 0
    %556 = vmatpush1.bf16.msra.mxu0 0
    %557 = vmatprep.mubr.bf16.mxu0 0
    %558 = vmatmul.mubr.bf16.gmra.mrb[0].mxu0 %v523
    %v559 = vpop.f32.mrb[0].mxu0
    %v560 = vadd.f32 0.0, %v559
    %v561 = vpop.f32.mrb[0].mxu0
    %v562 = vpop.f32.mrb[0].mxu0
    %v563 = vadd.f32 0.0, %v562
    %v564 = vpop.f32.mrb[0].mxu0
    %565 = vdwg.mxu0
    %v566 = vld [vmem:[#allocation2 + $0x68] sm:$0xf]
    %v567 = vld [vmem:[#allocation2 + $0x6c] sm:$0xf]
    %v568 = vpack.c.bf16 %v563, %v560
    %v571 = vunpack.c.l.b16 %v566
    %v572 = vunpack.c.l.b16 %v567
    %v573 = vpack.c.b16 %v572, %v571
    %v576 = vsel %vm75, %v568, 0
    %578 = vmatprep.subr.bf16.mxu0 0
    %579 = vmatpush1.bf16.msra.mxu0 %v573
    %580 = vmatprep.subr.bf16.mxu0 0
    %581 = vmatpush1.bf16.msra.mxu0 0
    %582 = vmatprep.subr.bf16.mxu0 0
    %583 = vmatpush1.bf16.msra.mxu0 0
    %584 = vmatprep.subr.bf16.mxu0 0
    %585 = vmatpush1.bf16.msra.mxu0 0
    %586 = vmatprep.subr.bf16.mxu0 0
    %587 = vmatpush1.bf16.msra.mxu0 0
    %588 = vmatprep.subr.bf16.mxu0 0
    %589 = vmatpush1.bf16.msra.mxu0 0
    %590 = vmatprep.subr.bf16.mxu0 0
    %591 = vmatpush1.bf16.msra.mxu0 0
    %592 = vmatprep.subr.bf16.mxu0 0
    %593 = vmatpush1.bf16.msra.mxu0 0
    %594 = vmatprep.subr.bf16.mxu0 0
    %595 = vmatpush1.bf16.msra.mxu0 0
    %596 = vmatprep.subr.bf16.mxu0 0
    %597 = vmatpush1.bf16.msra.mxu0 0
    %598 = vmatprep.subr.bf16.mxu0 0
    %599 = vmatpush1.bf16.msra.mxu0 0
    %600 = vmatprep.subr.bf16.mxu0 0
    %601 = vmatpush1.bf16.msra.mxu0 0
    %602 = vmatprep.subr.bf16.mxu0 0
    %603 = vmatpush1.bf16.msra.mxu0 0
    %604 = vmatprep.subr.bf16.mxu0 0
    %605 = vmatpush1.bf16.msra.mxu0 0
    %606 = vmatprep.subr.bf16.mxu0 0
    %607 = vmatpush1.bf16.msra.mxu0 0
    %608 = vmatprep.subr.bf16.mxu0 0
    %609 = vmatpush1.bf16.msra.mxu0 0
    %610 = vmatprep.mubr.bf16.mxu0 0
    %611 = vmatmul.mubr.bf16.gmra.mrb[0].mxu0 %v576
    %v612 = vpop.f32.mrb[0].mxu0
    %v613 = vadd.f32 0.0, %v612
    %v614 = vpop.f32.mrb[0].mxu0
    %v615 = vpop.f32.mrb[0].mxu0
    %v616 = vadd.f32 0.0, %v615
    %v617 = vpop.f32.mrb[0].mxu0
    %618 = vdwg.mxu0
    %v619 = vlaneseq
    %v620 = vshrl.u32 %v619, 7
    %v621 = vsub.s32 0, %v620
    %v622 = vrot.slane %v400, %v621
    %v623 = vadd.f32 %v622, %v613
    %v624 = vadd.f32 %v622, %v616
    %625 = vrot.lane.b32.xlu0 %v394, 112
    %v626 = vpop.permute.xlu0 %625
    %627 = vrot.lane.b32.xlu0 %v397, 112
    %v628 = vpop.permute.xlu0 %627
    %629 = vrot.lane.b32.xlu0 %v394, 80
    %v630 = vpop.permute.xlu0 %629
    %631 = vrot.lane.b32.xlu0 %v397, 80
    %v632 = vpop.permute.xlu0 %631
    %v633 = vsel %vm75, %v626, 0
    %v635 = vsel %vm75, %v628, 0
    %v637 = vsel %vm75, %v630, 0
    %v639 = vsel %vm75, %v632, 0
    %641 = vmatprep.subr.mxu0 0.0
    %642 = vmatpush1.xpose.msra.mxu0 %v637
    %643 = vmatprep.subr.mxu0 0.0
    %644 = vmatpush1.xpose.msra.mxu0 %v639
    %645 = vmatprep.subr.mxu0 0.0
    %646 = vmatpush1.xpose.msra.mxu0 0.0
    %647 = vmatprep.subr.mxu0 0.0
    %648 = vmatpush1.xpose.msra.mxu0 0.0
    %649 = vmatprep.subr.mxu0 0.0
    %650 = vmatpush1.xpose.msra.mxu0 0.0
    %651 = vmatprep.subr.mxu0 0.0
    %652 = vmatpush1.xpose.msra.mxu0 0.0
    %653 = vmatprep.subr.mxu0 0.0
    %654 = vmatpush1.xpose.msra.mxu0 0.0
    %655 = vmatprep.subr.mxu0 0.0
    %656 = vmatpush1.xpose.msra.mxu0 0.0
    %657 = vmatprep.subr.mxu0 0.0
    %658 = vmatpush1.xpose.msra.mxu0 0.0
    %659 = vmatprep.subr.mxu0 0.0
    %660 = vmatpush1.xpose.msra.mxu0 0.0
    %661 = vmatprep.subr.mxu0 0.0
    %662 = vmatpush1.xpose.msra.mxu0 0.0
    %663 = vmatprep.subr.mxu0 0.0
    %664 = vmatpush1.xpose.msra.mxu0 0.0
    %665 = vmatprep.subr.mxu0 0.0
    %666 = vmatpush1.xpose.msra.mxu0 0.0
    %667 = vmatprep.subr.mxu0 0.0
    %668 = vmatpush1.xpose.msra.mxu0 0.0
    %669 = vmatprep.subr.mxu0 0.0
    %670 = vmatpush1.xpose.msra.mxu0 0.0
    %671 = vmatprep.subr.mxu0 0.0
    %672 = vmatpush1.xpose.msra.mxu0 0.0
    %673 = vmatprep.subr.mxu0 0.0
    %674 = vmatpush1.xpose.msra.mxu0 0.0
    %675 = vmatprep.subr.mxu0 0.0
    %676 = vmatpush1.xpose.msra.mxu0 0.0
    %677 = vmatprep.subr.mxu0 0.0
    %678 = vmatpush1.xpose.msra.mxu0 0.0
    %679 = vmatprep.subr.mxu0 0.0
    %680 = vmatpush1.xpose.msra.mxu0 0.0
    %681 = vmatprep.subr.mxu0 0.0
    %682 = vmatpush1.xpose.msra.mxu0 0.0
    %683 = vmatprep.subr.mxu0 0.0
    %684 = vmatpush1.xpose.msra.mxu0 0.0
    %685 = vmatprep.subr.mxu0 0.0
    %686 = vmatpush1.xpose.msra.mxu0 0.0
    %687 = vmatprep.subr.mxu0 0.0
    %688 = vmatpush1.xpose.msra.mxu0 0.0
    %689 = vmatprep.subr.mxu0 0.0
    %690 = vmatpush1.xpose.msra.mxu0 0.0
    %691 = vmatprep.subr.mxu0 0.0
    %692 = vmatpush1.xpose.msra.mxu0 0.0
    %693 = vmatprep.subr.mxu0 0.0
    %694 = vmatpush1.xpose.msra.mxu0 0.0
    %695 = vmatprep.subr.mxu0 0.0
    %696 = vmatpush1.xpose.msra.mxu0 0.0
    %697 = vmatprep.subr.mxu0 0.0
    %698 = vmatpush1.xpose.msra.mxu0 0.0
    %699 = vmatprep.subr.mxu0 0.0
    %700 = vmatpush1.xpose.msra.mxu0 0.0
    %701 = vmatprep.subr.mxu0 0.0
    %702 = vmatpush1.xpose.msra.mxu0 0.0
    %703 = vmatprep.subr.mxu0 0.0
    %704 = vmatpush1.xpose.msra.mxu0 0.0
    %705 = vmatprep.mubr.f32.mxu0 0.0
    %706 = vmatmul.mubr.f32.gmra.mrb[0].mxu0 %v633
    %v707 = vpop.f32.mrb[0].mxu0
    %v708 = vadd.f32 0.0, %v707
    %v709 = vpop.f32.mrb[0].mxu0
    %710 = vmatprep.mubr.f32.mxu0 0.0
    %711 = vmatmul.mubr.f32.gmra.mrb[0].mxu0 %v635
    %v712 = vpop.f32.mrb[0].mxu0
    %v713 = vadd.f32 0.0, %v712
    %v714 = vpop.f32.mrb[0].mxu0
    %715 = vdwg.mxu0
    %v716 = vmul.f32 %v708, 0.25
    %v717 = vmul.f32 %v713, 0.25
    %v718 = vadd.f32 %v716, %v332
    %v719 = vadd.f32 %v717, %v332
    %v720 = vsel %vm75, %v718, -inf
    %721 = vmax.xlane.f32.xlu0 %v720
    %v722 = vpop.xlane.xlu0 %721
    %v723 = vsel %vm75, %v719, -inf
    %724 = vmax.xlane.f32.xlu0 %v723
    %v725 = vpop.xlane.xlu0 %724
    %v726 = vsub.f32 %v718, %v722
    %v727 = vsub.f32 %v719, %v725
    %v728 = vmul.f32 %v726, 1.442695
    %v729 = vpow.pop %v728
    %v730 = vmul.f32 %v727, 1.442695
    %v731 = vpow.pop %v730
    %v732 = vsel %vm75, %v729, 0.0
    %733 = vadd.xlane.f32.xlu0 %v732
    %v734 = vpop.xlane.xlu0 %733
    %v735 = vsel %vm75, %v731, 0.0
    %736 = vadd.xlane.f32.xlu0 %v735
    %v737 = vpop.xlane.xlu0 %736
    %v738 = vrcp.pop %v734
    %v739 = vrcp.pop %v737
    %v740 = vmul.f32 %v729, %v738
    %v741 = vmul.f32 %v731, %v739
    %v742 = vpack.c.bf16 %v741, %v740
    %743 = vrot.lane.b32.xlu0 %v517, 48
    %v744 = vpop.permute.xlu0 %743
    %v747 = vsel %vm75, %v742, 0
    %749 = vmatprep.subr.bf16.mxu0 0
    %750 = vmatpush1.bf16.msra.mxu0 %v744
    %751 = vmatprep.subr.bf16.mxu0 0
    %752 = vmatpush1.bf16.msra.mxu0 0
    %753 = vmatprep.subr.bf16.mxu0 0
    %754 = vmatpush1.bf16.msra.mxu0 0
    %755 = vmatprep.subr.bf16.mxu0 0
    %756 = vmatpush1.bf16.msra.mxu0 0
    %757 = vmatprep.subr.bf16.mxu0 0
    %758 = vmatpush1.bf16.msra.mxu0 0
    %759 = vmatprep.subr.bf16.mxu0 0
    %760 = vmatpush1.bf16.msra.mxu0 0
    %761 = vmatprep.subr.bf16.mxu0 0
    %762 = vmatpush1.bf16.msra.mxu0 0
    %763 = vmatprep.subr.bf16.mxu0 0
    %764 = vmatpush1.bf16.msra.mxu0 0
    %765 = vmatprep.subr.bf16.mxu0 0
    %766 = vmatpush1.bf16.msra.mxu0 0
    %767 = vmatprep.subr.bf16.mxu0 0
    %768 = vmatpush1.bf16.msra.mxu0 0
    %769 = vmatprep.subr.bf16.mxu0 0
    %770 = vmatpush1.bf16.msra.mxu0 0
    %771 = vmatprep.subr.bf16.mxu0 0
    %772 = vmatpush1.bf16.msra.mxu0 0
    %773 = vmatprep.subr.bf16.mxu0 0
    %774 = vmatpush1.bf16.msra.mxu0 0
    %775 = vmatprep.subr.bf16.mxu0 0
    %776 = vmatpush1.bf16.msra.mxu0 0
    %777 = vmatprep.subr.bf16.mxu0 0
    %778 = vmatpush1.bf16.msra.mxu0 0
    %779 = vmatprep.subr.bf16.mxu0 0
    %780 = vmatpush1.bf16.msra.mxu0 0
    %781 = vmatprep.mubr.bf16.mxu0 0
    %782 = vmatmul.mubr.bf16.gmra.mrb[0].mxu0 %v747
    %v783 = vpop.f32.mrb[0].mxu0
    %v784 = vadd.f32 0.0, %v783
    %v785 = vpop.f32.mrb[0].mxu0
    %v786 = vpop.f32.mrb[0].mxu0
    %v787 = vadd.f32 0.0, %v786
    %v788 = vpop.f32.mrb[0].mxu0
    %789 = vdwg.mxu0
    %v790 = vld [vmem:[#allocation2 + $0x70] sm:$0xf]
    %v791 = vld [vmem:[#allocation2 + $0x74] sm:$0xf]
    %v792 = vpack.c.bf16 %v787, %v784
    %v795 = vunpack.c.l.b16 %v790
    %v796 = vunpack.c.l.b16 %v791
    %v797 = vpack.c.b16 %v796, %v795
    %v800 = vsel %vm75, %v792, 0
    %802 = vmatprep.subr.bf16.mxu0 0
    %803 = vmatpush1.bf16.msra.mxu0 %v797
    %804 = vmatprep.subr.bf16.mxu0 0
    %805 = vmatpush1.bf16.msra.mxu0 0
    %806 = vmatprep.subr.bf16.mxu0 0
    %807 = vmatpush1.bf16.msra.mxu0 0
    %808 = vmatprep.subr.bf16.mxu0 0
    %809 = vmatpush1.bf16.msra.mxu0 0
    %810 = vmatprep.subr.bf16.mxu0 0
    %811 = vmatpush1.bf16.msra.mxu0 0
    %812 = vmatprep.subr.bf16.mxu0 0
    %813 = vmatpush1.bf16.msra.mxu0 0
    %814 = vmatprep.subr.bf16.mxu0 0
    %815 = vmatpush1.bf16.msra.mxu0 0
    %816 = vmatprep.subr.bf16.mxu0 0
    %817 = vmatpush1.bf16.msra.mxu0 0
    %818 = vmatprep.subr.bf16.mxu0 0
    %819 = vmatpush1.bf16.msra.mxu0 0
    %820 = vmatprep.subr.bf16.mxu0 0
    %821 = vmatpush1.bf16.msra.mxu0 0
    %822 = vmatprep.subr.bf16.mxu0 0
    %823 = vmatpush1.bf16.msra.mxu0 0
    %824 = vmatprep.subr.bf16.mxu0 0
    %825 = vmatpush1.bf16.msra.mxu0 0
    %826 = vmatprep.subr.bf16.mxu0 0
    %827 = vmatpush1.bf16.msra.mxu0 0
    %828 = vmatprep.subr.bf16.mxu0 0
    %829 = vmatpush1.bf16.msra.mxu0 0
    %830 = vmatprep.subr.bf16.mxu0 0
    %831 = vmatpush1.bf16.msra.mxu0 0
    %832 = vmatprep.subr.bf16.mxu0 0
    %833 = vmatpush1.bf16.msra.mxu0 0
    %834 = vmatprep.mubr.bf16.mxu0 0
    %835 = vmatmul.mubr.bf16.gmra.mrb[0].mxu0 %v800
    %v836 = vpop.f32.mrb[0].mxu0
    %v837 = vadd.f32 0.0, %v836
    %v838 = vpop.f32.mrb[0].mxu0
    %v839 = vpop.f32.mrb[0].mxu0
    %v840 = vadd.f32 0.0, %v839
    %v841 = vpop.f32.mrb[0].mxu0
    %842 = vdwg.mxu0
    %v843 = vadd.f32 %v623, %v837
    %v844 = vadd.f32 %v624, %v840
    %v845 = vadd.f32 %v324, %v843
    %v846 = vadd.f32 %v325, %v844
    %v847 = vld [vmem:[%s6 + $0x5] sm:$0x1]
    %v848 = vld [vmem:[%s6 + $0x6] sm:$0x1]
    %v849 = vsel %vm286, %v845, 0.0
    %850 = vadd.xlane.f32.xlu0 %v849
    %v851 = vpop.xlane.xlu0 %850
    %v852 = vsel %vm286, %v846, 0.0
    %853 = vadd.xlane.f32.xlu0 %v852
    %v854 = vpop.xlane.xlu0 %853
    %v855 = vmul.f32 %v851, %v293
    %v856 = vmul.f32 %v854, %v293
    %v857 = vsub.f32 %v845, %v855
    %v858 = vsub.f32 %v846, %v856
    %v859 = vmul.f32 %v857, %v857
    %v860 = vmul.f32 %v858, %v858
    %v861 = vsel %vm286, %v859, 0.0
    %862 = vadd.xlane.f32.xlu0 %v861
    %v863 = vpop.xlane.xlu0 %862
    %v864 = vsel %vm286, %v860, 0.0
    %865 = vadd.xlane.f32.xlu0 %v864
    %v866 = vpop.xlane.xlu0 %865
    %v867 = vmul.f32 %v863, %v293
    %v868 = vmul.f32 %v866, %v293
    %v869 = vadd.f32 %v867, 1e-05
    %v870 = vadd.f32 %v868, 1e-05
    %v871 = vrsqrt.pop %v869
    %v872 = vrsqrt.pop %v870
    %v873 = vmul.f32 %v857, %v871
    %v874 = vmul.f32 %v858, %v872
    %v875 = vlaneseq
    %v876 = vshrl.u32 %v875, 7
    %v877 = vsub.s32 0, %v876
    %v878 = vrot.slane %v847, %v877
    %v879 = vmul.f32 %v873, %v878
    %v880 = vmul.f32 %v874, %v878
    %v881 = vlaneseq
    %v882 = vshrl.u32 %v881, 7
    %v883 = vsub.s32 0, %v882
    %v884 = vrot.slane %v848, %v883
    %v885 = vadd.f32 %v879, %v884
    %v886 = vadd.f32 %v880, %v884
    %v887 = vpack.c.bf16 %v886, %v885
    %v888 = vld [vmem:[#allocation2 + $0x78] sm:$0xf]
    %v889 = vld [vmem:[#allocation2 + $0x7c] sm:$0xf]
    %v890 = vld [vmem:[#allocation2 + $0x80] sm:$0xf]
    %v891 = vld [vmem:[#allocation2 + $0x84] sm:$0xf]
    %v892 = vld [vmem:[%s6 + $0x7] sm:$0x1]
    %v893 = vlaneseq
    %v894 = vshrl.u32 %v893, 7
    %v895 = vsub.s32 0, %v894
    %v896 = vrot.slane %v892, %v895
    %v901 = vunpack.c.l.b16 %v888
    %v902 = vunpack.c.l.b16 %v889
    %v903 = vunpack.c.l.b16 %v890
    %v904 = vunpack.c.l.b16 %v891
    %v905 = vpack.c.b16 %v902, %v901
    %v906 = vpack.c.b16 %v904, %v903
    %v910 = vsel %vm286, %v887, 0
    %912 = vmatprep.subr.bf16.mxu0 0
    %913 = vmatpush1.bf16.msra.mxu0 %v905
    %914 = vmatprep.subr.bf16.mxu0 0
    %915 = vmatpush1.bf16.msra.mxu0 %v906
    %916 = vmatprep.subr.bf16.mxu0 0
    %917 = vmatpush1.bf16.msra.mxu0 0
    %918 = vmatprep.subr.bf16.mxu0 0
    %919 = vmatpush1.bf16.msra.mxu0 0
    %920 = vmatprep.subr.bf16.mxu0 0
    %921 = vmatpush1.bf16.msra.mxu0 0
    %922 = vmatprep.subr.bf16.mxu0 0
    %923 = vmatpush1.bf16.msra.mxu0 0
    %924 = vmatprep.subr.bf16.mxu0 0
    %925 = vmatpush1.bf16.msra.mxu0 0
    %926 = vmatprep.subr.bf16.mxu0 0
    %927 = vmatpush1.bf16.msra.mxu0 0
    %928 = vmatprep.subr.bf16.mxu0 0
    %929 = vmatpush1.bf16.msra.mxu0 0
    %930 = vmatprep.subr.bf16.mxu0 0
    %931 = vmatpush1.bf16.msra.mxu0 0
    %932 = vmatprep.subr.bf16.mxu0 0
    %933 = vmatpush1.bf16.msra.mxu0 0
    %934 = vmatprep.subr.bf16.mxu0 0
    %935 = vmatpush1.bf16.msra.mxu0 0
    %936 = vmatprep.subr.bf16.mxu0 0
    %937 = vmatpush1.bf16.msra.mxu0 0
    %938 = vmatprep.subr.bf16.mxu0 0
    %939 = vmatpush1.bf16.msra.mxu0 0
    %940 = vmatprep.subr.bf16.mxu0 0
    %941 = vmatpush1.bf16.msra.mxu0 0
    %942 = vmatprep.subr.bf16.mxu0 0
    %943 = vmatpush1.bf16.msra.mxu0 0
    %944 = vmatprep.mubr.bf16.mxu0 0
    %945 = vmatmul.mubr.bf16.gmra.mrb[0].mxu0 %v910
    %v946 = vpop.f32.mrb[0].mxu0
    %v947 = vadd.f32 %v896, %v946
    %v948 = vpop.f32.mrb[0].mxu0
    %v949 = vpop.f32.mrb[0].mxu0
    %v950 = vadd.f32 %v896, %v949
    %v951 = vpop.f32.mrb[0].mxu0
    %952 = vdwg.mxu0
    %v953 = vmul.f32 %v947, %v947
    %v954 = vmul.f32 %v950, %v950
    %v955 = vmul.f32 %v947, %v953
    %v956 = vmul.f32 %v950, %v954
    %v957 = vmul.f32 %v955, 0.044715
    %v958 = vmul.f32 %v956, 0.044715
    %v959 = vadd.f32 %v947, %v957
    %v960 = vadd.f32 %v950, %v958
    %v961 = vmul.f32 %v959, 0.7978846
    %v962 = vmul.f32 %v960, 0.7978846
    %v963 = vtanh.pop %v961
    %v964 = vtanh.pop %v962
    %v965 = vadd.f32 %v963, 1.0
    %v966 = vadd.f32 %v964, 1.0
    %v967 = vmul.f32 %v965, 0.5
    %v968 = vmul.f32 %v966, 0.5
    %v969 = vmul.f32 %v947, %v967
    %v970 = vmul.f32 %v950, %v968
    %v971 = vpack.c.bf16 %v970, %v969
    %v972 = vld [vmem:[#allocation2 + $0x88] sm:$0xf]
    %v973 = vld [vmem:[#allocation2 + $0x8c] sm:$0xf]
    %v974 = vld [vmem:[#allocation2 + $0x90] sm:$0xf]
    %v975 = vld [vmem:[#allocation2 + $0x94] sm:$0xf]
    %v976 = vld [vmem:[#allocation2 + $0x98] sm:$0xf]
    %v977 = vld [vmem:[#allocation2 + $0x9c] sm:$0xf]
    %v978 = vld [vmem:[#allocation2 + $0xa0] sm:$0xf]
    %v979 = vld [vmem:[#allocation2 + $0xa4] sm:$0xf]
    %v980 = vld [vmem:[%s6 + $0x8] sm:$0x1]
    %v981 = vlaneseq
    %v982 = vshrl.u32 %v981, 7
    %v983 = vsub.s32 0, %v982
    %v984 = vrot.slane %v980, %v983
    %v993 = vunpack.c.l.b16 %v972
    %v994 = vunpack.c.l.b16 %v973
    %v995 = vunpack.c.l.b16 %v974
    %v996 = vunpack.c.l.b16 %v975
    %v997 = vunpack.c.l.b16 %v976
    %v998 = vunpack.c.l.b16 %v977
    %v999 = vunpack.c.l.b16 %v978
    %v1000 = vunpack.c.l.b16 %v979
    %v1001 = vpack.c.b16 %v994, %v993
    %v1002 = vpack.c.b16 %v996, %v995
    %v1003 = vpack.c.b16 %v998, %v997
    %v1004 = vpack.c.b16 %v1000, %v999
    %v1010 = vsel %vm145, %v971, 0
    %1012 = vmatprep.subr.bf16.mxu0 0
    %1013 = vmatpush1.bf16.msra.mxu0 %v1001
    %1014 = vmatprep.subr.bf16.mxu0 0
    %1015 = vmatpush1.bf16.msra.mxu0 %v1002
    %1016 = vmatprep.subr.bf16.mxu0 0
    %1017 = vmatpush1.bf16.msra.mxu0 %v1003
    %1018 = vmatprep.subr.bf16.mxu0 0
    %1019 = vmatpush1.bf16.msra.mxu0 %v1004
    %1020 = vmatprep.subr.bf16.mxu0 0
    %1021 = vmatpush1.bf16.msra.mxu0 0
    %1022 = vmatprep.subr.bf16.mxu0 0
    %1023 = vmatpush1.bf16.msra.mxu0 0
    %1024 = vmatprep.subr.bf16.mxu0 0
    %1025 = vmatpush1.bf16.msra.mxu0 0
    %1026 = vmatprep.subr.bf16.mxu0 0
    %1027 = vmatpush1.bf16.msra.mxu0 0
    %1028 = vmatprep.subr.bf16.mxu0 0
    %1029 = vmatpush1.bf16.msra.mxu0 0
    %1030 = vmatprep.subr.bf16.mxu0 0
    %1031 = vmatpush1.bf16.msra.mxu0 0
    %1032 = vmatprep.subr.bf16.mxu0 0
    %1033 = vmatpush1.bf16.msra.mxu0 0
    %1034 = vmatprep.subr.bf16.mxu0 0
    %1035 = vmatpush1.bf16.msra.mxu0 0
    %1036 = vmatprep.subr.bf16.mxu0 0
    %1037 = vmatpush1.bf16.msra.mxu0 0
    %1038 = vmatprep.subr.bf16.mxu0 0
    %1039 = vmatpush1.bf16.msra.mxu0 0
    %1040 = vmatprep.subr.bf16.mxu0 0
    %1041 = vmatpush1.bf16.msra.mxu0 0
    %1042 = vmatprep.subr.bf16.mxu0 0
    %1043 = vmatpush1.bf16.msra.mxu0 0
    %1044 = vmatprep.mubr.bf16.mxu0 0
    %1045 = vmatmul.mubr.bf16.gmra.mrb[0].mxu0 %v1010
    %v1046 = vpop.f32.mrb[0].mxu0
    %v1047 = vadd.f32 %v984, %v1046
    %v1048 = vpop.f32.mrb[0].mxu0
    %v1049 = vpop.f32.mrb[0].mxu0
    %v1050 = vadd.f32 %v984, %v1049
    %v1051 = vpop.f32.mrb[0].mxu0
    %1052 = vdwg.mxu0
    %v1053 = vadd.f32 %v885, %v1047
    %v1054 = vadd.f32 %v886, %v1050
    %v1055 = vld [vmem:[%s6 + $0x9] sm:$0x1]
    %v1056 = vld [vmem:[%s6 + $0xa] sm:$0x1]
    %v1057 = vsel %vm286, %v1053, 0.0
    %1058 = vadd.xlane.f32.xlu0 %v1057
    %v1059 = vpop.xlane.xlu0 %1058
    %v1060 = vsel %vm286, %v1054, 0.0
    %1061 = vadd.xlane.f32.xlu0 %v1060
    %v1062 = vpop.xlane.xlu0 %1061
    %v1063 = vmul.f32 %v1059, %v293
    %v1064 = vmul.f32 %v1062, %v293
    %v1065 = vsub.f32 %v1053, %v1063
    %v1066 = vsub.f32 %v1054, %v1064
    %v1067 = vmul.f32 %v1065, %v1065
    %v1068 = vmul.f32 %v1066, %v1066
    %v1069 = vsel %vm286, %v1067, 0.0
    %1070 = vadd.xlane.f32.xlu0 %v1069
    %v1071 = vpop.xlane.xlu0 %1070
    %v1072 = vsel %vm286, %v1068, 0.0
    %1073 = vadd.xlane.f32.xlu0 %v1072
    %v1074 = vpop.xlane.xlu0 %1073
    %v1075 = vmul.f32 %v1071, %v293
    %v1076 = vmul.f32 %v1074, %v293
    %v1077 = vadd.f32 %v1075, 1e-05
    %v1078 = vadd.f32 %v1076, 1e-05
    %v1079 = vrsqrt.pop %v1077
    %v1080 = vrsqrt.pop %v1078
    %v1081 = vmul.f32 %v1065, %v1079
    %v1082 = vmul.f32 %v1066, %v1080
    %v1083 = vlaneseq
    %v1084 = vshrl.u32 %v1083, 7
    %v1085 = vsub.s32 0, %v1084
    %v1086 = vrot.slane %v1055, %v1085
    %v1087 = vmul.f32 %v1081, %v1086
    %v1088 = vmul.f32 %v1082, %v1086
    %v1089 = vlaneseq
    %v1090 = vshrl.u32 %v1089, 7
    %v1091 = vsub.s32 0, %v1090
    %v1092 = vrot.slane %v1056, %v1091
    %v1093 = vadd.f32 %v1087, %v1092
    %v1094 = vadd.f32 %v1088, %v1092
    %v1095 = vpack.c.bf16 %v1094, %v1093
    %v1096 = vld [vmem:[#allocation2 + $0xa8] sm:$0xf]
    %v1097 = vld [vmem:[#allocation2 + $0xac] sm:$0xf]
    %v1098 = vld [vmem:[#allocation2 + $0xb0] sm:$0xf]
    %v1099 = vld [vmem:[#allocation2 + $0xb4] sm:$0xf]
    %v1100 = vld [vmem:[%s6 + $0xb] sm:$0x1]
    %v1101 = vlaneseq
    %v1102 = vshrl.u32 %v1101, 7
    %v1103 = vsub.s32 0, %v1102
    %v1104 = vrot.slane %v1100, %v1103
    %v1109 = vunpack.c.l.b16 %v1096
    %v1110 = vunpack.c.l.b16 %v1097
    %v1111 = vunpack.c.l.b16 %v1098
    %v1112 = vunpack.c.l.b16 %v1099
    %v1113 = vpack.c.b16 %v1110, %v1109
    %v1114 = vpack.c.b16 %v1112, %v1111
    %v1118 = vsel %vm286, %v1095, 0
    %1120 = vmatprep.subr.bf16.mxu0 0
    %1121 = vmatpush1.bf16.msra.mxu0 %v1113
    %1122 = vmatprep.subr.bf16.mxu0 0
    %1123 = vmatpush1.bf16.msra.mxu0 %v1114
    %1124 = vmatprep.subr.bf16.mxu0 0
    %1125 = vmatpush1.bf16.msra.mxu0 0
    %1126 = vmatprep.subr.bf16.mxu0 0
    %1127 = vmatpush1.bf16.msra.mxu0 0
    %1128 = vmatprep.subr.bf16.mxu0 0
    %1129 = vmatpush1.bf16.msra.mxu0 0
    %1130 = vmatprep.subr.bf16.mxu0 0
    %1131 = vmatpush1.bf16.msra.mxu0 0
    %1132 = vmatprep.subr.bf16.mxu0 0
    %1133 = vmatpush1.bf16.msra.mxu0 0
    %1134 = vmatprep.subr.bf16.mxu0 0
    %1135 = vmatpush1.bf16.msra.mxu0 0
    %1136 = vmatprep.subr.bf16.mxu0 0
    %1137 = vmatpush1.bf16.msra.mxu0 0
    %1138 = vmatprep.subr.bf16.mxu0 0
    %1139 = vmatpush1.bf16.msra.mxu0 0
    %1140 = vmatprep.subr.bf16.mxu0 0
    %1141 = vmatpush1.bf16.msra.mxu0 0
    %1142 = vmatprep.subr.bf16.mxu0 0
    %1143 = vmatpush1.bf16.msra.mxu0 0
    %1144 = vmatprep.subr.bf16.mxu0 0
    %1145 = vmatpush1.bf16.msra.mxu0 0
    %1146 = vmatprep.subr.bf16.mxu0 0
    %1147 = vmatpush1.bf16.msra.mxu0 0
    %1148 = vmatprep.subr.bf16.mxu0 0
    %1149 = vmatpush1.bf16.msra.mxu0 0
    %1150 = vmatprep.subr.bf16.mxu0 0
    %1151 = vmatpush1.bf16.msra.mxu0 0
    %1152 = vmatprep.mubr.bf16.mxu0 0
    %1153 = vmatmul.mubr.bf16.gmra.mrb[0].mxu0 %v1118
    %v1154 = vpop.f32.mrb[0].mxu0
    %v1155 = vadd.f32 %v1104, %v1154
    %v1156 = vpop.f32.mrb[0].mxu0
    %v1157 = vpop.f32.mrb[0].mxu0
    %v1158 = vadd.f32 %v1104, %v1157
    %v1159 = vpop.f32.mrb[0].mxu0
    %1160 = vdwg.mxu0
    %v1161 = vld [vmem:[%s6 + $0xc] sm:$0x1]
    %1164 = vrot.lane.b32.xlu0 %v1155, 96
    %v1165 = vpop.permute.xlu0 %1164
    %1166 = vrot.lane.b32.xlu0 %v1158, 96
    %v1167 = vpop.permute.xlu0 %1166
    %v1168 = vsel %vm75, %v1155, 0
    %v1170 = vsel %vm75, %v1158, 0
    %v1172 = vsel %vm75, %v1165, 0
    %v1174 = vsel %vm75, %v1167, 0
    %1176 = vmatprep.subr.mxu0 0.0
    %1177 = vmatpush1.xpose.msra.mxu0 %v1172
    %1178 = vmatprep.subr.mxu0 0.0
    %1179 = vmatpush1.xpose.msra.mxu0 %v1174
    %1180 = vmatprep.subr.mxu0 0.0
    %1181 = vmatpush1.xpose.msra.mxu0 0.0
    %1182 = vmatprep.subr.mxu0 0.0
    %1183 = vmatpush1.xpose.msra.mxu0 0.0
    %1184 = vmatprep.subr.mxu0 0.0
    %1185 = vmatpush1.xpose.msra.mxu0 0.0
    %1186 = vmatprep.subr.mxu0 0.0
    %1187 = vmatpush1.xpose.msra.mxu0 0.0
    %1188 = vmatprep.subr.mxu0 0.0
    %1189 = vmatpush1.xpose.msra.mxu0 0.0
    %1190 = vmatprep.subr.mxu0 0.0
    %1191 = vmatpush1.xpose.msra.mxu0 0.0
    %1192 = vmatprep.subr.mxu0 0.0
    %1193 = vmatpush1.xpose.msra.mxu0 0.0
    %1194 = vmatprep.subr.mxu0 0.0
    %1195 = vmatpush1.xpose.msra.mxu0 0.0
    %1196 = vmatprep.subr.mxu0 0.0
    %1197 = vmatpush1.xpose.msra.mxu0 0.0
    %1198 = vmatprep.subr.mxu0 0.0
    %1199 = vmatpush1.xpose.msra.mxu0 0.0
    %1200 = vmatprep.subr.mxu0 0.0
    %1201 = vmatpush1.xpose.msra.mxu0 0.0
    %1202 = vmatprep.subr.mxu0 0.0
    %1203 = vmatpush1.xpose.msra.mxu0 0.0
    %1204 = vmatprep.subr.mxu0 0.0
    %1205 = vmatpush1.xpose.msra.mxu0 0.0
    %1206 = vmatprep.subr.mxu0 0.0
    %1207 = vmatpush1.xpose.msra.mxu0 0.0
    %1208 = vmatprep.subr.mxu0 0.0
    %1209 = vmatpush1.xpose.msra.mxu0 0.0
    %1210 = vmatprep.subr.mxu0 0.0
    %1211 = vmatpush1.xpose.msra.mxu0 0.0
    %1212 = vmatprep.subr.mxu0 0.0
    %1213 = vmatpush1.xpose.msra.mxu0 0.0
    %1214 = vmatprep.subr.mxu0 0.0
    %1215 = vmatpush1.xpose.msra.mxu0 0.0
    %1216 = vmatprep.subr.mxu0 0.0
    %1217 = vmatpush1.xpose.msra.mxu0 0.0
    %1218 = vmatprep.subr.mxu0 0.0
    %1219 = vmatpush1.xpose.msra.mxu0 0.0
    %1220 = vmatprep.subr.mxu0 0.0
    %1221 = vmatpush1.xpose.msra.mxu0 0.0
    %1222 = vmatprep.subr.mxu0 0.0
    %1223 = vmatpush1.xpose.msra.mxu0 0.0
    %1224 = vmatprep.subr.mxu0 0.0
    %1225 = vmatpush1.xpose.msra.mxu0 0.0
    %1226 = vmatprep.subr.mxu0 0.0
    %1227 = vmatpush1.xpose.msra.mxu0 0.0
    %1228 = vmatprep.subr.mxu0 0.0
    %1229 = vmatpush1.xpose.msra.mxu0 0.0
    %1230 = vmatprep.subr.mxu0 0.0
    %1231 = vmatpush1.xpose.msra.mxu0 0.0
    %1232 = vmatprep.subr.mxu0 0.0
    %1233 = vmatpush1.xpose.msra.mxu0 0.0
    %1234 = vmatprep.subr.mxu0 0.0
    %1235 = vmatpush1.xpose.msra.mxu0 0.0
    %1236 = vmatprep.subr.mxu0 0.0
    %1237 = vmatpush1.xpose.msra.mxu0 0.0
    %1238 = vmatprep.subr.mxu0 0.0
    %1239 = vmatpush1.xpose.msra.mxu0 0.0
    %1240 = vmatprep.mubr.f32.mxu0 0.0
    %1241 = vmatmul.mubr.f32.gmra.mrb[0].mxu0 %v1168
    %v1242 = vpop.f32.mrb[0].mxu0
    %v1243 = vadd.f32 0.0, %v1242
    %v1244 = vpop.f32.mrb[0].mxu0
    %1245 = vmatprep.mubr.f32.mxu0 0.0
    %1246 = vmatmul.mubr.f32.gmra.mrb[0].mxu0 %v1170
    %v1247 = vpop.f32.mrb[0].mxu0
    %v1248 = vadd.f32 0.0, %v1247
    %v1249 = vpop.f32.mrb[0].mxu0
    %1250 = vdwg.mxu0
    %v1251 = vmul.f32 %v1243, 0.25
    %v1252 = vmul.f32 %v1248, 0.25
    %v1253 = vadd.f32 %v1251, %v332
    %v1254 = vadd.f32 %v1252, %v332
    %v1255 = vsel %vm75, %v1253, -inf
    %1256 = vmax.xlane.f32.xlu0 %v1255
    %v1257 = vpop.xlane.xlu0 %1256
    %v1258 = vsel %vm75, %v1254, -inf
    %1259 = vmax.xlane.f32.xlu0 %v1258
    %v1260 = vpop.xlane.xlu0 %1259
    %v1261 = vsub.f32 %v1253, %v1257
    %v1262 = vsub.f32 %v1254, %v1260
    %v1263 = vmul.f32 %v1261, 1.442695
    %v1264 = vpow.pop %v1263
    %v1265 = vmul.f32 %v1262, 1.442695
    %v1266 = vpow.pop %v1265
    %v1267 = vsel %vm75, %v1264, 0.0
    %1268 = vadd.xlane.f32.xlu0 %v1267
    %v1269 = vpop.xlane.xlu0 %1268
    %v1270 = vsel %vm75, %v1266, 0.0
    %1271 = vadd.xlane.f32.xlu0 %v1270
    %v1272 = vpop.xlane.xlu0 %1271
    %v1273 = vrcp.pop %v1269
    %v1274 = vrcp.pop %v1272
    %v1275 = vmul.f32 %v1264, %v1273
    %v1276 = vmul.f32 %v1266, %v1274
    %v1277 = vpack.c.bf16 %v1276, %v1275
    %v1278 = vpack.c.bf16 %v1158, %v1155
    %1280 = vrot.lane.b32.xlu0 %v1278, 64
    %v1281 = vpop.permute.xlu0 %1280
    %v1284 = vsel %vm75, %v1277, 0
    %1286 = vmatprep.subr.bf16.mxu0 0
    %1287 = vmatpush1.bf16.msra.mxu0 %v1281
    %1288 = vmatprep.subr.bf16.mxu0 0
    %1289 = vmatpush1.bf16.msra.mxu0 0
    %1290 = vmatprep.subr.bf16.mxu0 0
    %1291 = vmatpush1.bf16.msra.mxu0 0
    %1292 = vmatprep.subr.bf16.mxu0 0
    %1293 = vmatpush1.bf16.msra.mxu0 0
    %1294 = vmatprep.subr.bf16.mxu0 0
    %1295 = vmatpush1.bf16.msra.mxu0 0
    %1296 = vmatprep.subr.bf16.mxu0 0
    %1297 = vmatpush1.bf16.msra.mxu0 0
    %1298 = vmatprep.subr.bf16.mxu0 0
    %1299 = vmatpush1.bf16.msra.mxu0 0
    %1300 = vmatprep.subr.bf16.mxu0 0
    %1301 = vmatpush1.bf16.msra.mxu0 0
    %1302 = vmatprep.subr.bf16.mxu0 0
    %1303 = vmatpush1.bf16.msra.mxu0 0
    %1304 = vmatprep.subr.bf16.mxu0 0
    %1305 = vmatpush1.bf16.msra.mxu0 0
    %1306 = vmatprep.subr.bf16.mxu0 0
    %1307 = vmatpush1.bf16.msra.mxu0 0
    %1308 = vmatprep.subr.bf16.mxu0 0
    %1309 = vmatpush1.bf16.msra.mxu0 0
    %1310 = vmatprep.subr.bf16.mxu0 0
    %1311 = vmatpush1.bf16.msra.mxu0 0
    %1312 = vmatprep.subr.bf16.mxu0 0
    %1313 = vmatpush1.bf16.msra.mxu0 0
    %1314 = vmatprep.subr.bf16.mxu0 0
    %1315 = vmatpush1.bf16.msra.mxu0 0
    %1316 = vmatprep.subr.bf16.mxu0 0
    %1317 = vmatpush1.bf16.msra.mxu0 0
    %1318 = vmatprep.mubr.bf16.mxu0 0
    %1319 = vmatmul.mubr.bf16.gmra.mrb[0].mxu0 %v1284
    %v1320 = vpop.f32.mrb[0].mxu0
    %v1321 = vadd.f32 0.0, %v1320
    %v1322 = vpop.f32.mrb[0].mxu0
    %v1323 = vpop.f32.mrb[0].mxu0
    %v1324 = vadd.f32 0.0, %v1323
    %v1325 = vpop.f32.mrb[0].mxu0
    %1326 = vdwg.mxu0
    %v1327 = vld [vmem:[#allocation2 + $0xb8] sm:$0xf]
    %v1328 = vld [vmem:[#allocation2 + $0xbc] sm:$0xf]
    %v1329 = vpack.c.bf16 %v1324, %v1321
    %v1332 = vunpack.c.l.b16 %v1327
    %v1333 = vunpack.c.l.b16 %v1328
    %v1334 = vpack.c.b16 %v1333, %v1332
    %v1337 = vsel %vm75, %v1329, 0
    %1339 = vmatprep.subr.bf16.mxu0 0
    %1340 = vmatpush1.bf16.msra.mxu0 %v1334
    %1341 = vmatprep.subr.bf16.mxu0 0
    %1342 = vmatpush1.bf16.msra.mxu0 0
    %1343 = vmatprep.subr.bf16.mxu0 0
    %1344 = vmatpush1.bf16.msra.mxu0 0
    %1345 = vmatprep.subr.bf16.mxu0 0
    %1346 = vmatpush1.bf16.msra.mxu0 0
    %1347 = vmatprep.subr.bf16.mxu0 0
    %1348 = vmatpush1.bf16.msra.mxu0 0
    %1349 = vmatprep.subr.bf16.mxu0 0
    %1350 = vmatpush1.bf16.msra.mxu0 0
    %1351 = vmatprep.subr.bf16.mxu0 0
    %1352 = vmatpush1.bf16.msra.mxu0 0
    %1353 = vmatprep.subr.bf16.mxu0 0
    %1354 = vmatpush1.bf16.msra.mxu0 0
    %1355 = vmatprep.subr.bf16.mxu0 0
    %1356 = vmatpush1.bf16.msra.mxu0 0
    %1357 = vmatprep.subr.bf16.mxu0 0
    %1358 = vmatpush1.bf16.msra.mxu0 0
    %1359 = vmatprep.subr.bf16.mxu0 0
    %1360 = vmatpush1.bf16.msra.mxu0 0
    %1361 = vmatprep.subr.bf16.mxu0 0
    %1362 = vmatpush1.bf16.msra.mxu0 0
    %1363 = vmatprep.subr.bf16.mxu0 0
    %1364 = vmatpush1.bf16.msra.mxu0 0
    %1365 = vmatprep.subr.bf16.mxu0 0
    %1366 = vmatpush1.bf16.msra.mxu0 0
    %1367 = vmatprep.subr.bf16.mxu0 0
    %1368 = vmatpush1.bf16.msra.mxu0 0
    %1369 = vmatprep.subr.bf16.mxu0 0
    %1370 = vmatpush1.bf16.msra.mxu0 0
    %1371 = vmatprep.mubr.bf16.mxu0 0
    %1372 = vmatmul.mubr.bf16.gmra.mrb[0].mxu0 %v1337
    %v1373 = vpop.f32.mrb[0].mxu0
    %v1374 = vadd.f32 0.0, %v1373
    %v1375 = vpop.f32.mrb[0].mxu0
    %v1376 = vpop.f32.mrb[0].mxu0
    %v1377 = vadd.f32 0.0, %v1376
    %v1378 = vpop.f32.mrb[0].mxu0
    %1379 = vdwg.mxu0
    %v1380 = vlaneseq
    %v1381 = vshrl.u32 %v1380, 7
    %v1382 = vsub.s32 0, %v1381
    %v1383 = vrot.slane %v1161, %v1382
    %v1384 = vadd.f32 %v1383, %v1374
    %v1385 = vadd.f32 %v1383, %v1377
    %1386 = vrot.lane.b32.xlu0 %v1155, 112
    %v1387 = vpop.permute.xlu0 %1386
    %1388 = vrot.lane.b32.xlu0 %v1158, 112
    %v1389 = vpop.permute.xlu0 %1388
    %1390 = vrot.lane.b32.xlu0 %v1155, 80
    %v1391 = vpop.permute.xlu0 %1390
    %1392 = vrot.lane.b32.xlu0 %v1158, 80
    %v1393 = vpop.permute.xlu0 %1392
    %v1394 = vsel %vm75, %v1387, 0
    %v1396 = vsel %vm75, %v1389, 0
    %v1398 = vsel %vm75, %v1391, 0
    %v1400 = vsel %vm75, %v1393, 0
    %1402 = vmatprep.subr.mxu0 0.0
    %1403 = vmatpush1.xpose.msra.mxu0 %v1398
    %1404 = vmatprep.subr.mxu0 0.0
    %1405 = vmatpush1.xpose.msra.mxu0 %v1400
    %1406 = vmatprep.subr.mxu0 0.0
    %1407 = vmatpush1.xpose.msra.mxu0 0.0
    %1408 = vmatprep.subr.mxu0 0.0
    %1409 = vmatpush1.xpose.msra.mxu0 0.0
    %1410 = vmatprep.subr.mxu0 0.0
    %1411 = vmatpush1.xpose.msra.mxu0 0.0
    %1412 = vmatprep.subr.mxu0 0.0
    %1413 = vmatpush1.xpose.msra.mxu0 0.0
    %1414 = vmatprep.subr.mxu0 0.0
    %1415 = vmatpush1.xpose.msra.mxu0 0.0
    %1416 = vmatprep.subr.mxu0 0.0
    %1417 = vmatpush1.xpose.msra.mxu0 0.0
    %1418 = vmatprep.subr.mxu0 0.0
    %1419 = vmatpush1.xpose.msra.mxu0 0.0
    %1420 = vmatprep.subr.mxu0 0.0
    %1421 = vmatpush1.xpose.msra.mxu0 0.0
    %1422 = vmatprep.subr.mxu0 0.0
    %1423 = vmatpush1.xpose.msra.mxu0 0.0
    %1424 = vmatprep.subr.mxu0 0.0
    %1425 = vmatpush1.xpose.msra.mxu0 0.0
    %1426 = vmatprep.subr.mxu0 0.0
    %1427 = vmatpush1.xpose.msra.mxu0 0.0
    %1428 = vmatprep.subr.mxu0 0.0
    %1429 = vmatpush1.xpose.msra.mxu0 0.0
    %1430 = vmatprep.subr.mxu0 0.0
    %1431 = vmatpush1.xpose.msra.mxu0 0.0
    %1432 = vmatprep.subr.mxu0 0.0
    %1433 = vmatpush1.xpose.msra.mxu0 0.0
    %1434 = vmatprep.subr.mxu0 0.0
    %1435 = vmatpush1.xpose.msra.mxu0 0.0
    %1436 = vmatprep.subr.mxu0 0.0
    %1437 = vmatpush1.xpose.msra.mxu0 0.0
    %1438 = vmatprep.subr.mxu0 0.0
    %1439 = vmatpush1.xpose.msra.mxu0 0.0
    %1440 = vmatprep.subr.mxu0 0.0
    %1441 = vmatpush1.xpose.msra.mxu0 0.0
    %1442 = vmatprep.subr.mxu0 0.0
    %1443 = vmatpush1.xpose.msra.mxu0 0.0
    %1444 = vmatprep.subr.mxu0 0.0
    %1445 = vmatpush1.xpose.msra.mxu0 0.0
    %1446 = vmatprep.subr.mxu0 0.0
    %1447 = vmatpush1.xpose.msra.mxu0 0.0
    %1448 = vmatprep.subr.mxu0 0.0
    %1449 = vmatpush1.xpose.msra.mxu0 0.0
    %1450 = vmatprep.subr.mxu0 0.0
    %1451 = vmatpush1.xpose.msra.mxu0 0.0
    %1452 = vmatprep.subr.mxu0 0.0
    %1453 = vmatpush1.xpose.msra.mxu0 0.0
    %1454 = vmatprep.subr.mxu0 0.0
    %1455 = vmatpush1.xpose.msra.mxu0 0.0
    %1456 = vmatprep.subr.mxu0 0.0
    %1457 = vmatpush1.xpose.msra.mxu0 0.0
    %1458 = vmatprep.subr.mxu0 0.0
    %1459 = vmatpush1.xpose.msra.mxu0 0.0
    %1460 = vmatprep.subr.mxu0 0.0
    %1461 = vmatpush1.xpose.msra.mxu0 0.0
    %1462 = vmatprep.subr.mxu0 0.0
    %1463 = vmatpush1.xpose.msra.mxu0 0.0
    %1464 = vmatprep.subr.mxu0 0.0
    %1465 = vmatpush1.xpose.msra.mxu0 0.0
    %1466 = vmatprep.mubr.f32.mxu0 0.0
    %1467 = vmatmul.mubr.f32.gmra.mrb[0].mxu0 %v1394
    %v1468 = vpop.f32.mrb[0].mxu0
    %v1469 = vadd.f32 0.0, %v1468
    %v1470 = vpop.f32.mrb[0].mxu0
    %1471 = vmatprep.mubr.f32.mxu0 0.0
    %1472 = vmatmul.mubr.f32.gmra.mrb[0].mxu0 %v1396
    %v1473 = vpop.f32.mrb[0].mxu0
    %v1474 = vadd.f32 0.0, %v1473
    %v1475 = vpop.f32.mrb[0].mxu0
    %1476 = vdwg.mxu0
    %v1477 = vmul.f32 %v1469, 0.25
    %v1478 = vmul.f32 %v1474, 0.25
    %v1479 = vadd.f32 %v1477, %v332
    %v1480 = vadd.f32 %v1478, %v332
    %v1481 = vsel %vm75, %v1479, -inf
    %1482 = vmax.xlane.f32.xlu0 %v1481
    %v1483 = vpop.xlane.xlu0 %1482
    %v1484 = vsel %vm75, %v1480, -inf
    %1485 = vmax.xlane.f32.xlu0 %v1484
    %v1486 = vpop.xlane.xlu0 %1485
    %v1487 = vsub.f32 %v1479, %v1483
    %v1488 = vsub.f32 %v1480, %v1486
    %v1489 = vmul.f32 %v1487, 1.442695
    %v1490 = vpow.pop %v1489
    %v1491 = vmul.f32 %v1488, 1.442695
    %v1492 = vpow.pop %v1491
    %v1493 = vsel %vm75, %v1490, 0.0
    %1494 = vadd.xlane.f32.xlu0 %v1493
    %v1495 = vpop.xlane.xlu0 %1494
    %v1496 = vsel %vm75, %v1492, 0.0
    %1497 = vadd.xlane.f32.xlu0 %v1496
    %v1498 = vpop.xlane.xlu0 %1497
    %v1499 = vrcp.pop %v1495
    %v1500 = vrcp.pop %v1498
    %v1501 = vmul.f32 %v1490, %v1499
    %v1502 = vmul.f32 %v1492, %v1500
    %v1503 = vpack.c.bf16 %v1502, %v1501
    %1504 = vrot.lane.b32.xlu0 %v1278, 48
    %v1505 = vpop.permute.xlu0 %1504
    %v1508 = vsel %vm75, %v1503, 0
    %1510 = vmatprep.subr.bf16.mxu0 0
    %1511 = vmatpush1.bf16.msra.mxu0 %v1505
    %1512 = vmatprep.subr.bf16.mxu0 0
    %1513 = vmatpush1.bf16.msra.mxu0 0
    %1514 = vmatprep.subr.bf16.mxu0 0
    %1515 = vmatpush1.bf16.msra.mxu0 0
    %1516 = vmatprep.subr.bf16.mxu0 0
    %1517 = vmatpush1.bf16.msra.mxu0 0
    %1518 = vmatprep.subr.bf16.mxu0 0
    %1519 = vmatpush1.bf16.msra.mxu0 0
    %1520 = vmatprep.subr.bf16.mxu0 0
    %1521 = vmatpush1.bf16.msra.mxu0 0
    %1522 = vmatprep.subr.bf16.mxu0 0
    %1523 = vmatpush1.bf16.msra.mxu0 0
    %1524 = vmatprep.subr.bf16.mxu0 0
    %1525 = vmatpush1.bf16.msra.mxu0 0
    %1526 = vmatprep.subr.bf16.mxu0 0
    %1527 = vmatpush1.bf16.msra.mxu0 0
    %1528 = vmatprep.subr.bf16.mxu0 0
    %1529 = vmatpush1.bf16.msra.mxu0 0
    %1530 = vmatprep.subr.bf16.mxu0 0
    %1531 = vmatpush1.bf16.msra.mxu0 0
    %1532 = vmatprep.subr.bf16.mxu0 0
    %1533 = vmatpush1.bf16.msra.mxu0 0
    %1534 = vmatprep.subr.bf16.mxu0 0
    %1535 = vmatpush1.bf16.msra.mxu0 0
    %1536 = vmatprep.subr.bf16.mxu0 0
    %1537 = vmatpush1.bf16.msra.mxu0 0
    %1538 = vmatprep.subr.bf16.mxu0 0
    %1539 = vmatpush1.bf16.msra.mxu0 0
    %1540 = vmatprep.subr.bf16.mxu0 0
    %1541 = vmatpush1.bf16.msra.mxu0 0
    %1542 = vmatprep.mubr.bf16.mxu0 0
    %1543 = vmatmul.mubr.bf16.gmra.mrb[0].mxu0 %v1508
    %v1544 = vpop.f32.mrb[0].mxu0
    %v1545 = vadd.f32 0.0, %v1544
    %v1546 = vpop.f32.mrb[0].mxu0
    %v1547 = vpop.f32.mrb[0].mxu0
    %v1548 = vadd.f32 0.0, %v1547
    %v1549 = vpop.f32.mrb[0].mxu0
    %1550 = vdwg.mxu0
    %v1551 = vld [vmem:[#allocation2 + $0xc0] sm:$0xf]
    %v1552 = vld [vmem:[#allocation2 + $0xc4] sm:$0xf]
    %v1553 = vpack.c.bf16 %v1548, %v1545
    %v1556 = vunpack.c.l.b16 %v1551
    %v1557 = vunpack.c.l.b16 %v1552
    %v1558 = vpack.c.b16 %v1557, %v1556
    %v1561 = vsel %vm75, %v1553, 0
    %1563 = vmatprep.subr.bf16.mxu0 0
    %1564 = vmatpush1.bf16.msra.mxu0 %v1558
    %1565 = vmatprep.subr.bf16.mxu0 0
    %1566 = vmatpush1.bf16.msra.mxu0 0
    %1567 = vmatprep.subr.bf16.mxu0 0
    %1568 = vmatpush1.bf16.msra.mxu0 0
    %1569 = vmatprep.subr.bf16.mxu0 0
    %1570 = vmatpush1.bf16.msra.mxu0 0
    %1571 = vmatprep.subr.bf16.mxu0 0
    %1572 = vmatpush1.bf16.msra.mxu0 0
    %1573 = vmatprep.subr.bf16.mxu0 0
    %1574 = vmatpush1.bf16.msra.mxu0 0
    %1575 = vmatprep.subr.bf16.mxu0 0
    %1576 = vmatpush1.bf16.msra.mxu0 0
    %1577 = vmatprep.subr.bf16.mxu0 0
    %1578 = vmatpush1.bf16.msra.mxu0 0
    %1579 = vmatprep.subr.bf16.mxu0 0
    %1580 = vmatpush1.bf16.msra.mxu0 0
    %1581 = vmatprep.subr.bf16.mxu0 0
    %1582 = vmatpush1.bf16.msra.mxu0 0
    %1583 = vmatprep.subr.bf16.mxu0 0
    %1584 = vmatpush1.bf16.msra.mxu0 0
    %1585 = vmatprep.subr.bf16.mxu0 0
    %1586 = vmatpush1.bf16.msra.mxu0 0
    %1587 = vmatprep.subr.bf16.mxu0 0
    %1588 = vmatpush1.bf16.msra.mxu0 0
    %1589 = vmatprep.subr.bf16.mxu0 0
    %1590 = vmatpush1.bf16.msra.mxu0 0
    %1591 = vmatprep.subr.bf16.mxu0 0
    %1592 = vmatpush1.bf16.msra.mxu0 0
    %1593 = vmatprep.subr.bf16.mxu0 0
    %1594 = vmatpush1.bf16.msra.mxu0 0
    %1595 = vmatprep.mubr.bf16.mxu0 0
    %1596 = vmatmul.mubr.bf16.gmra.mrb[0].mxu0 %v1561
    %v1597 = vpop.f32.mrb[0].mxu0
    %v1598 = vadd.f32 0.0, %v1597
    %v1599 = vpop.f32.mrb[0].mxu0
    %v1600 = vpop.f32.mrb[0].mxu0
    %v1601 = vadd.f32 0.0, %v1600
    %v1602 = vpop.f32.mrb[0].mxu0
    %1603 = vdwg.mxu0
    %v1604 = vadd.f32 %v1384, %v1598
    %v1605 = vadd.f32 %v1385, %v1601
    %v1606 = vadd.f32 %v1093, %v1604
    %v1607 = vadd.f32 %v1094, %v1605
    %v1608 = vld [vmem:[%s6 + $0xd] sm:$0x1]
    %v1609 = vld [vmem:[%s6 + $0xe] sm:$0x1]
    %v1610 = vsel %vm286, %v1606, 0.0
    %1611 = vadd.xlane.f32.xlu0 %v1610
    %v1612 = vpop.xlane.xlu0 %1611
    %v1613 = vsel %vm286, %v1607, 0.0
    %1614 = vadd.xlane.f32.xlu0 %v1613
    %v1615 = vpop.xlane.xlu0 %1614
    %v1616 = vmul.f32 %v1612, %v293
    %v1617 = vmul.f32 %v1615, %v293
    %v1618 = vsub.f32 %v1606, %v1616
    %v1619 = vsub.f32 %v1607, %v1617
    %v1620 = vmul.f32 %v1618, %v1618
    %v1621 = vmul.f32 %v1619, %v1619
    %v1622 = vsel %vm286, %v1620, 0.0
    %1623 = vadd.xlane.f32.xlu0 %v1622
    %v1624 = vpop.xlane.xlu0 %1623
    %v1625 = vsel %vm286, %v1621, 0.0
    %1626 = vadd.xlane.f32.xlu0 %v1625
    %v1627 = vpop.xlane.xlu0 %1626
    %v1628 = vmul.f32 %v1624, %v293
    %v1629 = vmul.f32 %v1627, %v293
    %v1630 = vadd.f32 %v1628, 1e-05
    %v1631 = vadd.f32 %v1629, 1e-05
    %v1632 = vrsqrt.pop %v1630
    %v1633 = vrsqrt.pop %v1631
    %v1634 = vmul.f32 %v1618, %v1632
    %v1635 = vmul.f32 %v1619, %v1633
    %v1636 = vlaneseq
    %v1637 = vshrl.u32 %v1636, 7
    %v1638 = vsub.s32 0, %v1637
    %v1639 = vrot.slane %v1608, %v1638
    %v1640 = vmul.f32 %v1634, %v1639
    %v1641 = vmul.f32 %v1635, %v1639
    %v1642 = vlaneseq
    %v1643 = vshrl.u32 %v1642, 7
    %v1644 = vsub.s32 0, %v1643
    %v1645 = vrot.slane %v1609, %v1644
    %v1646 = vadd.f32 %v1640, %v1645
    %v1647 = vadd.f32 %v1641, %v1645
    %v1648 = vpack.c.bf16 %v1647, %v1646
    %v1649 = vld [vmem:[#allocation2 + $0xc8] sm:$0xf]
    %v1650 = vld [vmem:[#allocation2 + $0xcc] sm:$0xf]
    %v1651 = vld [vmem:[#allocation2 + $0xd0] sm:$0xf]
    %v1652 = vld [vmem:[#allocation2 + $0xd4] sm:$0xf]
    %v1653 = vld [vmem:[%s6 + $0xf] sm:$0x1]
    %v1654 = vlaneseq
    %v1655 = vshrl.u32 %v1654, 7
    %v1656 = vsub.s32 0, %v1655
    %v1657 = vrot.slane %v1653, %v1656
    %v1662 = vunpack.c.l.b16 %v1649
    %v1663 = vunpack.c.l.b16 %v1650
    %v1664 = vunpack.c.l.b16 %v1651
    %v1665 = vunpack.c.l.b16 %v1652
    %v1666 = vpack.c.b16 %v1663, %v1662
    %v1667 = vpack.c.b16 %v1665, %v1664
    %v1671 = vsel %vm286, %v1648, 0
    %1673 = vmatprep.subr.bf16.mxu0 0
    %1674 = vmatpush1.bf16.msra.mxu0 %v1666
    %1675 = vmatprep.subr.bf16.mxu0 0
    %1676 = vmatpush1.bf16.msra.mxu0 %v1667
    %1677 = vmatprep.subr.bf16.mxu0 0
    %1678 = vmatpush1.bf16.msra.mxu0 0
    %1679 = vmatprep.subr.bf16.mxu0 0
    %1680 = vmatpush1.bf16.msra.mxu0 0
    %1681 = vmatprep.subr.bf16.mxu0 0
    %1682 = vmatpush1.bf16.msra.mxu0 0
    %1683 = vmatprep.subr.bf16.mxu0 0
    %1684 = vmatpush1.bf16.msra.mxu0 0
    %1685 = vmatprep.subr.bf16.mxu0 0
    %1686 = vmatpush1.bf16.msra.mxu0 0
    %1687 = vmatprep.subr.bf16.mxu0 0
    %1688 = vmatpush1.bf16.msra.mxu0 0
    %1689 = vmatprep.subr.bf16.mxu0 0
    %1690 = vmatpush1.bf16.msra.mxu0 0
    %1691 = vmatprep.subr.bf16.mxu0 0
    %1692 = vmatpush1.bf16.msra.mxu0 0
    %1693 = vmatprep.subr.bf16.mxu0 0
    %1694 = vmatpush1.bf16.msra.mxu0 0
    %1695 = vmatprep.subr.bf16.mxu0 0
    %1696 = vmatpush1.bf16.msra.mxu0 0
    %1697 = vmatprep.subr.bf16.mxu0 0
    %1698 = vmatpush1.bf16.msra.mxu0 0
    %1699 = vmatprep.subr.bf16.mxu0 0
    %1700 = vmatpush1.bf16.msra.mxu0 0
    %1701 = vmatprep.subr.bf16.mxu0 0
    %1702 = vmatpush1.bf16.msra.mxu0 0
    %1703 = vmatprep.subr.bf16.mxu0 0
    %1704 = vmatpush1.bf16.msra.mxu0 0
    %1705 = vmatprep.mubr.bf16.mxu0 0
    %1706 = vmatmul.mubr.bf16.gmra.mrb[0].mxu0 %v1671
    %v1707 = vpop.f32.mrb[0].mxu0
    %v1708 = vadd.f32 %v1657, %v1707
    %v1709 = vpop.f32.mrb[0].mxu0
    %v1710 = vpop.f32.mrb[0].mxu0
    %v1711 = vadd.f32 %v1657, %v1710
    %v1712 = vpop.f32.mrb[0].mxu0
    %1713 = vdwg.mxu0
    %v1714 = vmul.f32 %v1708, %v1708
    %v1715 = vmul.f32 %v1711, %v1711
    %v1716 = vmul.f32 %v1708, %v1714
    %v1717 = vmul.f32 %v1711, %v1715
    %v1718 = vmul.f32 %v1716, 0.044715
    %v1719 = vmul.f32 %v1717, 0.044715
    %v1720 = vadd.f32 %v1708, %v1718
    %v1721 = vadd.f32 %v1711, %v1719
    %v1722 = vmul.f32 %v1720, 0.7978846
    %v1723 = vmul.f32 %v1721, 0.7978846
    %v1724 = vtanh.pop %v1722
    %v1725 = vtanh.pop %v1723
    %v1726 = vadd.f32 %v1724, 1.0
    %v1727 = vadd.f32 %v1725, 1.0
    %v1728 = vmul.f32 %v1726, 0.5
    %v1729 = vmul.f32 %v1727, 0.5
    %v1730 = vmul.f32 %v1708, %v1728
    %v1731 = vmul.f32 %v1711, %v1729
    %v1732 = vpack.c.bf16 %v1731, %v1730
    %v1733 = vld [vmem:[#allocation2 + $0xd8] sm:$0xf]
    %v1734 = vld [vmem:[#allocation2 + $0xdc] sm:$0xf]
    %v1735 = vld [vmem:[#allocation2 + $0xe0] sm:$0xf]
    %v1736 = vld [vmem:[#allocation2 + $0xe4] sm:$0xf]
    %v1737 = vld [vmem:[#allocation2 + $0xe8] sm:$0xf]
    %v1738 = vld [vmem:[#allocation2 + $0xec] sm:$0xf]
    %v1739 = vld [vmem:[#allocation2 + $0xf0] sm:$0xf]
    %v1740 = vld [vmem:[#allocation2 + $0xf4] sm:$0xf]
    %v1741 = vld [vmem:[%s6 + $0x10] sm:$0x1]
    %v1742 = vlaneseq
    %v1743 = vshrl.u32 %v1742, 7
    %v1744 = vsub.s32 0, %v1743
    %v1745 = vrot.slane %v1741, %v1744
    %v1754 = vunpack.c.l.b16 %v1733
    %v1755 = vunpack.c.l.b16 %v1734
    %v1756 = vunpack.c.l.b16 %v1735
    %v1757 = vunpack.c.l.b16 %v1736
    %v1758 = vunpack.c.l.b16 %v1737
    %v1759 = vunpack.c.l.b16 %v1738
    %v1760 = vunpack.c.l.b16 %v1739
    %v1761 = vunpack.c.l.b16 %v1740
    %v1762 = vpack.c.b16 %v1755, %v1754
    %v1763 = vpack.c.b16 %v1757, %v1756
    %v1764 = vpack.c.b16 %v1759, %v1758
    %v1765 = vpack.c.b16 %v1761, %v1760
    %v1771 = vsel %vm145, %v1732, 0
    %1773 = vmatprep.subr.bf16.mxu0 0
    %1774 = vmatpush1.bf16.msra.mxu0 %v1762
    %1775 = vmatprep.subr.bf16.mxu0 0
    %1776 = vmatpush1.bf16.msra.mxu0 %v1763
    %1777 = vmatprep.subr.bf16.mxu0 0
    %1778 = vmatpush1.bf16.msra.mxu0 %v1764
    %1779 = vmatprep.subr.bf16.mxu0 0
    %1780 = vmatpush1.bf16.msra.mxu0 %v1765
    %1781 = vmatprep.subr.bf16.mxu0 0
    %1782 = vmatpush1.bf16.msra.mxu0 0
    %1783 = vmatprep.subr.bf16.mxu0 0
    %1784 = vmatpush1.bf16.msra.mxu0 0
    %1785 = vmatprep.subr.bf16.mxu0 0
    %1786 = vmatpush1.bf16.msra.mxu0 0
    %1787 = vmatprep.subr.bf16.mxu0 0
    %1788 = vmatpush1.bf16.msra.mxu0 0
    %1789 = vmatprep.subr.bf16.mxu0 0
    %1790 = vmatpush1.bf16.msra.mxu0 0
    %1791 = vmatprep.subr.bf16.mxu0 0
    %1792 = vmatpush1.bf16.msra.mxu0 0
    %1793 = vmatprep.subr.bf16.mxu0 0
    %1794 = vmatpush1.bf16.msra.mxu0 0
    %1795 = vmatprep.subr.bf16.mxu0 0
    %1796 = vmatpush1.bf16.msra.mxu0 0
    %1797 = vmatprep.subr.bf16.mxu0 0
    %1798 = vmatpush1.bf16.msra.mxu0 0
    %1799 = vmatprep.subr.bf16.mxu0 0
    %1800 = vmatpush1.bf16.msra.mxu0 0
    %1801 = vmatprep.subr.bf16.mxu0 0
    %1802 = vmatpush1.bf16.msra.mxu0 0
    %1803 = vmatprep.subr.bf16.mxu0 0
    %1804 = vmatpush1.bf16.msra.mxu0 0
    %1805 = vmatprep.mubr.bf16.mxu0 0
    %1806 = vmatmul.mubr.bf16.gmra.mrb[0].mxu0 %v1771
    %v1807 = vpop.f32.mrb[0].mxu0
    %v1808 = vadd.f32 %v1745, %v1807
    %v1809 = vpop.f32.mrb[0].mxu0
    %v1810 = vpop.f32.mrb[0].mxu0
    %v1811 = vadd.f32 %v1745, %v1810
    %v1812 = vpop.f32.mrb[0].mxu0
    %1813 = vdwg.mxu0
    %v1814 = vadd.f32 %v1646, %v1808
    %v1815 = vadd.f32 %v1647, %v1811
    %v1816 = vld [vmem:[%s6 + $0x11] sm:$0x1]
    %v1817 = vld [vmem:[%s6 + $0x12] sm:$0x1]
    %v1818 = vsel %vm286, %v1814, 0.0
    %1819 = vadd.xlane.f32.xlu0 %v1818
    %v1820 = vpop.xlane.xlu0 %1819
    %v1821 = vsel %vm286, %v1815, 0.0
    %1822 = vadd.xlane.f32.xlu0 %v1821
    %v1823 = vpop.xlane.xlu0 %1822
    %v1824 = vmul.f32 %v1820, %v293
    %v1825 = vmul.f32 %v1823, %v293
    %v1826 = vsub.f32 %v1814, %v1824
    %v1827 = vsub.f32 %v1815, %v1825
    %v1828 = vmul.f32 %v1826, %v1826
    %v1829 = vmul.f32 %v1827, %v1827
    %v1830 = vsel %vm286, %v1828, 0.0
    %1831 = vadd.xlane.f32.xlu0 %v1830
    %v1832 = vpop.xlane.xlu0 %1831
    %v1833 = vsel %vm286, %v1829, 0.0
    %1834 = vadd.xlane.f32.xlu0 %v1833
    %v1835 = vpop.xlane.xlu0 %1834
    %v1836 = vmul.f32 %v1832, %v293
    %v1837 = vmul.f32 %v1835, %v293
    %v1838 = vadd.f32 %v1836, 1e-05
    %v1839 = vadd.f32 %v1837, 1e-05
    %v1840 = vrsqrt.pop %v1838
    %v1841 = vrsqrt.pop %v1839
    %v1842 = vmul.f32 %v1826, %v1840
    %v1843 = vmul.f32 %v1827, %v1841
    %v1844 = vlaneseq
    %v1845 = vshrl.u32 %v1844, 7
    %v1846 = vsub.s32 0, %v1845
    %v1847 = vrot.slane %v1816, %v1846
    %v1848 = vmul.f32 %v1842, %v1847
    %v1849 = vmul.f32 %v1843, %v1847
    %v1850 = vlaneseq
    %v1851 = vshrl.u32 %v1850, 7
    %v1852 = vsub.s32 0, %v1851
    %v1853 = vrot.slane %v1817, %v1852
    %v1854 = vadd.f32 %v1848, %v1853
    %v1855 = vadd.f32 %v1849, %v1853
    %v1856 = vld [vmem:[%s4] sm:$0x3]
    %v1857 = vpack.c.bf16 %v1855, %v1854
    %v1859 = vsel %vm75, %v1856, 0
    %1861 = vmatprep.subr.bf16.mxu0 0
    %1862 = vmatpush1.bf16.msra.mxu0 %v1857
    %1863 = vmatprep.subr.bf16.mxu0 0
    %1864 = vmatpush1.bf16.msra.mxu0 0
    %1865 = vmatprep.subr.bf16.mxu0 0
    %1866 = vmatpush1.bf16.msra.mxu0 0
    %1867 = vmatprep.subr.bf16.mxu0 0
    %1868 = vmatpush1.bf16.msra.mxu0 0
    %1869 = vmatprep.subr.bf16.mxu0 0
    %1870 = vmatpush1.bf16.msra.mxu0 0
    %1871 = vmatprep.subr.bf16.mxu0 0
    %1872 = vmatpush1.bf16.msra.mxu0 0
    %1873 = vmatprep.subr.bf16.mxu0 0
    %1874 = vmatpush1.bf16.msra.mxu0 0
    %1875 = vmatprep.subr.bf16.mxu0 0
    %1876 = vmatpush1.bf16.msra.mxu0 0
    %1877 = vmatprep.subr.bf16.mxu0 0
    %1878 = vmatpush1.bf16.msra.mxu0 0
    %1879 = vmatprep.subr.bf16.mxu0 0
    %1880 = vmatpush1.bf16.msra.mxu0 0
    %1881 = vmatprep.subr.bf16.mxu0 0
    %1882 = vmatpush1.bf16.msra.mxu0 0
    %1883 = vmatprep.subr.bf16.mxu0 0
    %1884 = vmatpush1.bf16.msra.mxu0 0
    %1885 = vmatprep.subr.bf16.mxu0 0
    %1886 = vmatpush1.bf16.msra.mxu0 0
    %1887 = vmatprep.subr.bf16.mxu0 0
    %1888 = vmatpush1.bf16.msra.mxu0 0
    %1889 = vmatprep.subr.bf16.mxu0 0
    %1890 = vmatpush1.bf16.msra.mxu0 0
    %1891 = vmatprep.subr.bf16.mxu0 0
    %1892 = vmatpush1.bf16.msra.mxu0 0
    %1893 = vmatprep.mubr.bf16.mxu0 0
    %1894 = vmatmul.mubr.bf16.gmra.mrb[0].mxu0 %v1859
    %v1895 = vpop.f32.mrb[0].mxu0
    %v1896 = vadd.f32 0.0, %v1895
    %v1897 = vpop.f32.mrb[0].mxu0
    %v1898 = vpop.f32.mrb[0].mxu0
    %v1899 = vpop.f32.mrb[0].mxu0
    %1900 = vdwg.mxu0
    %v1901 = vld [vmem:[#allocation2 + $0xf8] sm:$0xf]
    %v1902 = vld [vmem:[#allocation2 + $0xfc] sm:$0xf]
    %v1903 = vld [vmem:[#allocation2 + $0x100] sm:$0xf]
    %v1904 = vld [vmem:[#allocation2 + $0x104] sm:$0xf]
    %v1905 = vld [vmem:[#allocation2 + $0x108] sm:$0xf]
    %v1906 = vld [vmem:[#allocation2 + $0x10c] sm:$0xf]
    %v1907 = vld [vmem:[#allocation2 + $0x110] sm:$0xf]
    %v1908 = vld [vmem:[#allocation2 + $0x114] sm:$0xf]
    %v1909 = vld [vmem:[%s6 + $0x13] sm:$0x1]
    %v1910 = vld [vmem:[%s6 + $0x14] sm:$0x1]
    %v1911 = vpack.c.bf16 %v1896, %v1896
    %v1912 = vlaneseq
    %v1913 = vshrl.u32 %v1912, 7
    %v1914 = vsub.s32 0, %v1913
    %v1915 = vrot.slane %v1909, %v1914
    %v1920 = vunpack.c.l.b16 %v1901
    %v1921 = vunpack.c.l.b16 %v1902
    %v1922 = vunpack.c.l.b16 %v1903
    %v1923 = vunpack.c.l.b16 %v1904
    %v1924 = vpack.c.b16 %v1921, %v1920
    %v1925 = vpack.c.b16 %v1923, %v1922
    %v1929 = vsel %vm286, %v1911, 0
    %1931 = vmatprep.subr.bf16.mxu0 0
    %1932 = vmatpush1.bf16.msra.mxu0 %v1924
    %1933 = vmatprep.subr.bf16.mxu0 0
    %1934 = vmatpush1.bf16.msra.mxu0 %v1925
    %1935 = vmatprep.subr.bf16.mxu0 0
    %1936 = vmatpush1.bf16.msra.mxu0 0
    %1937 = vmatprep.subr.bf16.mxu0 0
    %1938 = vmatpush1.bf16.msra.mxu0 0
    %1939 = vmatprep.subr.bf16.mxu0 0
    %1940 = vmatpush1.bf16.msra.mxu0 0
    %1941 = vmatprep.subr.bf16.mxu0 0
    %1942 = vmatpush1.bf16.msra.mxu0 0
    %1943 = vmatprep.subr.bf16.mxu0 0
    %1944 = vmatpush1.bf16.msra.mxu0 0
    %1945 = vmatprep.subr.bf16.mxu0 0
    %1946 = vmatpush1.bf16.msra.mxu0 0
    %1947 = vmatprep.subr.bf16.mxu0 0
    %1948 = vmatpush1.bf16.msra.mxu0 0
    %1949 = vmatprep.subr.bf16.mxu0 0
    %1950 = vmatpush1.bf16.msra.mxu0 0
    %1951 = vmatprep.subr.bf16.mxu0 0
    %1952 = vmatpush1.bf16.msra.mxu0 0
    %1953 = vmatprep.subr.bf16.mxu0 0
    %1954 = vmatpush1.bf16.msra.mxu0 0
    %1955 = vmatprep.subr.bf16.mxu0 0
    %1956 = vmatpush1.bf16.msra.mxu0 0
    %1957 = vmatprep.subr.bf16.mxu0 0
    %1958 = vmatpush1.bf16.msra.mxu0 0
    %1959 = vmatprep.subr.bf16.mxu0 0
    %1960 = vmatpush1.bf16.msra.mxu0 0
    %1961 = vmatprep.subr.bf16.mxu0 0
    %1962 = vmatpush1.bf16.msra.mxu0 0
    %1963 = vmatprep.mubr.bf16.mxu0 0
    %1964 = vmatmul.mubr.bf16.gmra.mrb[0].mxu0 %v1929
    %v1965 = vpop.f32.mrb[0].mxu0
    %v1966 = vadd.f32 %v1915, %v1965
    %v1967 = vpop.f32.mrb[0].mxu0
    %v1968 = vpop.f32.mrb[0].mxu0
    %v1969 = vpop.f32.mrb[0].mxu0
    %1970 = vdwg.mxu0
    %v1971 = vlaneseq
    %v1972 = vshrl.u32 %v1971, 7
    %v1973 = vsub.s32 0, %v1972
    %v1974 = vrot.slane %v1910, %v1973
    %v1975 = vadd.f32 %v1966, %v1974
    %v1976 = vld [vmem:[%s3] sm:$0x1]
    %v1977 = vpack.c.bf16 %v1976, %v1976
    %v1982 = vunpack.c.l.b16 %v1905
    %v1983 = vunpack.c.l.b16 %v1906
    %v1984 = vunpack.c.l.b16 %v1907
    %v1985 = vunpack.c.l.b16 %v1908
    %v1986 = vpack.c.b16 %v1983, %v1982
    %v1987 = vpack.c.b16 %v1985, %v1984
    %v1991 = vsel %vm286, %v1977, 0
    %1993 = vmatprep.subr.bf16.mxu0 0
    %1994 = vmatpush1.bf16.msra.mxu0 %v1986
    %1995 = vmatprep.subr.bf16.mxu0 0
    %1996 = vmatpush1.bf16.msra.mxu0 %v1987
    %1997 = vmatprep.subr.bf16.mxu0 0
    %1998 = vmatpush1.bf16.msra.mxu0 0
    %1999 = vmatprep.subr.bf16.mxu0 0
    %2000 = vmatpush1.bf16.msra.mxu0 0
    %2001 = vmatprep.subr.bf16.mxu0 0
    %2002 = vmatpush1.bf16.msra.mxu0 0
    %2003 = vmatprep.subr.bf16.mxu0 0
    %2004 = vmatpush1.bf16.msra.mxu0 0
    %2005 = vmatprep.subr.bf16.mxu0 0
    %2006 = vmatpush1.bf16.msra.mxu0 0
    %2007 = vmatprep.subr.bf16.mxu0 0
    %2008 = vmatpush1.bf16.msra.mxu0 0
    %2009 = vmatprep.subr.bf16.mxu0 0
    %2010 = vmatpush1.bf16.msra.mxu0 0
    %2011 = vmatprep.subr.bf16.mxu0 0
    %2012 = vmatpush1.bf16.msra.mxu0 0
    %2013 = vmatprep.subr.bf16.mxu0 0
    %2014 = vmatpush1.bf16.msra.mxu0 0
    %2015 = vmatprep.subr.bf16.mxu0 0
    %2016 = vmatpush1.bf16.msra.mxu0 0
    %2017 = vmatprep.subr.bf16.mxu0 0
    %2018 = vmatpush1.bf16.msra.mxu0 0
    %2019 = vmatprep.subr.bf16.mxu0 0
    %2020 = vmatpush1.bf16.msra.mxu0 0
    %2021 = vmatprep.subr.bf16.mxu0 0
    %2022 = vmatpush1.bf16.msra.mxu0 0
    %2023 = vmatprep.subr.bf16.mxu0 0
    %2024 = vmatpush1.bf16.msra.mxu0 0
    %2025 = vmatprep.mubr.bf16.mxu0 0
    %2026 = vmatmul.mubr.bf16.gmra.mrb[0].mxu0 %v1991
    %v2027 = vpop.f32.mrb[0].mxu0
    %v2028 = vadd.f32 0.0, %v2027
    %v2029 = vpop.f32.mrb[0].mxu0
    %v2030 = vpop.f32.mrb[0].mxu0
    %v2031 = vpop.f32.mrb[0].mxu0
    %2032 = vdwg.mxu0
    %v2033 = vadd.f32 %v1975, %v2028
    %v2034 = vxor.u32 %v2033, 2147483648
    %v2035 = vmul.f32 %v2034, 1.442695
    %v2036 = vpow.pop %v2035
    %v2037 = vadd.f32 %v2036, 1.0
    %v2038 = vrcp.pop %v2037
    %v2039 = vmul.f32 1.0, %v2038
    %v2040 = vadd.f32 %v2028, %v1910
    %2042 = vrot.lane.b32.xlu0 %v2040, 64
    %v2043 = vpop.permute.xlu0 %2042
    %v2045 = vmul.f32 %v2039, %v2043
    %2047 = vrot.lane.b32.xlu0 %v2045, 64
    %v2048 = vpop.permute.xlu0 %2047
    %v2050 = vadd.f32 %v1966, %v2048
    %v2051 = vtanh.pop %v2050
    %v2052 = vsub.f32 1.0, %v2039
    %2054 = vrot.lane.b32.xlu0 %v2051, 96
    %v2055 = vpop.permute.xlu0 %2054
    %v2057 = vmul.f32 %v2052, %v2055
    %v2059 = vlaneseq
    %v2060 = vshrl.u32 %v2059, 7
    %v2061 = vsub.s32 0, %v2060
    %v2062 = vrot.slane %v1976, %v2061
    %2063 = vrot.lane.b32.xlu0 %v2062, 32
    %v2064 = vpop.permute.xlu0 %2063
    %v2066 = vmul.f32 %v2039, %v2064
    %v2067 = vadd.f32 %v2057, %v2066
    %v2068 = vpack.c.bf16 %v2067, %v2067
    %2070 = vrot.lane.b32.xlu0 %v2068, 96
    %v2071 = vpop.permute.xlu0 %2070
    %v2073 = vsel %vm286, %v2071, 0
    %2075 = vmatprep.subr.bf16.mxu0 0
    %2076 = vmatpush1.bf16.msra.mxu0 %v1986
    %2077 = vmatprep.subr.bf16.mxu0 0
    %2078 = vmatpush1.bf16.msra.mxu0 %v1987
    %2079 = vmatprep.subr.bf16.mxu0 0
    %2080 = vmatpush1.bf16.msra.mxu0 0
    %2081 = vmatprep.subr.bf16.mxu0 0
    %2082 = vmatpush1.bf16.msra.mxu0 0
    %2083 = vmatprep.subr.bf16.mxu0 0
    %2084 = vmatpush1.bf16.msra.mxu0 0
    %2085 = vmatprep.subr.bf16.mxu0 0
    %2086 = vmatpush1.bf16.msra.mxu0 0
    %2087 = vmatprep.subr.bf16.mxu0 0
    %2088 = vmatpush1.bf16.msra.mxu0 0
    %2089 = vmatprep.subr.bf16.mxu0 0
    %2090 = vmatpush1.bf16.msra.mxu0 0
    %2091 = vmatprep.subr.bf16.mxu0 0
    %2092 = vmatpush1.bf16.msra.mxu0 0
    %2093 = vmatprep.subr.bf16.mxu0 0
    %2094 = vmatpush1.bf16.msra.mxu0 0
    %2095 = vmatprep.subr.bf16.mxu0 0
    %2096 = vmatpush1.bf16.msra.mxu0 0
    %2097 = vmatprep.subr.bf16.mxu0 0
    %2098 = vmatpush1.bf16.msra.mxu0 0
    %2099 = vmatprep.subr.bf16.mxu0 0
    %2100 = vmatpush1.bf16.msra.mxu0 0
    %2101 = vmatprep.subr.bf16.mxu0 0
    %2102 = vmatpush1.bf16.msra.mxu0 0
    %2103 = vmatprep.subr.bf16.mxu0 0
    %2104 = vmatpush1.bf16.msra.mxu0 0
    %2105 = vmatprep.subr.bf16.mxu0 0
    %2106 = vmatpush1.bf16.msra.mxu0 0
    %2107 = vmatprep.mubr.bf16.mxu0 0
    %2108 = vmatmul.mubr.bf16.gmra.mrb[0].mxu0 %v2073
    %v2109 = vpop.f32.mrb[0].mxu0
    %v2110 = vadd.f32 0.0, %v2109
    %v2111 = vpop.f32.mrb[0].mxu0
    %v2112 = vpop.f32.mrb[0].mxu0
    %v2113 = vpop.f32.mrb[0].mxu0
    %2114 = vdwg.mxu0
    %v2116 = vrot.slane %v2110, 7
    %v2118 = vadd.f32 %v1975, %v2116
    %v2119 = vxor.u32 %v2118, 2147483648
    %v2120 = vmul.f32 %v2119, 1.442695
    %v2121 = vpow.pop %v2120
    %v2122 = vadd.f32 %v2121, 1.0
    %v2123 = vrcp.pop %v2122
    %v2124 = vmul.f32 1.0, %v2123
    %v2125 = vadd.f32 %v2110, %v1910
    %v2127 = vrot.slane %v2125, 7
    %2128 = vrot.lane.b32.xlu0 %v2127, 64
    %v2129 = vpop.permute.xlu0 %2128
    %v2131 = vmul.f32 %v2124, %v2129
    %2133 = vrot.lane.b32.xlu0 %v2131, 64
    %v2134 = vpop.permute.xlu0 %2133
    %v2136 = vadd.f32 %v1966, %v2134
    %v2137 = vtanh.pop %v2136
    %v2138 = vsub.f32 1.0, %v2124
    %2140 = vrot.lane.b32.xlu0 %v2137, 96
    %v2141 = vpop.permute.xlu0 %2140
    %v2143 = vmul.f32 %v2138, %v2141
    %v2145 = vrot.slane %v2067, 7
    %v2147 = vmul.f32 %v2124, %v2145
    %v2148 = vadd.f32 %v2143, %v2147
    %v2149 = vpack.c.bf16 %v2148, %v2148
    %v2151 = vshrl.u32 %v2149, 16
    %2153 = vrot.lane.b32.xlu0 %v2151, 96
    %v2154 = vpop.permute.xlu0 %2153
    %v2156 = vsel %vm286, %v2154, 0
    %2158 = vmatprep.subr.bf16.mxu0 0
    %2159 = vmatpush1.bf16.msra.mxu0 %v1986
    %2160 = vmatprep.subr.bf16.mxu0 0
    %2161 = vmatpush1.bf16.msra.mxu0 %v1987
    %2162 = vmatprep.subr.bf16.mxu0 0
    %2163 = vmatpush1.bf16.msra.mxu0 0
    %2164 = vmatprep.subr.bf16.mxu0 0
    %2165 = vmatpush1.bf16.msra.mxu0 0
    %2166 = vmatprep.subr.bf16.mxu0 0
    %2167 = vmatpush1.bf16.msra.mxu0 0
    %2168 = vmatprep.subr.bf16.mxu0 0
    %2169 = vmatpush1.bf16.msra.mxu0 0
    %2170 = vmatprep.subr.bf16.mxu0 0
    %2171 = vmatpush1.bf16.msra.mxu0 0
    %2172 = vmatprep.subr.bf16.mxu0 0
    %2173 = vmatpush1.bf16.msra.mxu0 0
    %2174 = vmatprep.subr.bf16.mxu0 0
    %2175 = vmatpush1.bf16.msra.mxu0 0
    %2176 = vmatprep.subr.bf16.mxu0 0
    %2177 = vmatpush1.bf16.msra.mxu0 0
    %2178 = vmatprep.subr.bf16.mxu0 0
    %2179 = vmatpush1.bf16.msra.mxu0 0
    %2180 = vmatprep.subr.bf16.mxu0 0
    %2181 = vmatpush1.bf16.msra.mxu0 0
    %2182 = vmatprep.subr.bf16.mxu0 0
    %2183 = vmatpush1.bf16.msra.mxu0 0
    %2184 = vmatprep.subr.bf16.mxu0 0
    %2185 = vmatpush1.bf16.msra.mxu0 0
    %2186 = vmatprep.subr.bf16.mxu0 0
    %2187 = vmatpush1.bf16.msra.mxu0 0
    %2188 = vmatprep.subr.bf16.mxu0 0
    %2189 = vmatpush1.bf16.msra.mxu0 0
    %2190 = vmatprep.mubr.bf16.mxu0 0
    %2191 = vmatmul.mubr.bf16.gmra.mrb[0].mxu0 %v2156
    %v2192 = vpop.f32.mrb[0].mxu0
    %v2193 = vadd.f32 0.0, %v2192
    %v2194 = vpop.f32.mrb[0].mxu0
    %v2195 = vpop.f32.mrb[0].mxu0
    %v2196 = vpop.f32.mrb[0].mxu0
    %2197 = vdwg.mxu0
    %v2199 = vrot.slane %v2193, 6
    %v2201 = vadd.f32 %v1975, %v2199
    %v2202 = vxor.u32 %v2201, 2147483648
    %v2203 = vmul.f32 %v2202, 1.442695
    %v2204 = vpow.pop %v2203
    %v2205 = vadd.f32 %v2204, 1.0
    %v2206 = vrcp.pop %v2205
    %v2207 = vmul.f32 1.0, %v2206
    %v2208 = vadd.f32 %v2193, %v1910
    %v2210 = vrot.slane %v2208, 6
    %2211 = vrot.lane.b32.xlu0 %v2210, 64
    %v2212 = vpop.permute.xlu0 %2211
    %v2214 = vmul.f32 %v2207, %v2212
    %2216 = vrot.lane.b32.xlu0 %v2214, 64
    %v2217 = vpop.permute.xlu0 %2216
    %v2219 = vadd.f32 %v1966, %v2217
    %v2220 = vtanh.pop %v2219
    %v2221 = vsub.f32 1.0, %v2207
    %2223 = vrot.lane.b32.xlu0 %v2220, 96
    %v2224 = vpop.permute.xlu0 %2223
    %v2226 = vmul.f32 %v2221, %v2224
    %v2228 = vrot.slane %v2148, 7
    %v2230 = vmul.f32 %v2207, %v2228
    %v2231 = vadd.f32 %v2226, %v2230
    %vm2232 = vcmask 1040384
    %v2233 = vsel %vm2232, %v2067, %v2148
    %vm2234 = vcmask 1041408
    %v2235 = vsel %vm2234, %v2233, %v2231
    %v2236 = vpack.c.bf16 %v2235, %v2235
    %v2237 = vld [vmem:[#allocation2 + $0x118] sm:$0xf]
    %v2238 = vld [vmem:[#allocation2 + $0x11c] sm:$0xf]
    %v2239 = vld [vmem:[#allocation2 + $0x120] sm:$0xf]
    %v2240 = vld [vmem:[#allocation2 + $0x124] sm:$0xf]
    %v2241 = vld [vmem:[%s6 + $0x15] sm:$0x1]
    %v2242 = vlaneseq
    %v2243 = vshrl.u32 %v2242, 7
    %v2244 = vsub.s32 0, %v2243
    %v2245 = vrot.slane %v2241, %v2244
    %2247 = vrot.lane.b32.xlu0 %v2236, 96
    %v2248 = vpop.permute.xlu0 %2247
    %v2253 = vunpack.c.l.b16 %v2237
    %v2254 = vunpack.c.l.b16 %v2238
    %v2255 = vunpack.c.l.b16 %v2239
    %v2256 = vunpack.c.l.b16 %v2240
    %v2257 = vpack.c.b16 %v2254, %v2253
    %v2258 = vpack.c.b16 %v2256, %v2255
    %v2262 = vsel %vm286, %v2248, 0
    %2264 = vmatprep.subr.bf16.mxu0 0
    %2265 = vmatpush1.bf16.msra.mxu0 %v2257
    %2266 = vmatprep.subr.bf16.mxu0 0
    %2267 = vmatpush1.bf16.msra.mxu0 %v2258
    %2268 = vmatprep.subr.bf16.mxu0 0
    %2269 = vmatpush1.bf16.msra.mxu0 0
    %2270 = vmatprep.subr.bf16.mxu0 0
    %2271 = vmatpush1.bf16.msra.mxu0 0
    %2272 = vmatprep.subr.bf16.mxu0 0
    %2273 = vmatpush1.bf16.msra.mxu0 0
    %2274 = vmatprep.subr.bf16.mxu0 0
    %2275 = vmatpush1.bf16.msra.mxu0 0
    %2276 = vmatprep.subr.bf16.mxu0 0
    %2277 = vmatpush1.bf16.msra.mxu0 0
    %2278 = vmatprep.subr.bf16.mxu0 0
    %2279 = vmatpush1.bf16.msra.mxu0 0
    %2280 = vmatprep.subr.bf16.mxu0 0
    %2281 = vmatpush1.bf16.msra.mxu0 0
    %2282 = vmatprep.subr.bf16.mxu0 0
    %2283 = vmatpush1.bf16.msra.mxu0 0
    %2284 = vmatprep.subr.bf16.mxu0 0
    %2285 = vmatpush1.bf16.msra.mxu0 0
    %2286 = vmatprep.subr.bf16.mxu0 0
    %2287 = vmatpush1.bf16.msra.mxu0 0
    %2288 = vmatprep.subr.bf16.mxu0 0
    %2289 = vmatpush1.bf16.msra.mxu0 0
    %2290 = vmatprep.subr.bf16.mxu0 0
    %2291 = vmatpush1.bf16.msra.mxu0 0
    %2292 = vmatprep.subr.bf16.mxu0 0
    %2293 = vmatpush1.bf16.msra.mxu0 0
    %2294 = vmatprep.subr.bf16.mxu0 0
    %2295 = vmatpush1.bf16.msra.mxu0 0
    %2296 = vmatprep.mubr.bf16.mxu0 0
    %2297 = vmatmul.mubr.bf16.gmra.mrb[0].mxu0 %v2262
    %v2298 = vpop.f32.mrb[0].mxu0
    %v2299 = vadd.f32 %v2245, %v2298
    %v2300 = vpop.f32.mrb[0].mxu0
    %v2301 = vpop.f32.mrb[0].mxu0
    %v2302 = vpop.f32.mrb[0].mxu0
    %2303 = vdwg.mxu0
    %vm2304 = vcmp.gt.f32.partialorder %v2299, 0.0
    %v2305 = vmin.f32 %v2299, 0.0
    %v2306 = vmul.f32 %v2305, 1.442695
    %v2307 = vpow.pop %v2306
    %v2308 = vsub.f32 %v2307, 1.0
    %v2309 = vsel %vm2304, %v2299, %v2308
    %v2310 = vpack.c.bf16 %v2309, %v2309
    %v2311 = vld [vmem:[#allocation2 + $0x128] sm:$0xf]
    %v2312 = vld [vmem:[#allocation2 + $0x12c] sm:$0xf]
    %v2313 = vld [vmem:[#allocation2 + $0x130] sm:$0xf]
    %v2314 = vld [vmem:[#allocation2 + $0x134] sm:$0xf]
    %v2315 = vld [vmem:[#allocation2 + $0x138] sm:$0xf]
    %v2316 = vld [vmem:[#allocation2 + $0x13c] sm:$0xf]
    %v2317 = vld [vmem:[%s6 + $0x16] sm:$0x1]
    %v2318 = vlaneseq
    %v2319 = vshrl.u32 %v2318, 7
    %v2320 = vsub.s32 0, %v2319
    %v2321 = vrot.slane %v2317, %v2320
    %v2328 = vunpack.c.l.b16 %v2311
    %v2329 = vunpack.c.l.b16 %v2312
    %v2330 = vunpack.c.l.b16 %v2313
    %v2331 = vunpack.c.l.b16 %v2314
    %v2332 = vunpack.c.l.b16 %v2315
    %v2333 = vunpack.c.l.b16 %v2316
    %v2334 = vpack.c.b16 %v2329, %v2328
    %v2335 = vpack.c.b16 %v2331, %v2330
    %v2336 = vpack.c.b16 %v2333, %v2332
    %vm2340 = vcmask 392192
    %v2342 = vsel %vm2340, %v2310, 0
    %2344 = vmatprep.subr.bf16.mxu0 0
    %2345 = vmatpush1.bf16.msra.mxu0 %v2334
    %2346 = vmatprep.subr.bf16.mxu0 0
    %2347 = vmatpush1.bf16.msra.mxu0 %v2335
    %2348 = vmatprep.subr.bf16.mxu0 0
    %2349 = vmatpush1.bf16.msra.mxu0 %v2336
    %2350 = vmatprep.subr.bf16.mxu0 0
    %2351 = vmatpush1.bf16.msra.mxu0 0
    %2352 = vmatprep.subr.bf16.mxu0 0
    %2353 = vmatpush1.bf16.msra.mxu0 0
    %2354 = vmatprep.subr.bf16.mxu0 0
    %2355 = vmatpush1.bf16.msra.mxu0 0
    %2356 = vmatprep.subr.bf16.mxu0 0
    %2357 = vmatpush1.bf16.msra.mxu0 0
    %2358 = vmatprep.subr.bf16.mxu0 0
    %2359 = vmatpush1.bf16.msra.mxu0 0
    %2360 = vmatprep.subr.bf16.mxu0 0
    %2361 = vmatpush1.bf16.msra.mxu0 0
    %2362 = vmatprep.subr.bf16.mxu0 0
    %2363 = vmatpush1.bf16.msra.mxu0 0
    %2364 = vmatprep.subr.bf16.mxu0 0
    %2365 = vmatpush1.bf16.msra.mxu0 0
    %2366 = vmatprep.subr.bf16.mxu0 0
    %2367 = vmatpush1.bf16.msra.mxu0 0
    %2368 = vmatprep.subr.bf16.mxu0 0
    %2369 = vmatpush1.bf16.msra.mxu0 0
    %2370 = vmatprep.subr.bf16.mxu0 0
    %2371 = vmatpush1.bf16.msra.mxu0 0
    %2372 = vmatprep.subr.bf16.mxu0 0
    %2373 = vmatpush1.bf16.msra.mxu0 0
    %2374 = vmatprep.subr.bf16.mxu0 0
    %2375 = vmatpush1.bf16.msra.mxu0 0
    %2376 = vmatprep.mubr.bf16.mxu0 0
    %2377 = vmatmul.mubr.bf16.gmra.mrb[0].mxu0 %v2342
    %v2378 = vpop.f32.mrb[0].mxu0
    %v2379 = vadd.f32 %v2321, %v2378
    %v2380 = vpop.f32.mrb[0].mxu0
    %v2381 = vpop.f32.mrb[0].mxu0
    %v2382 = vpop.f32.mrb[0].mxu0
    %2383 = vdwg.mxu0
    %2384 = vst [vmem:[#allocation5] sm:$0xff] 0.0
    %vm2385 = vcmask 124928
    %2386 = vst.msk [vmem:[#allocation5] sm:$0x7] %vm2385, %v2379
    %2388 = vrot.lane.b32.xlu0 %v2299, 96
    %v2389 = vpop.permute.xlu0 %2388
    %vm2391 = vcmask 133248
    %2392 = vst.msk [vmem:[#allocation5] sm:$0x7] %vm2391, %v2389
    %2394 = vrot.lane.b32.xlu0 %v2231, 96
    %v2395 = vpop.permute.xlu0 %2394
    %vm2397 = vcmask 256002
    %2398 = vst.msk [vmem:[#allocation5 + $0x1] sm:$0x4] %vm2397, %v2395
    // Predicated region
    $region34: #{tpu_custom_call.1} parent=1 // pred_check
      _
    $region35: #{tpu_custom_call.1} parent=1 // pred_check_branch
      %2400 = sbr.rel (0) target = $region37
    $region36: #{tpu_custom_call.1} parent=1 // pred_region
      %s2402 = ssub.s32 128, 128
      %2403 = vsyncadd [#allocation4], %s2402
      %s2405 = sshll.u32 [#allocation5], 4
      %s2406 = int_to_ptr.vmem [resolvable:$true] %s2405
      %2408 = dma.vmem_to_hbm [thread:$0]  %s2406, 128, %s7, [#allocation4]
    $region37: #{tpu_custom_call.1} parent=1 // pred_fallthru
      _
    // Predicated region
    $region38: #{tpu_custom_call.1} parent=1 // pred_check
      _
    $region39: #{tpu_custom_call.1} parent=1 // pred_check_branch
      %2410 = sbr.rel (0) target = $region41
    $region40: #{tpu_custom_call.1} parent=1 // pred_region
      %2411 = dma.done [#allocation4], 128
    $region41: #{tpu_custom_call.1} parent=1 // pred_fallthru
      _
    %2412 = vsyncpa [#allocation3], 1
    %2413 = vsyncpa [#allocation4], 1

</llo_original>
